<compile_context>
chip_gen: v7x
topology: tpu7x:2x2x1
jax: 0.10.0
libtpu: 0.0.40
codegen_flags: <defaults>
</compile_context>

<pallas_src>
import functools
import math

import jax
import jax.numpy as jnp
from jax.experimental import pallas as pl
from jax.experimental.pallas import tpu as pltpu


# ------------------------- configuration (small) -------------------------
CFG = dict(
    vocab=100,
    hidden=32,
    heads=4,
    layers=2,
    intermediate=64,
    max_pos=64,
    label_class=3,
    seq=8,
    batch=2,
)

OUT_PAD = 128  # lane-dense padded width of the fused (classifier | simmlp) head


# ------------------------------ in-kernel helpers ------------------------
def _layer_norm(x, g, b, eps):
    mu = jnp.mean(x, axis=-1, keepdims=True)
    var = jnp.mean((x - mu) ** 2, axis=-1, keepdims=True)
    return (x - mu) * jax.lax.rsqrt(var + eps) * g + b


def _softmax_rows(s):
    s = s - jnp.max(s, axis=-1, keepdims=True)
    p = jnp.exp(s)
    # EUP-approx reciprocal (~1e-3 rel err vs exact); fine for logits.
    return p * pl.reciprocal(jnp.sum(p, axis=-1, keepdims=True), approx=True)


# ------------------------------ fused model kernel ------------------------
def _fused_model_kernel(
    x_ref, bias_ref,
    emb_g_ref, emb_b_ref,
    wqkv_ref, bqkv_ref, wo_ref, bo_ref, ln1g_ref, ln1b_ref,
    w1_ref, b1_ref, w2_ref, b2_ref, ln2g_ref, ln2b_ref,
    wp_ref, bp_ref, wh_ref, bh_ref,
    out_ref,
    *, n_layers, n_heads, eps,
):
    f32 = jnp.float32
    hidden = x_ref.shape[-1]
    dh = hidden // n_heads
    scale = 1.0 / math.sqrt(dh)

    # ---- embedding LayerNorm (embeddings themselves computed outside) ----
    x = _layer_norm(x_ref[...].astype(f32), emb_g_ref[...], emb_b_ref[...], eps)

    # ---- block-diagonal additive attention bias, loaded ONCE, reused for
    #      every layer / head (no per-iteration broadcast re-emission) ----
    bias = bias_ref[...].astype(f32)                     # (B*S, B*S)

    # ---- encoder layers (statically unrolled; everything stays in VMEM) ----
    for l in range(n_layers):
        # fused QKV projection: ONE matmul per layer.
        qkv = jnp.dot(x, wqkv_ref[l], preferred_element_type=f32) + bqkv_ref[l]

        ctx_heads = []
        for h in range(n_heads):
            q_h = qkv[:, h * dh:(h + 1) * dh]                               # (BS, Dh)
            k_h = qkv[:, hidden + h * dh: hidden + (h + 1) * dh]            # (BS, Dh)
            v_h = qkv[:, 2 * hidden + h * dh: 2 * hidden + (h + 1) * dh]    # (BS, Dh)
            # all B*S rows at once; cross-batch entries killed by the bias.
            s = jax.lax.dot_general(
                q_h, k_h, (((1,), (1,)), ((), ())),
                preferred_element_type=f32) * scale + bias                  # (BS, BS)
            p = _softmax_rows(s)
            ctx_heads.append(jnp.dot(p, v_h, preferred_element_type=f32))   # (BS, Dh)

        # head merge: lane-concat then ONE (H, H) output-projection matmul.
        ctx = jnp.concatenate(ctx_heads, axis=-1)                           # (BS, H)
        attn = jnp.dot(ctx, wo_ref[l], preferred_element_type=f32) + bo_ref[l]
        x = _layer_norm(x + attn, ln1g_ref[l], ln1b_ref[l], eps)            # residual + LN

        # feed-forward
        ff = jnp.dot(x, w1_ref[l], preferred_element_type=f32) + b1_ref[l]
        # TODO(synk): HF RoBERTa / torch nn.GELU use exact erf GELU; tanh
        # approximation is used here for a guaranteed Mosaic lowering.
        ff = jax.nn.gelu(ff)
        ff = jnp.dot(ff, w2_ref[l], preferred_element_type=f32) + b2_ref[l]
        x = _layer_norm(x + ff, ln2g_ref[l], ln2b_ref[l], eps)              # residual + LN

    # ---- pooler + fused (classifier | simmlp) head, computed for ALL rows ----
    # (same MXU pass count as first-token-only; avoids any in-kernel sublane
    #  gather; the wrapper picks rows 0, S, 2S, ... and the first Lc+1 columns)
    pooled = jnp.tanh(
        jnp.dot(x, wp_ref[...], preferred_element_type=f32) + bp_ref[...])  # (BS, H)
    out = jnp.dot(pooled, wh_ref[...], preferred_element_type=f32) + bh_ref[...]
    out_ref[...] = out.astype(out_ref.dtype)                                # (BS, 128)


def _full_spec(shape):
    zeros = (0,) * len(shape)
    return pl.BlockSpec(shape, lambda i, _z=zeros: _z)


def fused_forward(x_emb, attn_bias, packed, cfg):
    bs = x_emb.shape[0]
    n_out = packed["wh"].shape[1]   # OUT_PAD

    operands = [
        x_emb, attn_bias,
        packed["emb_g"], packed["emb_b"],
        packed["wqkv"], packed["bqkv"], packed["wo"], packed["bo"],
        packed["ln1g"], packed["ln1b"],
        packed["w1"], packed["b1"], packed["w2"], packed["b2"],
        packed["ln2g"], packed["ln2b"],
        packed["wp"], packed["bp"], packed["wh"], packed["bh"],
    ]
    in_specs = [_full_spec(a.shape) for a in operands]

    kernel = functools.partial(
        _fused_model_kernel,
        n_layers=cfg["layers"], n_heads=cfg["heads"], eps=1e-5)

    return pl.pallas_call(
        kernel,
        out_shape=jax.ShapeDtypeStruct((bs, n_out), jnp.float32),
        grid=(1,),
        in_specs=in_specs,
        out_specs=_full_spec((bs, n_out)),
        compiler_params=pltpu.CompilerParams(dimension_semantics=("arbitrary",)),
    )(*operands)


# --------------------------- parameter construction ----------------------
def init_params(key, cfg):
    H, I, L = cfg["hidden"], cfg["intermediate"], cfg["label_class"]

    def nrm(k, shape, scale=0.02):
        return scale * jax.random.normal(k, shape, dtype=jnp.float32)

    keys = iter(jax.random.split(key, 256))
    params = dict(
        word_emb=nrm(next(keys), (cfg["vocab"], H)),
        pos_emb=nrm(next(keys), (cfg["max_pos"], H)),
        type_emb=nrm(next(keys), (2, H)),
        emb_ln_g=jnp.ones((H,), jnp.float32),
        emb_ln_b=jnp.zeros((H,), jnp.float32),
        layers=[],
        wp=nrm(next(keys), (H, H)),
        bp=jnp.zeros((H,), jnp.float32),
        # heads (classifier: H -> label_class, simmlp: H -> 1)
        wc=nrm(next(keys), (H, L)),
        bc=jnp.zeros((L,), jnp.float32),
        ws=nrm(next(keys), (H, 1)),
        bs=jnp.zeros((1,), jnp.float32),
    )
    for _ in range(cfg["layers"]):
        lp = dict(
            wq=nrm(next(keys), (H, H)), bq=jnp.zeros((H,), jnp.float32),
            wk=nrm(next(keys), (H, H)), bk=jnp.zeros((H,), jnp.float32),
            wv=nrm(next(keys), (H, H)), bv=jnp.zeros((H,), jnp.float32),
            wo=nrm(next(keys), (H, H)), bo=jnp.zeros((H,), jnp.float32),
            ln1_g=jnp.ones((H,), jnp.float32), ln1_b=jnp.zeros((H,), jnp.float32),
            w1=nrm(next(keys), (H, I)), b1=jnp.zeros((I,), jnp.float32),
            w2=nrm(next(keys), (I, H)), b2=jnp.zeros((H,), jnp.float32),
            ln2_g=jnp.ones((H,), jnp.float32), ln2_b=jnp.zeros((H,), jnp.float32),
        )
        params["layers"].append(lp)
    return params


def pack_params(params, cfg):
    """Lane-dense packing: fused (H, 3H) QKV, natural (H, H)/(H, I) mats,
    and a (H, OUT_PAD)-padded fused classifier|simmlp head."""
    H, I = cfg["hidden"], cfg["intermediate"]
    Lc = cfg["label_class"]
    layers = params["layers"]

    wh = jnp.concatenate([params["wc"], params["ws"]], axis=1)              # (H, Lc+1)
    bh = jnp.concatenate([params["bc"], params["bs"]]).reshape(1, Lc + 1)   # (1, Lc+1)

    packed = dict(
        emb_g=params["emb_ln_g"].reshape(1, H),
        emb_b=params["emb_ln_b"].reshape(1, H),
        # fused QKV: columns [q | k | v], each group head-major as in HF layout.
        wqkv=jnp.stack([jnp.concatenate([lp["wq"], lp["wk"], lp["wv"]], axis=1)
                        for lp in layers]),                                  # (L, H, 3H)
        bqkv=jnp.stack([jnp.concatenate([lp["bq"], lp["bk"], lp["bv"]]).reshape(1, 3 * H)
                        for lp in layers]),                                  # (L, 1, 3H)
        wo=jnp.stack([lp["wo"] for lp in layers]),                           # (L, H, H)
        bo=jnp.stack([lp["bo"].reshape(1, H) for lp in layers]),
        ln1g=jnp.stack([lp["ln1_g"].reshape(1, H) for lp in layers]),
        ln1b=jnp.stack([lp["ln1_b"].reshape(1, H) for lp in layers]),
        w1=jnp.stack([lp["w1"] for lp in layers]),                           # (L, H, I)
        b1=jnp.stack([lp["b1"].reshape(1, I) for lp in layers]),
        w2=jnp.stack([lp["w2"] for lp in layers]),                           # (L, I, H)
        b2=jnp.stack([lp["b2"].reshape(1, H) for lp in layers]),
        ln2g=jnp.stack([lp["ln2_g"].reshape(1, H) for lp in layers]),
        ln2b=jnp.stack([lp["ln2_b"].reshape(1, H) for lp in layers]),
        wp=params["wp"],
        bp=params["bp"].reshape(1, H),
        # fused classifier + simmlp head, zero-padded to a lane-dense width.
        wh=jnp.pad(wh, ((0, 0), (0, OUT_PAD - (Lc + 1)))),                   # (H, 128)
        bh=jnp.pad(bh, ((0, 0), (0, OUT_PAD - (Lc + 1)))),                   # (1, 128)
    )
    return packed


# ------------------------------- forward pass ----------------------------
def build_attn_bias(attention_mask, batch, seq):
    """(B*S, B*S) additive bias: block-diagonal over batch items (-1e9 across
    batches so exp underflows to exactly 0) plus HF-style (1-mask)*-1e4 key bias."""
    bs = batch * seq
    batch_ids = jnp.repeat(jnp.arange(batch, dtype=jnp.int32), seq)          # (B*S,)
    same = batch_ids[:, None] == batch_ids[None, :]                          # (B*S, B*S)
    key_bias = ((1.0 - attention_mask.astype(jnp.float32)) * -1e4).reshape(bs)
    return jnp.where(same, key_bias[None, :], jnp.float32(-1e9))


def my_model_forward(params, packed, cfg, input_ids, attention_mask=None):
    """Mirrors MyModel.forward: returns (main_out, sim_out)."""
    if attention_mask is None:
        attention_mask = jnp.ones_like(input_ids)
    B, S = input_ids.shape
    H = cfg["hidden"]
    Lc = cfg["label_class"]

    # Token/pos/type embedding gather + bias construction are tiny XLA glue;
    # everything else (emb LN -> encoder -> pooler -> heads) is ONE Pallas kernel.
    # TODO(synk): HF RoBERTa offsets position ids by padding_idx+1; the synthetic
    # backbone indexes positions from 0.
    x = (
        params["word_emb"][input_ids]
        + params["pos_emb"][:S][None, :, :]
        + params["type_emb"][0][None, None, :]
    ).reshape(B * S, H).astype(jnp.float32)
    attn_bias = build_attn_bias(attention_mask, B, S)          # (B*S, B*S)

    out_full = fused_forward(x, attn_bias, packed, cfg)        # (B*S, OUT_PAD)
    out = out_full.reshape(B, S, OUT_PAD)[:, 0, :]             # first token per item
    main_out = out[:, :Lc]                                     # classifier(main_dropout(pooled))
    sim_out = out[:, Lc:Lc + 1]                                # simmlp(sim_dropout(pooled))
    return main_out, sim_out


# ----------------------------------- main ---------------------------------
if __name__ == "__main__":
    key = jax.random.PRNGKey(0)
    pkey, ikey = jax.random.split(key)

    params = init_params(pkey, CFG)
    packed = pack_params(params, CFG)

    B, S = CFG["batch"], CFG["seq"]
    input_ids = jax.random.randint(ikey, (B, S), 0, CFG["vocab"], dtype=jnp.int32)
    attention_mask = jnp.ones((B, S), dtype=jnp.int32)

    fwd = jax.jit(lambda ids, mask: my_model_forward(params, packed, CFG, ids, mask))
    main_out, sim_out = fwd(input_ids, attention_mask)
    jax.block_until_ready((main_out, sim_out))

    assert main_out.shape == (B, CFG["label_class"])
    assert sim_out.shape == (B, 1)
    print("KERNEL_OK")
</pallas_src>

<mosaic_0001>
module attributes {stable_mosaic.version = 11 : i64} {
  func.func @_fused_model_kernel(%arg0: i32, %arg1: memref<16x32xf32, #tpu.memory_space<vmem>>, %arg2: memref<16x16xf32, #tpu.memory_space<vmem>>, %arg3: memref<1x32xf32, #tpu.memory_space<vmem>>, %arg4: memref<1x32xf32, #tpu.memory_space<vmem>>, %arg5: memref<2x32x96xf32, #tpu.memory_space<vmem>>, %arg6: memref<2x1x96xf32, #tpu.memory_space<vmem>>, %arg7: memref<2x32x32xf32, #tpu.memory_space<vmem>>, %arg8: memref<2x1x32xf32, #tpu.memory_space<vmem>>, %arg9: memref<2x1x32xf32, #tpu.memory_space<vmem>>, %arg10: memref<2x1x32xf32, #tpu.memory_space<vmem>>, %arg11: memref<2x32x64xf32, #tpu.memory_space<vmem>>, %arg12: memref<2x1x64xf32, #tpu.memory_space<vmem>>, %arg13: memref<2x64x32xf32, #tpu.memory_space<vmem>>, %arg14: memref<2x1x32xf32, #tpu.memory_space<vmem>>, %arg15: memref<2x1x32xf32, #tpu.memory_space<vmem>>, %arg16: memref<2x1x32xf32, #tpu.memory_space<vmem>>, %arg17: memref<32x32xf32, #tpu.memory_space<vmem>>, %arg18: memref<1x32xf32, #tpu.memory_space<vmem>>, %arg19: memref<32x128xf32, #tpu.memory_space<vmem>>, %arg20: memref<1x128xf32, #tpu.memory_space<vmem>>, %arg21: memref<16x128xf32, #tpu.memory_space<vmem>>) attributes {dimension_semantics = [#tpu.dimension_semantics<arbitrary>], iteration_bounds = array<i64: 1>, scalar_prefetch = 0 : i64, scratch_operands = 0 : i64, tpu.core_type = #tpu.core_type<tc>, window_params = [{pipeline_mode = #tpu.pipeline_mode<synchronous>, transform_indices = @transform_0, window_bounds = array<i64: 16, 32>}, {pipeline_mode = #tpu.pipeline_mode<synchronous>, transform_indices = @transform_1, window_bounds = array<i64: 16, 16>}, {pipeline_mode = #tpu.pipeline_mode<synchronous>, transform_indices = @transform_2, window_bounds = array<i64: 1, 32>}, {pipeline_mode = #tpu.pipeline_mode<synchronous>, transform_indices = @transform_3, window_bounds = array<i64: 1, 32>}, {pipeline_mode = #tpu.pipeline_mode<synchronous>, transform_indices = @transform_4, window_bounds = array<i64: 2, 32, 96>}, {pipeline_mode = #tpu.pipeline_mode<synchronous>, transform_indices = @transform_5, window_bounds = array<i64: 2, 1, 96>}, {pipeline_mode = #tpu.pipeline_mode<synchronous>, transform_indices = @transform_6, window_bounds = array<i64: 2, 32, 32>}, {pipeline_mode = #tpu.pipeline_mode<synchronous>, transform_indices = @transform_7, window_bounds = array<i64: 2, 1, 32>}, {pipeline_mode = #tpu.pipeline_mode<synchronous>, transform_indices = @transform_8, window_bounds = array<i64: 2, 1, 32>}, {pipeline_mode = #tpu.pipeline_mode<synchronous>, transform_indices = @transform_9, window_bounds = array<i64: 2, 1, 32>}, {pipeline_mode = #tpu.pipeline_mode<synchronous>, transform_indices = @transform_10, window_bounds = array<i64: 2, 32, 64>}, {pipeline_mode = #tpu.pipeline_mode<synchronous>, transform_indices = @transform_11, window_bounds = array<i64: 2, 1, 64>}, {pipeline_mode = #tpu.pipeline_mode<synchronous>, transform_indices = @transform_12, window_bounds = array<i64: 2, 64, 32>}, {pipeline_mode = #tpu.pipeline_mode<synchronous>, transform_indices = @transform_13, window_bounds = array<i64: 2, 1, 32>}, {pipeline_mode = #tpu.pipeline_mode<synchronous>, transform_indices = @transform_14, window_bounds = array<i64: 2, 1, 32>}, {pipeline_mode = #tpu.pipeline_mode<synchronous>, transform_indices = @transform_15, window_bounds = array<i64: 2, 1, 32>}, {pipeline_mode = #tpu.pipeline_mode<synchronous>, transform_indices = @transform_16, window_bounds = array<i64: 32, 32>}, {pipeline_mode = #tpu.pipeline_mode<synchronous>, transform_indices = @transform_17, window_bounds = array<i64: 1, 32>}, {pipeline_mode = #tpu.pipeline_mode<synchronous>, transform_indices = @transform_18, window_bounds = array<i64: 32, 128>}, {pipeline_mode = #tpu.pipeline_mode<synchronous>, transform_indices = @transform_19, window_bounds = array<i64: 1, 128>}, {pipeline_mode = #tpu.pipeline_mode<synchronous>, transform_indices = @transform_20, window_bounds = array<i64: 16, 128>}]} {
    %c0 = arith.constant 0 : index
    %c0_0 = arith.constant 0 : index
    %0 = vector.load %arg1[%c0, %c0_0] : memref<16x32xf32, #tpu.memory_space<vmem>>, vector<16x32xf32>
    %c0_1 = arith.constant 0 : index
    %c0_2 = arith.constant 0 : index
    %1 = vector.load %arg3[%c0_1, %c0_2] : memref<1x32xf32, #tpu.memory_space<vmem>>, vector<1x32xf32>
    %c0_3 = arith.constant 0 : index
    %c0_4 = arith.constant 0 : index
    %2 = vector.load %arg4[%c0_3, %c0_4] : memref<1x32xf32, #tpu.memory_space<vmem>>, vector<1x32xf32>
    %cst = arith.constant dense<0.000000e+00> : vector<16xf32>
    %3 = vector.multi_reduction <add>, %0, %cst [1] : vector<16x32xf32> to vector<16xf32>
    %4 = vector.shape_cast %3 : vector<16xf32> to vector<16x1xf32>
    %cst_5 = arith.constant 3.200000e+01 : f32
    %5 = vector.broadcast %cst_5 : f32 to vector<16x1xf32>
    %6 = arith.divf %4, %5 : vector<16x1xf32>
    %7 = vector.broadcast %6 : vector<16x1xf32> to vector<16x32xf32>
    %8 = arith.subf %0, %7 : vector<16x32xf32>
    %9 = arith.mulf %8, %8 : vector<16x32xf32>
    %cst_6 = arith.constant dense<0.000000e+00> : vector<16xf32>
    %10 = vector.multi_reduction <add>, %9, %cst_6 [1] : vector<16x32xf32> to vector<16xf32>
    %11 = vector.shape_cast %10 : vector<16xf32> to vector<16x1xf32>
    %cst_7 = arith.constant 3.200000e+01 : f32
    %12 = vector.broadcast %cst_7 : f32 to vector<16x1xf32>
    %13 = arith.divf %11, %12 : vector<16x1xf32>
    %14 = vector.broadcast %6 : vector<16x1xf32> to vector<16x32xf32>
    %15 = arith.subf %0, %14 : vector<16x32xf32>
    %cst_8 = arith.constant 9.99999974E-6 : f32
    %16 = vector.broadcast %cst_8 : f32 to vector<16x1xf32>
    %17 = arith.addf %13, %16 : vector<16x1xf32>
    %18 = math.rsqrt %17 : vector<16x1xf32>
    %19 = vector.broadcast %18 : vector<16x1xf32> to vector<16x32xf32>
    %20 = arith.mulf %15, %19 : vector<16x32xf32>
    %21 = vector.broadcast %1 : vector<1x32xf32> to vector<16x32xf32>
    %22 = arith.mulf %20, %21 : vector<16x32xf32>
    %23 = vector.broadcast %2 : vector<1x32xf32> to vector<16x32xf32>
    %24 = arith.addf %22, %23 : vector<16x32xf32>
    %c0_9 = arith.constant 0 : index
    %c0_10 = arith.constant 0 : index
    %25 = vector.load %arg2[%c0_9, %c0_10] : memref<16x16xf32, #tpu.memory_space<vmem>>, vector<16x16xf32>
    %c0_11 = arith.constant 0 : index
    %c0_12 = arith.constant 0 : index
    %c0_13 = arith.constant 0 : index
    %26 = vector.load %arg5[%c0_11, %c0_12, %c0_13] : memref<2x32x96xf32, #tpu.memory_space<vmem>>, vector<1x32x96xf32>
    %27 = vector.shape_cast %26 : vector<1x32x96xf32> to vector<32x96xf32>
    %cst_14 = arith.constant dense<0.000000e+00> : vector<16x96xf32>
    %28 = tpu.matmul %24, %27, %cst_14 {dimension_numbers = #tpu.dot_dimension_numbers<[1], [0], [0], [1], [0, 0, 1, 1], [], []>} : vector<16x32xf32>, vector<32x96xf32>, vector<16x96xf32> -> vector<16x96xf32>
    %c0_15 = arith.constant 0 : index
    %c0_16 = arith.constant 0 : index
    %c0_17 = arith.constant 0 : index
    %29 = vector.load %arg6[%c0_15, %c0_16, %c0_17] : memref<2x1x96xf32, #tpu.memory_space<vmem>>, vector<1x1x96xf32>
    %30 = vector.shape_cast %29 : vector<1x1x96xf32> to vector<1x96xf32>
    %31 = vector.broadcast %30 : vector<1x96xf32> to vector<16x96xf32>
    %32 = arith.addf %28, %31 : vector<16x96xf32>
    %33 = vector.extract_strided_slice %32 {offsets = [0, 0], sizes = [16, 8], strides = [1, 1]} : vector<16x96xf32> to vector<16x8xf32>
    %34 = vector.extract_strided_slice %32 {offsets = [0, 32], sizes = [16, 8], strides = [1, 1]} : vector<16x96xf32> to vector<16x8xf32>
    %35 = vector.extract_strided_slice %32 {offsets = [0, 64], sizes = [16, 8], strides = [1, 1]} : vector<16x96xf32> to vector<16x8xf32>
    %cst_18 = arith.constant dense<0.000000e+00> : vector<16x16xf32>
    %36 = tpu.matmul %33, %34, %cst_18 {dimension_numbers = #tpu.dot_dimension_numbers<[1], [1], [0], [0], [0, 0, 1, 0], [], []>} : vector<16x8xf32>, vector<16x8xf32>, vector<16x16xf32> -> vector<16x16xf32>
    %cst_19 = arith.constant 0.353553385 : f32
    %37 = vector.broadcast %cst_19 : f32 to vector<16x16xf32>
    %38 = arith.mulf %36, %37 : vector<16x16xf32>
    %39 = arith.addf %38, %25 : vector<16x16xf32>
    %cst_20 = arith.constant dense<0xFF800000> : vector<16xf32>
    %40 = vector.multi_reduction <maximumf>, %39, %cst_20 [1] : vector<16x16xf32> to vector<16xf32>
    %41 = vector.shape_cast %40 : vector<16xf32> to vector<16x1xf32>
    %42 = vector.broadcast %41 : vector<16x1xf32> to vector<16x16xf32>
    %43 = arith.subf %39, %42 : vector<16x16xf32>
    %44 = math.exp %43 : vector<16x16xf32>
    %cst_21 = arith.constant dense<0.000000e+00> : vector<16xf32>
    %45 = vector.multi_reduction <add>, %44, %cst_21 [1] : vector<16x16xf32> to vector<16xf32>
    %46 = vector.shape_cast %45 : vector<16xf32> to vector<16x1xf32>
    %47 = tpu.reciprocal %46 {approx = true} : vector<16x1xf32> -> vector<16x1xf32>
    %48 = vector.broadcast %47 : vector<16x1xf32> to vector<16x16xf32>
    %49 = arith.mulf %44, %48 : vector<16x16xf32>
    %cst_22 = arith.constant dense<0.000000e+00> : vector<16x8xf32>
    %50 = tpu.matmul %49, %35, %cst_22 {dimension_numbers = #tpu.dot_dimension_numbers<[1], [0], [0], [1], [0, 0, 1, 1], [], []>} : vector<16x16xf32>, vector<16x8xf32>, vector<16x8xf32> -> vector<16x8xf32>
    %51 = vector.extract_strided_slice %32 {offsets = [0, 8], sizes = [16, 8], strides = [1, 1]} : vector<16x96xf32> to vector<16x8xf32>
    %52 = vector.extract_strided_slice %32 {offsets = [0, 40], sizes = [16, 8], strides = [1, 1]} : vector<16x96xf32> to vector<16x8xf32>
    %53 = vector.extract_strided_slice %32 {offsets = [0, 72], sizes = [16, 8], strides = [1, 1]} : vector<16x96xf32> to vector<16x8xf32>
    %cst_23 = arith.constant dense<0.000000e+00> : vector<16x16xf32>
    %54 = tpu.matmul %51, %52, %cst_23 {dimension_numbers = #tpu.dot_dimension_numbers<[1], [1], [0], [0], [0, 0, 1, 0], [], []>} : vector<16x8xf32>, vector<16x8xf32>, vector<16x16xf32> -> vector<16x16xf32>
    %cst_24 = arith.constant 0.353553385 : f32
    %55 = vector.broadcast %cst_24 : f32 to vector<16x16xf32>
    %56 = arith.mulf %54, %55 : vector<16x16xf32>
    %57 = arith.addf %56, %25 : vector<16x16xf32>
    %cst_25 = arith.constant dense<0xFF800000> : vector<16xf32>
    %58 = vector.multi_reduction <maximumf>, %57, %cst_25 [1] : vector<16x16xf32> to vector<16xf32>
    %59 = vector.shape_cast %58 : vector<16xf32> to vector<16x1xf32>
    %60 = vector.broadcast %59 : vector<16x1xf32> to vector<16x16xf32>
    %61 = arith.subf %57, %60 : vector<16x16xf32>
    %62 = math.exp %61 : vector<16x16xf32>
    %cst_26 = arith.constant dense<0.000000e+00> : vector<16xf32>
    %63 = vector.multi_reduction <add>, %62, %cst_26 [1] : vector<16x16xf32> to vector<16xf32>
    %64 = vector.shape_cast %63 : vector<16xf32> to vector<16x1xf32>
    %65 = tpu.reciprocal %64 {approx = true} : vector<16x1xf32> -> vector<16x1xf32>
    %66 = vector.broadcast %65 : vector<16x1xf32> to vector<16x16xf32>
    %67 = arith.mulf %62, %66 : vector<16x16xf32>
    %cst_27 = arith.constant dense<0.000000e+00> : vector<16x8xf32>
    %68 = tpu.matmul %67, %53, %cst_27 {dimension_numbers = #tpu.dot_dimension_numbers<[1], [0], [0], [1], [0, 0, 1, 1], [], []>} : vector<16x16xf32>, vector<16x8xf32>, vector<16x8xf32> -> vector<16x8xf32>
    %69 = vector.extract_strided_slice %32 {offsets = [0, 16], sizes = [16, 8], strides = [1, 1]} : vector<16x96xf32> to vector<16x8xf32>
    %70 = vector.extract_strided_slice %32 {offsets = [0, 48], sizes = [16, 8], strides = [1, 1]} : vector<16x96xf32> to vector<16x8xf32>
    %71 = vector.extract_strided_slice %32 {offsets = [0, 80], sizes = [16, 8], strides = [1, 1]} : vector<16x96xf32> to vector<16x8xf32>
    %cst_28 = arith.constant dense<0.000000e+00> : vector<16x16xf32>
    %72 = tpu.matmul %69, %70, %cst_28 {dimension_numbers = #tpu.dot_dimension_numbers<[1], [1], [0], [0], [0, 0, 1, 0], [], []>} : vector<16x8xf32>, vector<16x8xf32>, vector<16x16xf32> -> vector<16x16xf32>
    %cst_29 = arith.constant 0.353553385 : f32
    %73 = vector.broadcast %cst_29 : f32 to vector<16x16xf32>
    %74 = arith.mulf %72, %73 : vector<16x16xf32>
    %75 = arith.addf %74, %25 : vector<16x16xf32>
    %cst_30 = arith.constant dense<0xFF800000> : vector<16xf32>
    %76 = vector.multi_reduction <maximumf>, %75, %cst_30 [1] : vector<16x16xf32> to vector<16xf32>
    %77 = vector.shape_cast %76 : vector<16xf32> to vector<16x1xf32>
    %78 = vector.broadcast %77 : vector<16x1xf32> to vector<16x16xf32>
    %79 = arith.subf %75, %78 : vector<16x16xf32>
    %80 = math.exp %79 : vector<16x16xf32>
    %cst_31 = arith.constant dense<0.000000e+00> : vector<16xf32>
    %81 = vector.multi_reduction <add>, %80, %cst_31 [1] : vector<16x16xf32> to vector<16xf32>
    %82 = vector.shape_cast %81 : vector<16xf32> to vector<16x1xf32>
    %83 = tpu.reciprocal %82 {approx = true} : vector<16x1xf32> -> vector<16x1xf32>
    %84 = vector.broadcast %83 : vector<16x1xf32> to vector<16x16xf32>
    %85 = arith.mulf %80, %84 : vector<16x16xf32>
    %cst_32 = arith.constant dense<0.000000e+00> : vector<16x8xf32>
    %86 = tpu.matmul %85, %71, %cst_32 {dimension_numbers = #tpu.dot_dimension_numbers<[1], [0], [0], [1], [0, 0, 1, 1], [], []>} : vector<16x16xf32>, vector<16x8xf32>, vector<16x8xf32> -> vector<16x8xf32>
    %87 = vector.extract_strided_slice %32 {offsets = [0, 24], sizes = [16, 8], strides = [1, 1]} : vector<16x96xf32> to vector<16x8xf32>
    %88 = vector.extract_strided_slice %32 {offsets = [0, 56], sizes = [16, 8], strides = [1, 1]} : vector<16x96xf32> to vector<16x8xf32>
    %89 = vector.extract_strided_slice %32 {offsets = [0, 88], sizes = [16, 8], strides = [1, 1]} : vector<16x96xf32> to vector<16x8xf32>
    %cst_33 = arith.constant dense<0.000000e+00> : vector<16x16xf32>
    %90 = tpu.matmul %87, %88, %cst_33 {dimension_numbers = #tpu.dot_dimension_numbers<[1], [1], [0], [0], [0, 0, 1, 0], [], []>} : vector<16x8xf32>, vector<16x8xf32>, vector<16x16xf32> -> vector<16x16xf32>
    %cst_34 = arith.constant 0.353553385 : f32
    %91 = vector.broadcast %cst_34 : f32 to vector<16x16xf32>
    %92 = arith.mulf %90, %91 : vector<16x16xf32>
    %93 = arith.addf %92, %25 : vector<16x16xf32>
    %cst_35 = arith.constant dense<0xFF800000> : vector<16xf32>
    %94 = vector.multi_reduction <maximumf>, %93, %cst_35 [1] : vector<16x16xf32> to vector<16xf32>
    %95 = vector.shape_cast %94 : vector<16xf32> to vector<16x1xf32>
    %96 = vector.broadcast %95 : vector<16x1xf32> to vector<16x16xf32>
    %97 = arith.subf %93, %96 : vector<16x16xf32>
    %98 = math.exp %97 : vector<16x16xf32>
    %cst_36 = arith.constant dense<0.000000e+00> : vector<16xf32>
    %99 = vector.multi_reduction <add>, %98, %cst_36 [1] : vector<16x16xf32> to vector<16xf32>
    %100 = vector.shape_cast %99 : vector<16xf32> to vector<16x1xf32>
    %101 = tpu.reciprocal %100 {approx = true} : vector<16x1xf32> -> vector<16x1xf32>
    %102 = vector.broadcast %101 : vector<16x1xf32> to vector<16x16xf32>
    %103 = arith.mulf %98, %102 : vector<16x16xf32>
    %cst_37 = arith.constant dense<0.000000e+00> : vector<16x8xf32>
    %104 = tpu.matmul %103, %89, %cst_37 {dimension_numbers = #tpu.dot_dimension_numbers<[1], [0], [0], [1], [0, 0, 1, 1], [], []>} : vector<16x16xf32>, vector<16x8xf32>, vector<16x8xf32> -> vector<16x8xf32>
    %105 = tpu.concatenate %50, %68, %86, %104 in 1 : vector<16x8xf32>, vector<16x8xf32>, vector<16x8xf32>, vector<16x8xf32> -> vector<16x32xf32>
    %c0_38 = arith.constant 0 : index
    %c0_39 = arith.constant 0 : index
    %c0_40 = arith.constant 0 : index
    %106 = vector.load %arg7[%c0_38, %c0_39, %c0_40] : memref<2x32x32xf32, #tpu.memory_space<vmem>>, vector<1x32x32xf32>
    %107 = vector.shape_cast %106 : vector<1x32x32xf32> to vector<32x32xf32>
    %cst_41 = arith.constant dense<0.000000e+00> : vector<16x32xf32>
    %108 = tpu.matmul %105, %107, %cst_41 {dimension_numbers = #tpu.dot_dimension_numbers<[1], [0], [0], [1], [0, 0, 1, 1], [], []>} : vector<16x32xf32>, vector<32x32xf32>, vector<16x32xf32> -> vector<16x32xf32>
    %c0_42 = arith.constant 0 : index
    %c0_43 = arith.constant 0 : index
    %c0_44 = arith.constant 0 : index
    %109 = vector.load %arg8[%c0_42, %c0_43, %c0_44] : memref<2x1x32xf32, #tpu.memory_space<vmem>>, vector<1x1x32xf32>
    %110 = vector.shape_cast %109 : vector<1x1x32xf32> to vector<1x32xf32>
    %111 = vector.broadcast %110 : vector<1x32xf32> to vector<16x32xf32>
    %112 = arith.addf %108, %111 : vector<16x32xf32>
    %113 = arith.addf %24, %112 : vector<16x32xf32>
    %c0_45 = arith.constant 0 : index
    %c0_46 = arith.constant 0 : index
    %c0_47 = arith.constant 0 : index
    %114 = vector.load %arg9[%c0_45, %c0_46, %c0_47] : memref<2x1x32xf32, #tpu.memory_space<vmem>>, vector<1x1x32xf32>
    %115 = vector.shape_cast %114 : vector<1x1x32xf32> to vector<1x32xf32>
    %c0_48 = arith.constant 0 : index
    %c0_49 = arith.constant 0 : index
    %c0_50 = arith.constant 0 : index
    %116 = vector.load %arg10[%c0_48, %c0_49, %c0_50] : memref<2x1x32xf32, #tpu.memory_space<vmem>>, vector<1x1x32xf32>
    %117 = vector.shape_cast %116 : vector<1x1x32xf32> to vector<1x32xf32>
    %cst_51 = arith.constant dense<0.000000e+00> : vector<16xf32>
    %118 = vector.multi_reduction <add>, %113, %cst_51 [1] : vector<16x32xf32> to vector<16xf32>
    %119 = vector.shape_cast %118 : vector<16xf32> to vector<16x1xf32>
    %cst_52 = arith.constant 3.200000e+01 : f32
    %120 = vector.broadcast %cst_52 : f32 to vector<16x1xf32>
    %121 = arith.divf %119, %120 : vector<16x1xf32>
    %122 = vector.broadcast %121 : vector<16x1xf32> to vector<16x32xf32>
    %123 = arith.subf %113, %122 : vector<16x32xf32>
    %124 = arith.mulf %123, %123 : vector<16x32xf32>
    %cst_53 = arith.constant dense<0.000000e+00> : vector<16xf32>
    %125 = vector.multi_reduction <add>, %124, %cst_53 [1] : vector<16x32xf32> to vector<16xf32>
    %126 = vector.shape_cast %125 : vector<16xf32> to vector<16x1xf32>
    %cst_54 = arith.constant 3.200000e+01 : f32
    %127 = vector.broadcast %cst_54 : f32 to vector<16x1xf32>
    %128 = arith.divf %126, %127 : vector<16x1xf32>
    %129 = vector.broadcast %121 : vector<16x1xf32> to vector<16x32xf32>
    %130 = arith.subf %113, %129 : vector<16x32xf32>
    %cst_55 = arith.constant 9.99999974E-6 : f32
    %131 = vector.broadcast %cst_55 : f32 to vector<16x1xf32>
    %132 = arith.addf %128, %131 : vector<16x1xf32>
    %133 = math.rsqrt %132 : vector<16x1xf32>
    %134 = vector.broadcast %133 : vector<16x1xf32> to vector<16x32xf32>
    %135 = arith.mulf %130, %134 : vector<16x32xf32>
    %136 = vector.broadcast %115 : vector<1x32xf32> to vector<16x32xf32>
    %137 = arith.mulf %135, %136 : vector<16x32xf32>
    %138 = vector.broadcast %117 : vector<1x32xf32> to vector<16x32xf32>
    %139 = arith.addf %137, %138 : vector<16x32xf32>
    %c0_56 = arith.constant 0 : index
    %c0_57 = arith.constant 0 : index
    %c0_58 = arith.constant 0 : index
    %140 = vector.load %arg11[%c0_56, %c0_57, %c0_58] : memref<2x32x64xf32, #tpu.memory_space<vmem>>, vector<1x32x64xf32>
    %141 = vector.shape_cast %140 : vector<1x32x64xf32> to vector<32x64xf32>
    %cst_59 = arith.constant dense<0.000000e+00> : vector<16x64xf32>
    %142 = tpu.matmul %139, %141, %cst_59 {dimension_numbers = #tpu.dot_dimension_numbers<[1], [0], [0], [1], [0, 0, 1, 1], [], []>} : vector<16x32xf32>, vector<32x64xf32>, vector<16x64xf32> -> vector<16x64xf32>
    %c0_60 = arith.constant 0 : index
    %c0_61 = arith.constant 0 : index
    %c0_62 = arith.constant 0 : index
    %143 = vector.load %arg12[%c0_60, %c0_61, %c0_62] : memref<2x1x64xf32, #tpu.memory_space<vmem>>, vector<1x1x64xf32>
    %144 = vector.shape_cast %143 : vector<1x1x64xf32> to vector<1x64xf32>
    %145 = vector.broadcast %144 : vector<1x64xf32> to vector<16x64xf32>
    %146 = arith.addf %142, %145 : vector<16x64xf32>
    %147 = arith.mulf %146, %146 : vector<16x64xf32>
    %148 = arith.mulf %146, %147 : vector<16x64xf32>
    %cst_63 = arith.constant 4.471500e-02 : f32
    %149 = vector.broadcast %cst_63 : f32 to vector<16x64xf32>
    %150 = arith.mulf %149, %148 : vector<16x64xf32>
    %151 = arith.addf %146, %150 : vector<16x64xf32>
    %cst_64 = arith.constant 0.797884583 : f32
    %152 = vector.broadcast %cst_64 : f32 to vector<16x64xf32>
    %153 = arith.mulf %152, %151 : vector<16x64xf32>
    %154 = math.tanh %153 : vector<16x64xf32>
    %cst_65 = arith.constant 1.000000e+00 : f32
    %155 = vector.broadcast %cst_65 : f32 to vector<16x64xf32>
    %156 = arith.addf %155, %154 : vector<16x64xf32>
    %cst_66 = arith.constant 5.000000e-01 : f32
    %157 = vector.broadcast %cst_66 : f32 to vector<16x64xf32>
    %158 = arith.mulf %157, %156 : vector<16x64xf32>
    %159 = arith.mulf %146, %158 : vector<16x64xf32>
    %c0_67 = arith.constant 0 : index
    %c0_68 = arith.constant 0 : index
    %c0_69 = arith.constant 0 : index
    %160 = vector.load %arg13[%c0_67, %c0_68, %c0_69] : memref<2x64x32xf32, #tpu.memory_space<vmem>>, vector<1x64x32xf32>
    %161 = vector.shape_cast %160 : vector<1x64x32xf32> to vector<64x32xf32>
    %cst_70 = arith.constant dense<0.000000e+00> : vector<16x32xf32>
    %162 = tpu.matmul %159, %161, %cst_70 {dimension_numbers = #tpu.dot_dimension_numbers<[1], [0], [0], [1], [0, 0, 1, 1], [], []>} : vector<16x64xf32>, vector<64x32xf32>, vector<16x32xf32> -> vector<16x32xf32>
    %c0_71 = arith.constant 0 : index
    %c0_72 = arith.constant 0 : index
    %c0_73 = arith.constant 0 : index
    %163 = vector.load %arg14[%c0_71, %c0_72, %c0_73] : memref<2x1x32xf32, #tpu.memory_space<vmem>>, vector<1x1x32xf32>
    %164 = vector.shape_cast %163 : vector<1x1x32xf32> to vector<1x32xf32>
    %165 = vector.broadcast %164 : vector<1x32xf32> to vector<16x32xf32>
    %166 = arith.addf %162, %165 : vector<16x32xf32>
    %167 = arith.addf %139, %166 : vector<16x32xf32>
    %c0_74 = arith.constant 0 : index
    %c0_75 = arith.constant 0 : index
    %c0_76 = arith.constant 0 : index
    %168 = vector.load %arg15[%c0_74, %c0_75, %c0_76] : memref<2x1x32xf32, #tpu.memory_space<vmem>>, vector<1x1x32xf32>
    %169 = vector.shape_cast %168 : vector<1x1x32xf32> to vector<1x32xf32>
    %c0_77 = arith.constant 0 : index
    %c0_78 = arith.constant 0 : index
    %c0_79 = arith.constant 0 : index
    %170 = vector.load %arg16[%c0_77, %c0_78, %c0_79] : memref<2x1x32xf32, #tpu.memory_space<vmem>>, vector<1x1x32xf32>
    %171 = vector.shape_cast %170 : vector<1x1x32xf32> to vector<1x32xf32>
    %cst_80 = arith.constant dense<0.000000e+00> : vector<16xf32>
    %172 = vector.multi_reduction <add>, %167, %cst_80 [1] : vector<16x32xf32> to vector<16xf32>
    %173 = vector.shape_cast %172 : vector<16xf32> to vector<16x1xf32>
    %cst_81 = arith.constant 3.200000e+01 : f32
    %174 = vector.broadcast %cst_81 : f32 to vector<16x1xf32>
    %175 = arith.divf %173, %174 : vector<16x1xf32>
    %176 = vector.broadcast %175 : vector<16x1xf32> to vector<16x32xf32>
    %177 = arith.subf %167, %176 : vector<16x32xf32>
    %178 = arith.mulf %177, %177 : vector<16x32xf32>
    %cst_82 = arith.constant dense<0.000000e+00> : vector<16xf32>
    %179 = vector.multi_reduction <add>, %178, %cst_82 [1] : vector<16x32xf32> to vector<16xf32>
    %180 = vector.shape_cast %179 : vector<16xf32> to vector<16x1xf32>
    %cst_83 = arith.constant 3.200000e+01 : f32
    %181 = vector.broadcast %cst_83 : f32 to vector<16x1xf32>
    %182 = arith.divf %180, %181 : vector<16x1xf32>
    %183 = vector.broadcast %175 : vector<16x1xf32> to vector<16x32xf32>
    %184 = arith.subf %167, %183 : vector<16x32xf32>
    %cst_84 = arith.constant 9.99999974E-6 : f32
    %185 = vector.broadcast %cst_84 : f32 to vector<16x1xf32>
    %186 = arith.addf %182, %185 : vector<16x1xf32>
    %187 = math.rsqrt %186 : vector<16x1xf32>
    %188 = vector.broadcast %187 : vector<16x1xf32> to vector<16x32xf32>
    %189 = arith.mulf %184, %188 : vector<16x32xf32>
    %190 = vector.broadcast %169 : vector<1x32xf32> to vector<16x32xf32>
    %191 = arith.mulf %189, %190 : vector<16x32xf32>
    %192 = vector.broadcast %171 : vector<1x32xf32> to vector<16x32xf32>
    %193 = arith.addf %191, %192 : vector<16x32xf32>
    %c1 = arith.constant 1 : index
    %c0_85 = arith.constant 0 : index
    %c0_86 = arith.constant 0 : index
    %194 = vector.load %arg5[%c1, %c0_85, %c0_86] : memref<2x32x96xf32, #tpu.memory_space<vmem>>, vector<1x32x96xf32>
    %195 = vector.shape_cast %194 : vector<1x32x96xf32> to vector<32x96xf32>
    %cst_87 = arith.constant dense<0.000000e+00> : vector<16x96xf32>
    %196 = tpu.matmul %193, %195, %cst_87 {dimension_numbers = #tpu.dot_dimension_numbers<[1], [0], [0], [1], [0, 0, 1, 1], [], []>} : vector<16x32xf32>, vector<32x96xf32>, vector<16x96xf32> -> vector<16x96xf32>
    %c1_88 = arith.constant 1 : index
    %c0_89 = arith.constant 0 : index
    %c0_90 = arith.constant 0 : index
    %197 = vector.load %arg6[%c1_88, %c0_89, %c0_90] : memref<2x1x96xf32, #tpu.memory_space<vmem>>, vector<1x1x96xf32>
    %198 = vector.shape_cast %197 : vector<1x1x96xf32> to vector<1x96xf32>
    %199 = vector.broadcast %198 : vector<1x96xf32> to vector<16x96xf32>
    %200 = arith.addf %196, %199 : vector<16x96xf32>
    %201 = vector.extract_strided_slice %200 {offsets = [0, 0], sizes = [16, 8], strides = [1, 1]} : vector<16x96xf32> to vector<16x8xf32>
    %202 = vector.extract_strided_slice %200 {offsets = [0, 32], sizes = [16, 8], strides = [1, 1]} : vector<16x96xf32> to vector<16x8xf32>
    %203 = vector.extract_strided_slice %200 {offsets = [0, 64], sizes = [16, 8], strides = [1, 1]} : vector<16x96xf32> to vector<16x8xf32>
    %cst_91 = arith.constant dense<0.000000e+00> : vector<16x16xf32>
    %204 = tpu.matmul %201, %202, %cst_91 {dimension_numbers = #tpu.dot_dimension_numbers<[1], [1], [0], [0], [0, 0, 1, 0], [], []>} : vector<16x8xf32>, vector<16x8xf32>, vector<16x16xf32> -> vector<16x16xf32>
    %cst_92 = arith.constant 0.353553385 : f32
    %205 = vector.broadcast %cst_92 : f32 to vector<16x16xf32>
    %206 = arith.mulf %204, %205 : vector<16x16xf32>
    %207 = arith.addf %206, %25 : vector<16x16xf32>
    %cst_93 = arith.constant dense<0xFF800000> : vector<16xf32>
    %208 = vector.multi_reduction <maximumf>, %207, %cst_93 [1] : vector<16x16xf32> to vector<16xf32>
    %209 = vector.shape_cast %208 : vector<16xf32> to vector<16x1xf32>
    %210 = vector.broadcast %209 : vector<16x1xf32> to vector<16x16xf32>
    %211 = arith.subf %207, %210 : vector<16x16xf32>
    %212 = math.exp %211 : vector<16x16xf32>
    %cst_94 = arith.constant dense<0.000000e+00> : vector<16xf32>
    %213 = vector.multi_reduction <add>, %212, %cst_94 [1] : vector<16x16xf32> to vector<16xf32>
    %214 = vector.shape_cast %213 : vector<16xf32> to vector<16x1xf32>
    %215 = tpu.reciprocal %214 {approx = true} : vector<16x1xf32> -> vector<16x1xf32>
    %216 = vector.broadcast %215 : vector<16x1xf32> to vector<16x16xf32>
    %217 = arith.mulf %212, %216 : vector<16x16xf32>
    %cst_95 = arith.constant dense<0.000000e+00> : vector<16x8xf32>
    %218 = tpu.matmul %217, %203, %cst_95 {dimension_numbers = #tpu.dot_dimension_numbers<[1], [0], [0], [1], [0, 0, 1, 1], [], []>} : vector<16x16xf32>, vector<16x8xf32>, vector<16x8xf32> -> vector<16x8xf32>
    %219 = vector.extract_strided_slice %200 {offsets = [0, 8], sizes = [16, 8], strides = [1, 1]} : vector<16x96xf32> to vector<16x8xf32>
    %220 = vector.extract_strided_slice %200 {offsets = [0, 40], sizes = [16, 8], strides = [1, 1]} : vector<16x96xf32> to vector<16x8xf32>
    %221 = vector.extract_strided_slice %200 {offsets = [0, 72], sizes = [16, 8], strides = [1, 1]} : vector<16x96xf32> to vector<16x8xf32>
    %cst_96 = arith.constant dense<0.000000e+00> : vector<16x16xf32>
    %222 = tpu.matmul %219, %220, %cst_96 {dimension_numbers = #tpu.dot_dimension_numbers<[1], [1], [0], [0], [0, 0, 1, 0], [], []>} : vector<16x8xf32>, vector<16x8xf32>, vector<16x16xf32> -> vector<16x16xf32>
    %cst_97 = arith.constant 0.353553385 : f32
    %223 = vector.broadcast %cst_97 : f32 to vector<16x16xf32>
    %224 = arith.mulf %222, %223 : vector<16x16xf32>
    %225 = arith.addf %224, %25 : vector<16x16xf32>
    %cst_98 = arith.constant dense<0xFF800000> : vector<16xf32>
    %226 = vector.multi_reduction <maximumf>, %225, %cst_98 [1] : vector<16x16xf32> to vector<16xf32>
    %227 = vector.shape_cast %226 : vector<16xf32> to vector<16x1xf32>
    %228 = vector.broadcast %227 : vector<16x1xf32> to vector<16x16xf32>
    %229 = arith.subf %225, %228 : vector<16x16xf32>
    %230 = math.exp %229 : vector<16x16xf32>
    %cst_99 = arith.constant dense<0.000000e+00> : vector<16xf32>
    %231 = vector.multi_reduction <add>, %230, %cst_99 [1] : vector<16x16xf32> to vector<16xf32>
    %232 = vector.shape_cast %231 : vector<16xf32> to vector<16x1xf32>
    %233 = tpu.reciprocal %232 {approx = true} : vector<16x1xf32> -> vector<16x1xf32>
    %234 = vector.broadcast %233 : vector<16x1xf32> to vector<16x16xf32>
    %235 = arith.mulf %230, %234 : vector<16x16xf32>
    %cst_100 = arith.constant dense<0.000000e+00> : vector<16x8xf32>
    %236 = tpu.matmul %235, %221, %cst_100 {dimension_numbers = #tpu.dot_dimension_numbers<[1], [0], [0], [1], [0, 0, 1, 1], [], []>} : vector<16x16xf32>, vector<16x8xf32>, vector<16x8xf32> -> vector<16x8xf32>
    %237 = vector.extract_strided_slice %200 {offsets = [0, 16], sizes = [16, 8], strides = [1, 1]} : vector<16x96xf32> to vector<16x8xf32>
    %238 = vector.extract_strided_slice %200 {offsets = [0, 48], sizes = [16, 8], strides = [1, 1]} : vector<16x96xf32> to vector<16x8xf32>
    %239 = vector.extract_strided_slice %200 {offsets = [0, 80], sizes = [16, 8], strides = [1, 1]} : vector<16x96xf32> to vector<16x8xf32>
    %cst_101 = arith.constant dense<0.000000e+00> : vector<16x16xf32>
    %240 = tpu.matmul %237, %238, %cst_101 {dimension_numbers = #tpu.dot_dimension_numbers<[1], [1], [0], [0], [0, 0, 1, 0], [], []>} : vector<16x8xf32>, vector<16x8xf32>, vector<16x16xf32> -> vector<16x16xf32>
    %cst_102 = arith.constant 0.353553385 : f32
    %241 = vector.broadcast %cst_102 : f32 to vector<16x16xf32>
    %242 = arith.mulf %240, %241 : vector<16x16xf32>
    %243 = arith.addf %242, %25 : vector<16x16xf32>
    %cst_103 = arith.constant dense<0xFF800000> : vector<16xf32>
    %244 = vector.multi_reduction <maximumf>, %243, %cst_103 [1] : vector<16x16xf32> to vector<16xf32>
    %245 = vector.shape_cast %244 : vector<16xf32> to vector<16x1xf32>
    %246 = vector.broadcast %245 : vector<16x1xf32> to vector<16x16xf32>
    %247 = arith.subf %243, %246 : vector<16x16xf32>
    %248 = math.exp %247 : vector<16x16xf32>
    %cst_104 = arith.constant dense<0.000000e+00> : vector<16xf32>
    %249 = vector.multi_reduction <add>, %248, %cst_104 [1] : vector<16x16xf32> to vector<16xf32>
    %250 = vector.shape_cast %249 : vector<16xf32> to vector<16x1xf32>
    %251 = tpu.reciprocal %250 {approx = true} : vector<16x1xf32> -> vector<16x1xf32>
    %252 = vector.broadcast %251 : vector<16x1xf32> to vector<16x16xf32>
    %253 = arith.mulf %248, %252 : vector<16x16xf32>
    %cst_105 = arith.constant dense<0.000000e+00> : vector<16x8xf32>
    %254 = tpu.matmul %253, %239, %cst_105 {dimension_numbers = #tpu.dot_dimension_numbers<[1], [0], [0], [1], [0, 0, 1, 1], [], []>} : vector<16x16xf32>, vector<16x8xf32>, vector<16x8xf32> -> vector<16x8xf32>
    %255 = vector.extract_strided_slice %200 {offsets = [0, 24], sizes = [16, 8], strides = [1, 1]} : vector<16x96xf32> to vector<16x8xf32>
    %256 = vector.extract_strided_slice %200 {offsets = [0, 56], sizes = [16, 8], strides = [1, 1]} : vector<16x96xf32> to vector<16x8xf32>
    %257 = vector.extract_strided_slice %200 {offsets = [0, 88], sizes = [16, 8], strides = [1, 1]} : vector<16x96xf32> to vector<16x8xf32>
    %cst_106 = arith.constant dense<0.000000e+00> : vector<16x16xf32>
    %258 = tpu.matmul %255, %256, %cst_106 {dimension_numbers = #tpu.dot_dimension_numbers<[1], [1], [0], [0], [0, 0, 1, 0], [], []>} : vector<16x8xf32>, vector<16x8xf32>, vector<16x16xf32> -> vector<16x16xf32>
    %cst_107 = arith.constant 0.353553385 : f32
    %259 = vector.broadcast %cst_107 : f32 to vector<16x16xf32>
    %260 = arith.mulf %258, %259 : vector<16x16xf32>
    %261 = arith.addf %260, %25 : vector<16x16xf32>
    %cst_108 = arith.constant dense<0xFF800000> : vector<16xf32>
    %262 = vector.multi_reduction <maximumf>, %261, %cst_108 [1] : vector<16x16xf32> to vector<16xf32>
    %263 = vector.shape_cast %262 : vector<16xf32> to vector<16x1xf32>
    %264 = vector.broadcast %263 : vector<16x1xf32> to vector<16x16xf32>
    %265 = arith.subf %261, %264 : vector<16x16xf32>
    %266 = math.exp %265 : vector<16x16xf32>
    %cst_109 = arith.constant dense<0.000000e+00> : vector<16xf32>
    %267 = vector.multi_reduction <add>, %266, %cst_109 [1] : vector<16x16xf32> to vector<16xf32>
    %268 = vector.shape_cast %267 : vector<16xf32> to vector<16x1xf32>
    %269 = tpu.reciprocal %268 {approx = true} : vector<16x1xf32> -> vector<16x1xf32>
    %270 = vector.broadcast %269 : vector<16x1xf32> to vector<16x16xf32>
    %271 = arith.mulf %266, %270 : vector<16x16xf32>
    %cst_110 = arith.constant dense<0.000000e+00> : vector<16x8xf32>
    %272 = tpu.matmul %271, %257, %cst_110 {dimension_numbers = #tpu.dot_dimension_numbers<[1], [0], [0], [1], [0, 0, 1, 1], [], []>} : vector<16x16xf32>, vector<16x8xf32>, vector<16x8xf32> -> vector<16x8xf32>
    %273 = tpu.concatenate %218, %236, %254, %272 in 1 : vector<16x8xf32>, vector<16x8xf32>, vector<16x8xf32>, vector<16x8xf32> -> vector<16x32xf32>
    %c1_111 = arith.constant 1 : index
    %c0_112 = arith.constant 0 : index
    %c0_113 = arith.constant 0 : index
    %274 = vector.load %arg7[%c1_111, %c0_112, %c0_113] : memref<2x32x32xf32, #tpu.memory_space<vmem>>, vector<1x32x32xf32>
    %275 = vector.shape_cast %274 : vector<1x32x32xf32> to vector<32x32xf32>
    %cst_114 = arith.constant dense<0.000000e+00> : vector<16x32xf32>
    %276 = tpu.matmul %273, %275, %cst_114 {dimension_numbers = #tpu.dot_dimension_numbers<[1], [0], [0], [1], [0, 0, 1, 1], [], []>} : vector<16x32xf32>, vector<32x32xf32>, vector<16x32xf32> -> vector<16x32xf32>
    %c1_115 = arith.constant 1 : index
    %c0_116 = arith.constant 0 : index
    %c0_117 = arith.constant 0 : index
    %277 = vector.load %arg8[%c1_115, %c0_116, %c0_117] : memref<2x1x32xf32, #tpu.memory_space<vmem>>, vector<1x1x32xf32>
    %278 = vector.shape_cast %277 : vector<1x1x32xf32> to vector<1x32xf32>
    %279 = vector.broadcast %278 : vector<1x32xf32> to vector<16x32xf32>
    %280 = arith.addf %276, %279 : vector<16x32xf32>
    %281 = arith.addf %193, %280 : vector<16x32xf32>
    %c1_118 = arith.constant 1 : index
    %c0_119 = arith.constant 0 : index
    %c0_120 = arith.constant 0 : index
    %282 = vector.load %arg9[%c1_118, %c0_119, %c0_120] : memref<2x1x32xf32, #tpu.memory_space<vmem>>, vector<1x1x32xf32>
    %283 = vector.shape_cast %282 : vector<1x1x32xf32> to vector<1x32xf32>
    %c1_121 = arith.constant 1 : index
    %c0_122 = arith.constant 0 : index
    %c0_123 = arith.constant 0 : index
    %284 = vector.load %arg10[%c1_121, %c0_122, %c0_123] : memref<2x1x32xf32, #tpu.memory_space<vmem>>, vector<1x1x32xf32>
    %285 = vector.shape_cast %284 : vector<1x1x32xf32> to vector<1x32xf32>
    %cst_124 = arith.constant dense<0.000000e+00> : vector<16xf32>
    %286 = vector.multi_reduction <add>, %281, %cst_124 [1] : vector<16x32xf32> to vector<16xf32>
    %287 = vector.shape_cast %286 : vector<16xf32> to vector<16x1xf32>
    %cst_125 = arith.constant 3.200000e+01 : f32
    %288 = vector.broadcast %cst_125 : f32 to vector<16x1xf32>
    %289 = arith.divf %287, %288 : vector<16x1xf32>
    %290 = vector.broadcast %289 : vector<16x1xf32> to vector<16x32xf32>
    %291 = arith.subf %281, %290 : vector<16x32xf32>
    %292 = arith.mulf %291, %291 : vector<16x32xf32>
    %cst_126 = arith.constant dense<0.000000e+00> : vector<16xf32>
    %293 = vector.multi_reduction <add>, %292, %cst_126 [1] : vector<16x32xf32> to vector<16xf32>
    %294 = vector.shape_cast %293 : vector<16xf32> to vector<16x1xf32>
    %cst_127 = arith.constant 3.200000e+01 : f32
    %295 = vector.broadcast %cst_127 : f32 to vector<16x1xf32>
    %296 = arith.divf %294, %295 : vector<16x1xf32>
    %297 = vector.broadcast %289 : vector<16x1xf32> to vector<16x32xf32>
    %298 = arith.subf %281, %297 : vector<16x32xf32>
    %cst_128 = arith.constant 9.99999974E-6 : f32
    %299 = vector.broadcast %cst_128 : f32 to vector<16x1xf32>
    %300 = arith.addf %296, %299 : vector<16x1xf32>
    %301 = math.rsqrt %300 : vector<16x1xf32>
    %302 = vector.broadcast %301 : vector<16x1xf32> to vector<16x32xf32>
    %303 = arith.mulf %298, %302 : vector<16x32xf32>
    %304 = vector.broadcast %283 : vector<1x32xf32> to vector<16x32xf32>
    %305 = arith.mulf %303, %304 : vector<16x32xf32>
    %306 = vector.broadcast %285 : vector<1x32xf32> to vector<16x32xf32>
    %307 = arith.addf %305, %306 : vector<16x32xf32>
    %c1_129 = arith.constant 1 : index
    %c0_130 = arith.constant 0 : index
    %c0_131 = arith.constant 0 : index
    %308 = vector.load %arg11[%c1_129, %c0_130, %c0_131] : memref<2x32x64xf32, #tpu.memory_space<vmem>>, vector<1x32x64xf32>
    %309 = vector.shape_cast %308 : vector<1x32x64xf32> to vector<32x64xf32>
    %cst_132 = arith.constant dense<0.000000e+00> : vector<16x64xf32>
    %310 = tpu.matmul %307, %309, %cst_132 {dimension_numbers = #tpu.dot_dimension_numbers<[1], [0], [0], [1], [0, 0, 1, 1], [], []>} : vector<16x32xf32>, vector<32x64xf32>, vector<16x64xf32> -> vector<16x64xf32>
    %c1_133 = arith.constant 1 : index
    %c0_134 = arith.constant 0 : index
    %c0_135 = arith.constant 0 : index
    %311 = vector.load %arg12[%c1_133, %c0_134, %c0_135] : memref<2x1x64xf32, #tpu.memory_space<vmem>>, vector<1x1x64xf32>
    %312 = vector.shape_cast %311 : vector<1x1x64xf32> to vector<1x64xf32>
    %313 = vector.broadcast %312 : vector<1x64xf32> to vector<16x64xf32>
    %314 = arith.addf %310, %313 : vector<16x64xf32>
    %315 = arith.mulf %314, %314 : vector<16x64xf32>
    %316 = arith.mulf %314, %315 : vector<16x64xf32>
    %cst_136 = arith.constant 4.471500e-02 : f32
    %317 = vector.broadcast %cst_136 : f32 to vector<16x64xf32>
    %318 = arith.mulf %317, %316 : vector<16x64xf32>
    %319 = arith.addf %314, %318 : vector<16x64xf32>
    %cst_137 = arith.constant 0.797884583 : f32
    %320 = vector.broadcast %cst_137 : f32 to vector<16x64xf32>
    %321 = arith.mulf %320, %319 : vector<16x64xf32>
    %322 = math.tanh %321 : vector<16x64xf32>
    %cst_138 = arith.constant 1.000000e+00 : f32
    %323 = vector.broadcast %cst_138 : f32 to vector<16x64xf32>
    %324 = arith.addf %323, %322 : vector<16x64xf32>
    %cst_139 = arith.constant 5.000000e-01 : f32
    %325 = vector.broadcast %cst_139 : f32 to vector<16x64xf32>
    %326 = arith.mulf %325, %324 : vector<16x64xf32>
    %327 = arith.mulf %314, %326 : vector<16x64xf32>
    %c1_140 = arith.constant 1 : index
    %c0_141 = arith.constant 0 : index
    %c0_142 = arith.constant 0 : index
    %328 = vector.load %arg13[%c1_140, %c0_141, %c0_142] : memref<2x64x32xf32, #tpu.memory_space<vmem>>, vector<1x64x32xf32>
    %329 = vector.shape_cast %328 : vector<1x64x32xf32> to vector<64x32xf32>
    %cst_143 = arith.constant dense<0.000000e+00> : vector<16x32xf32>
    %330 = tpu.matmul %327, %329, %cst_143 {dimension_numbers = #tpu.dot_dimension_numbers<[1], [0], [0], [1], [0, 0, 1, 1], [], []>} : vector<16x64xf32>, vector<64x32xf32>, vector<16x32xf32> -> vector<16x32xf32>
    %c1_144 = arith.constant 1 : index
    %c0_145 = arith.constant 0 : index
    %c0_146 = arith.constant 0 : index
    %331 = vector.load %arg14[%c1_144, %c0_145, %c0_146] : memref<2x1x32xf32, #tpu.memory_space<vmem>>, vector<1x1x32xf32>
    %332 = vector.shape_cast %331 : vector<1x1x32xf32> to vector<1x32xf32>
    %333 = vector.broadcast %332 : vector<1x32xf32> to vector<16x32xf32>
    %334 = arith.addf %330, %333 : vector<16x32xf32>
    %335 = arith.addf %307, %334 : vector<16x32xf32>
    %c1_147 = arith.constant 1 : index
    %c0_148 = arith.constant 0 : index
    %c0_149 = arith.constant 0 : index
    %336 = vector.load %arg15[%c1_147, %c0_148, %c0_149] : memref<2x1x32xf32, #tpu.memory_space<vmem>>, vector<1x1x32xf32>
    %337 = vector.shape_cast %336 : vector<1x1x32xf32> to vector<1x32xf32>
    %c1_150 = arith.constant 1 : index
    %c0_151 = arith.constant 0 : index
    %c0_152 = arith.constant 0 : index
    %338 = vector.load %arg16[%c1_150, %c0_151, %c0_152] : memref<2x1x32xf32, #tpu.memory_space<vmem>>, vector<1x1x32xf32>
    %339 = vector.shape_cast %338 : vector<1x1x32xf32> to vector<1x32xf32>
    %cst_153 = arith.constant dense<0.000000e+00> : vector<16xf32>
    %340 = vector.multi_reduction <add>, %335, %cst_153 [1] : vector<16x32xf32> to vector<16xf32>
    %341 = vector.shape_cast %340 : vector<16xf32> to vector<16x1xf32>
    %cst_154 = arith.constant 3.200000e+01 : f32
    %342 = vector.broadcast %cst_154 : f32 to vector<16x1xf32>
    %343 = arith.divf %341, %342 : vector<16x1xf32>
    %344 = vector.broadcast %343 : vector<16x1xf32> to vector<16x32xf32>
    %345 = arith.subf %335, %344 : vector<16x32xf32>
    %346 = arith.mulf %345, %345 : vector<16x32xf32>
    %cst_155 = arith.constant dense<0.000000e+00> : vector<16xf32>
    %347 = vector.multi_reduction <add>, %346, %cst_155 [1] : vector<16x32xf32> to vector<16xf32>
    %348 = vector.shape_cast %347 : vector<16xf32> to vector<16x1xf32>
    %cst_156 = arith.constant 3.200000e+01 : f32
    %349 = vector.broadcast %cst_156 : f32 to vector<16x1xf32>
    %350 = arith.divf %348, %349 : vector<16x1xf32>
    %351 = vector.broadcast %343 : vector<16x1xf32> to vector<16x32xf32>
    %352 = arith.subf %335, %351 : vector<16x32xf32>
    %cst_157 = arith.constant 9.99999974E-6 : f32
    %353 = vector.broadcast %cst_157 : f32 to vector<16x1xf32>
    %354 = arith.addf %350, %353 : vector<16x1xf32>
    %355 = math.rsqrt %354 : vector<16x1xf32>
    %356 = vector.broadcast %355 : vector<16x1xf32> to vector<16x32xf32>
    %357 = arith.mulf %352, %356 : vector<16x32xf32>
    %358 = vector.broadcast %337 : vector<1x32xf32> to vector<16x32xf32>
    %359 = arith.mulf %357, %358 : vector<16x32xf32>
    %360 = vector.broadcast %339 : vector<1x32xf32> to vector<16x32xf32>
    %361 = arith.addf %359, %360 : vector<16x32xf32>
    %c0_158 = arith.constant 0 : index
    %c0_159 = arith.constant 0 : index
    %362 = vector.load %arg17[%c0_158, %c0_159] : memref<32x32xf32, #tpu.memory_space<vmem>>, vector<32x32xf32>
    %cst_160 = arith.constant dense<0.000000e+00> : vector<16x32xf32>
    %363 = tpu.matmul %361, %362, %cst_160 {dimension_numbers = #tpu.dot_dimension_numbers<[1], [0], [0], [1], [0, 0, 1, 1], [], []>} : vector<16x32xf32>, vector<32x32xf32>, vector<16x32xf32> -> vector<16x32xf32>
    %c0_161 = arith.constant 0 : index
    %c0_162 = arith.constant 0 : index
    %364 = vector.load %arg18[%c0_161, %c0_162] : memref<1x32xf32, #tpu.memory_space<vmem>>, vector<1x32xf32>
    %365 = vector.broadcast %364 : vector<1x32xf32> to vector<16x32xf32>
    %366 = arith.addf %363, %365 : vector<16x32xf32>
    %367 = math.tanh %366 : vector<16x32xf32>
    %c0_163 = arith.constant 0 : index
    %c0_164 = arith.constant 0 : index
    %368 = vector.load %arg19[%c0_163, %c0_164] : memref<32x128xf32, #tpu.memory_space<vmem>>, vector<32x128xf32>
    %cst_165 = arith.constant dense<0.000000e+00> : vector<16x128xf32>
    %369 = tpu.matmul %367, %368, %cst_165 {dimension_numbers = #tpu.dot_dimension_numbers<[1], [0], [0], [1], [0, 0, 1, 1], [], []>} : vector<16x32xf32>, vector<32x128xf32>, vector<16x128xf32> -> vector<16x128xf32>
    %c0_166 = arith.constant 0 : index
    %c0_167 = arith.constant 0 : index
    %370 = vector.load %arg20[%c0_166, %c0_167] : memref<1x128xf32, #tpu.memory_space<vmem>>, vector<1x128xf32>
    %371 = vector.broadcast %370 : vector<1x128xf32> to vector<16x128xf32>
    %372 = arith.addf %369, %371 : vector<16x128xf32>
    %c0_168 = arith.constant 0 : index
    %c0_169 = arith.constant 0 : index
    %373 = vector.load %arg21[%c0_168, %c0_169] : memref<16x128xf32, #tpu.memory_space<vmem>>, vector<16x128xf32>
    tpu.vector_store %arg21[%c0_168, %c0_169], %372 {strides = array<i32>} : memref<16x128xf32, #tpu.memory_space<vmem>>, vector<16x128xf32>,
    return
  }
  func.func @transform_0(%arg0: i32) -> (i32, i32) {
    %c0_i32 = arith.constant 0 : i32
    %c0_i32_0 = arith.constant 0 : i32
    %c0_i32_1 = arith.constant 0 : i32
    return %c0_i32, %c0_i32_0 : i32, i32
  }
  func.func @transform_1(%arg0: i32) -> (i32, i32) {
    %c0_i32 = arith.constant 0 : i32
    %c0_i32_0 = arith.constant 0 : i32
    %c0_i32_1 = arith.constant 0 : i32
    return %c0_i32, %c0_i32_0 : i32, i32
  }
  func.func @transform_2(%arg0: i32) -> (i32, i32) {
    %c0_i32 = arith.constant 0 : i32
    %c0_i32_0 = arith.constant 0 : i32
    %c0_i32_1 = arith.constant 0 : i32
    return %c0_i32, %c0_i32_0 : i32, i32
  }
  func.func @transform_3(%arg0: i32) -> (i32, i32) {
    %c0_i32 = arith.constant 0 : i32
    %c0_i32_0 = arith.constant 0 : i32
    %c0_i32_1 = arith.constant 0 : i32
    return %c0_i32, %c0_i32_0 : i32, i32
  }
  func.func @transform_4(%arg0: i32) -> (i32, i32, i32) {
    %c0_i32 = arith.constant 0 : i32
    %c0_i32_0 = arith.constant 0 : i32
    %c0_i32_1 = arith.constant 0 : i32
    %c0_i32_2 = arith.constant 0 : i32
    return %c0_i32, %c0_i32_0, %c0_i32_1 : i32, i32, i32
  }
  func.func @transform_5(%arg0: i32) -> (i32, i32, i32) {
    %c0_i32 = arith.constant 0 : i32
    %c0_i32_0 = arith.constant 0 : i32
    %c0_i32_1 = arith.constant 0 : i32
    %c0_i32_2 = arith.constant 0 : i32
    return %c0_i32, %c0_i32_0, %c0_i32_1 : i32, i32, i32
  }
  func.func @transform_6(%arg0: i32) -> (i32, i32, i32) {
    %c0_i32 = arith.constant 0 : i32
    %c0_i32_0 = arith.constant 0 : i32
    %c0_i32_1 = arith.constant 0 : i32
    %c0_i32_2 = arith.constant 0 : i32
    return %c0_i32, %c0_i32_0, %c0_i32_1 : i32, i32, i32
  }
  func.func @transform_7(%arg0: i32) -> (i32, i32, i32) {
    %c0_i32 = arith.constant 0 : i32
    %c0_i32_0 = arith.constant 0 : i32
    %c0_i32_1 = arith.constant 0 : i32
    %c0_i32_2 = arith.constant 0 : i32
    return %c0_i32, %c0_i32_0, %c0_i32_1 : i32, i32, i32
  }
  func.func @transform_8(%arg0: i32) -> (i32, i32, i32) {
    %c0_i32 = arith.constant 0 : i32
    %c0_i32_0 = arith.constant 0 : i32
    %c0_i32_1 = arith.constant 0 : i32
    %c0_i32_2 = arith.constant 0 : i32
    return %c0_i32, %c0_i32_0, %c0_i32_1 : i32, i32, i32
  }
  func.func @transform_9(%arg0: i32) -> (i32, i32, i32) {
    %c0_i32 = arith.constant 0 : i32
    %c0_i32_0 = arith.constant 0 : i32
    %c0_i32_1 = arith.constant 0 : i32
    %c0_i32_2 = arith.constant 0 : i32
    return %c0_i32, %c0_i32_0, %c0_i32_1 : i32, i32, i32
  }
  func.func @transform_10(%arg0: i32) -> (i32, i32, i32) {
    %c0_i32 = arith.constant 0 : i32
    %c0_i32_0 = arith.constant 0 : i32
    %c0_i32_1 = arith.constant 0 : i32
    %c0_i32_2 = arith.constant 0 : i32
    return %c0_i32, %c0_i32_0, %c0_i32_1 : i32, i32, i32
  }
  func.func @transform_11(%arg0: i32) -> (i32, i32, i32) {
    %c0_i32 = arith.constant 0 : i32
    %c0_i32_0 = arith.constant 0 : i32
    %c0_i32_1 = arith.constant 0 : i32
    %c0_i32_2 = arith.constant 0 : i32
    return %c0_i32, %c0_i32_0, %c0_i32_1 : i32, i32, i32
  }
  func.func @transform_12(%arg0: i32) -> (i32, i32, i32) {
    %c0_i32 = arith.constant 0 : i32
    %c0_i32_0 = arith.constant 0 : i32
    %c0_i32_1 = arith.constant 0 : i32
    %c0_i32_2 = arith.constant 0 : i32
    return %c0_i32, %c0_i32_0, %c0_i32_1 : i32, i32, i32
  }
  func.func @transform_13(%arg0: i32) -> (i32, i32, i32) {
    %c0_i32 = arith.constant 0 : i32
    %c0_i32_0 = arith.constant 0 : i32
    %c0_i32_1 = arith.constant 0 : i32
    %c0_i32_2 = arith.constant 0 : i32
    return %c0_i32, %c0_i32_0, %c0_i32_1 : i32, i32, i32
  }
  func.func @transform_14(%arg0: i32) -> (i32, i32, i32) {
    %c0_i32 = arith.constant 0 : i32
    %c0_i32_0 = arith.constant 0 : i32
    %c0_i32_1 = arith.constant 0 : i32
    %c0_i32_2 = arith.constant 0 : i32
    return %c0_i32, %c0_i32_0, %c0_i32_1 : i32, i32, i32
  }
  func.func @transform_15(%arg0: i32) -> (i32, i32, i32) {
    %c0_i32 = arith.constant 0 : i32
    %c0_i32_0 = arith.constant 0 : i32
    %c0_i32_1 = arith.constant 0 : i32
    %c0_i32_2 = arith.constant 0 : i32
    return %c0_i32, %c0_i32_0, %c0_i32_1 : i32, i32, i32
  }
  func.func @transform_16(%arg0: i32) -> (i32, i32) {
    %c0_i32 = arith.constant 0 : i32
    %c0_i32_0 = arith.constant 0 : i32
    %c0_i32_1 = arith.constant 0 : i32
    return %c0_i32, %c0_i32_0 : i32, i32
  }
  func.func @transform_17(%arg0: i32) -> (i32, i32) {
    %c0_i32 = arith.constant 0 : i32
    %c0_i32_0 = arith.constant 0 : i32
    %c0_i32_1 = arith.constant 0 : i32
    return %c0_i32, %c0_i32_0 : i32, i32
  }
  func.func @transform_18(%arg0: i32) -> (i32, i32) {
    %c0_i32 = arith.constant 0 : i32
    %c0_i32_0 = arith.constant 0 : i32
    %c0_i32_1 = arith.constant 0 : i32
    return %c0_i32, %c0_i32_0 : i32, i32
  }
  func.func @transform_19(%arg0: i32) -> (i32, i32) {
    %c0_i32 = arith.constant 0 : i32
    %c0_i32_0 = arith.constant 0 : i32
    %c0_i32_1 = arith.constant 0 : i32
    return %c0_i32, %c0_i32_0 : i32, i32
  }
  func.func @transform_20(%arg0: i32) -> (i32, i32) {
    %c0_i32 = arith.constant 0 : i32
    %c0_i32_0 = arith.constant 0 : i32
    %c0_i32_1 = arith.constant 0 : i32
    return %c0_i32, %c0_i32_0 : i32, i32
  }
}

</mosaic_0001>

<llo_original>
// kernel: _lambda_.1
$region0: #{_lambda_.1}
  #allocation0 [shape = 'u32[]', space=smem, size = 0x4, offset = 0x4, fixed_abs, tag = 'smem constant byte address 0x4 - core index']
  #allocation1 [shape = 'u32[144,128]{1,0:T(1,128)}', space=vmem, size = 0x12000, scoped, tag = 'internal scratch']
  %s0 = inlined_call_operand.vmem [shape: f32[16,32], index: 0, kind: input, shape index: {}]
  %s1 = inlined_call_operand.vmem [shape: f32[16,16], index: 1, kind: input, shape index: {}]
  %s2 = inlined_call_operand.vmem [shape: f32[1,32], index: 2, kind: input, shape index: {}]
  %s3 = inlined_call_operand.vmem [shape: f32[1,32], index: 3, kind: input, shape index: {}, may-alias: {3,17}]
  %s4 = inlined_call_operand.hbm [shape: f32[2,32,96], index: 4, kind: input, shape index: {}]
  %s5 = inlined_call_operand.vmem [shape: f32[2,1,96], index: 5, kind: input, shape index: {}]
  %s6 = inlined_call_operand.vmem [shape: f32[2,32,32], index: 6, kind: input, shape index: {}]
  %s7 = inlined_call_operand.vmem [shape: f32[2,1,32], index: 7, kind: input, shape index: {}, may-alias: {7,9,13,15}]
  %s8 = inlined_call_operand.vmem [shape: f32[2,1,32], index: 8, kind: input, shape index: {}, may-alias: {8,14}]
  %s9 = inlined_call_operand.vmem [shape: f32[2,1,32], index: 9, kind: input, shape index: {}, may-alias: {7,9,13,15}]
  %s10 = inlined_call_operand.vmem [shape: f32[2,32,64], index: 10, kind: input, shape index: {}]
  %s11 = inlined_call_operand.vmem [shape: f32[2,1,64], index: 11, kind: input, shape index: {}]
  %s12 = inlined_call_operand.vmem [shape: f32[2,64,32], index: 12, kind: input, shape index: {}]
  %s13 = inlined_call_operand.vmem [shape: f32[2,1,32], index: 13, kind: input, shape index: {}, may-alias: {7,9,13,15}]
  %s14 = inlined_call_operand.vmem [shape: f32[2,1,32], index: 14, kind: input, shape index: {}, may-alias: {8,14}]
  %s15 = inlined_call_operand.vmem [shape: f32[2,1,32], index: 15, kind: input, shape index: {}, may-alias: {7,9,13,15}]
  %s16 = inlined_call_operand.hbm [shape: f32[32,32], index: 16, kind: input, shape index: {}]
  %s17 = inlined_call_operand.vmem [shape: f32[1,32], index: 17, kind: input, shape index: {}, may-alias: {3,17}]
  %s18 = inlined_call_operand.vmem [shape: f32[32,128], index: 18, kind: input, shape index: {}]
  %s19 = inlined_call_operand.vmem [shape: f32[1,128], index: 19, kind: input, shape index: {}]
  %s20 = inlined_call_operand.vmem [shape: f32[16,128], index: 20, kind: output, shape index: {}]
  %s21 = sld [smem:[#allocation0]]
  $region98: #{_lambda_.1} parent=0
    _
  %s23 = ssub.s32 1, %s21
  %s24 = scalar_select 0, %s23, %s21
  $region1: #{_lambda_.1} parent=0
    #allocation2 [shape = 'u8[32768]{0}', space=vmem, size = 0x8000, scoped, tag = 'input window, operand 4, single buffered']
    #allocation3 [shape = 's32[1]{0}', space=sflag, size = 0x4, scoped, tag = 'scoped memory for _lambda_.1']
    #allocation4 [shape = 'u8[16384]{0}', space=vmem, size = 0x4000, scoped, tag = 'input window, operand 16, single buffered']
    #allocation5 [shape = 's32[1]{0}', space=sflag, size = 0x4, scoped, tag = 'scoped memory for _lambda_.1']
    %25 = vsyncpa [#allocation3], 0
    %26 = vsyncpa [#allocation5], 0
    // Predicated region
    $region2: #{_lambda_.1} parent=1 // pred_check
      _
    $region3: #{_lambda_.1} parent=1 // pred_check_branch
      %28 = sbr.rel (0) target = $region5
    $region4: #{_lambda_.1} parent=1 // pred_region
      _
    $region5: #{_lambda_.1} parent=1 // pred_fallthru
      _
    // Predicated region
    $region6: #{_lambda_.1} parent=1 // pred_check
      _
    $region7: #{_lambda_.1} parent=1 // pred_check_branch
      %30 = sbr.rel (0) target = $region9
    $region8: #{_lambda_.1} parent=1 // pred_region
      _
    $region9: #{_lambda_.1} parent=1 // pred_fallthru
      _
    // Predicated region
    $region10: #{_lambda_.1} parent=1 // pred_check
      _
    $region11: #{_lambda_.1} parent=1 // pred_check_branch
      %32 = sbr.rel (0) target = $region13
    $region12: #{_lambda_.1} parent=1 // pred_region
      _
    $region13: #{_lambda_.1} parent=1 // pred_fallthru
      _
    // Predicated region
    $region14: #{_lambda_.1} parent=1 // pred_check
      _
    $region15: #{_lambda_.1} parent=1 // pred_check_branch
      %34 = sbr.rel (0) target = $region17
    $region16: #{_lambda_.1} parent=1 // pred_region
      _
    $region17: #{_lambda_.1} parent=1 // pred_fallthru
      _
    // Predicated region
    $region18: #{_lambda_.1} parent=1 // pred_check
      _
    $region19: #{_lambda_.1} parent=1 // pred_check_branch
      %36 = sbr.rel (0) target = $region21
    $region20: #{_lambda_.1} parent=1 // pred_region
      %s38 = ssub.s32 1024, 1024
      %39 = vsyncadd [#allocation3], %s38
      %s40 = sshll.u32 [#allocation2], 4
      %s41 = int_to_ptr.vmem [resolvable:$true] %s40
      %46 = dma.hbm_to_vmem [thread:$0]  %s4, 1024, %s41, [#allocation3], 128, 128, 8
    $region21: #{_lambda_.1} parent=1 // pred_fallthru
      _
    // Predicated region
    $region22: #{_lambda_.1} parent=1 // pred_check
      _
    $region23: #{_lambda_.1} parent=1 // pred_check_branch
      %48 = sbr.rel (0) target = $region25
    $region24: #{_lambda_.1} parent=1 // pred_region
      _
    $region25: #{_lambda_.1} parent=1 // pred_fallthru
      _
    // Predicated region
    $region26: #{_lambda_.1} parent=1 // pred_check
      _
    $region27: #{_lambda_.1} parent=1 // pred_check_branch
      %50 = sbr.rel (0) target = $region29
    $region28: #{_lambda_.1} parent=1 // pred_region
      _
    $region29: #{_lambda_.1} parent=1 // pred_fallthru
      _
    // Predicated region
    $region30: #{_lambda_.1} parent=1 // pred_check
      _
    $region31: #{_lambda_.1} parent=1 // pred_check_branch
      %52 = sbr.rel (0) target = $region33
    $region32: #{_lambda_.1} parent=1 // pred_region
      _
    $region33: #{_lambda_.1} parent=1 // pred_fallthru
      _
    // Predicated region
    $region34: #{_lambda_.1} parent=1 // pred_check
      _
    $region35: #{_lambda_.1} parent=1 // pred_check_branch
      %54 = sbr.rel (0) target = $region37
    $region36: #{_lambda_.1} parent=1 // pred_region
      _
    $region37: #{_lambda_.1} parent=1 // pred_fallthru
      _
    // Predicated region
    $region38: #{_lambda_.1} parent=1 // pred_check
      _
    $region39: #{_lambda_.1} parent=1 // pred_check_branch
      %56 = sbr.rel (0) target = $region41
    $region40: #{_lambda_.1} parent=1 // pred_region
      _
    $region41: #{_lambda_.1} parent=1 // pred_fallthru
      _
    // Predicated region
    $region42: #{_lambda_.1} parent=1 // pred_check
      _
    $region43: #{_lambda_.1} parent=1 // pred_check_branch
      %58 = sbr.rel (0) target = $region45
    $region44: #{_lambda_.1} parent=1 // pred_region
      _
    $region45: #{_lambda_.1} parent=1 // pred_fallthru
      _
    // Predicated region
    $region46: #{_lambda_.1} parent=1 // pred_check
      _
    $region47: #{_lambda_.1} parent=1 // pred_check_branch
      %60 = sbr.rel (0) target = $region49
    $region48: #{_lambda_.1} parent=1 // pred_region
      _
    $region49: #{_lambda_.1} parent=1 // pred_fallthru
      _
    // Predicated region
    $region50: #{_lambda_.1} parent=1 // pred_check
      _
    $region51: #{_lambda_.1} parent=1 // pred_check_branch
      %62 = sbr.rel (0) target = $region53
    $region52: #{_lambda_.1} parent=1 // pred_region
      _
    $region53: #{_lambda_.1} parent=1 // pred_fallthru
      _
    // Predicated region
    $region54: #{_lambda_.1} parent=1 // pred_check
      _
    $region55: #{_lambda_.1} parent=1 // pred_check_branch
      %64 = sbr.rel (0) target = $region57
    $region56: #{_lambda_.1} parent=1 // pred_region
      _
    $region57: #{_lambda_.1} parent=1 // pred_fallthru
      _
    // Predicated region
    $region58: #{_lambda_.1} parent=1 // pred_check
      _
    $region59: #{_lambda_.1} parent=1 // pred_check_branch
      %66 = sbr.rel (0) target = $region61
    $region60: #{_lambda_.1} parent=1 // pred_region
      _
    $region61: #{_lambda_.1} parent=1 // pred_fallthru
      _
    // Predicated region
    $region62: #{_lambda_.1} parent=1 // pred_check
      _
    $region63: #{_lambda_.1} parent=1 // pred_check_branch
      %68 = sbr.rel (0) target = $region65
    $region64: #{_lambda_.1} parent=1 // pred_region
      _
    $region65: #{_lambda_.1} parent=1 // pred_fallthru
      _
    // Predicated region
    $region66: #{_lambda_.1} parent=1 // pred_check
      _
    $region67: #{_lambda_.1} parent=1 // pred_check_branch
      %70 = sbr.rel (0) target = $region69
    $region68: #{_lambda_.1} parent=1 // pred_region
      %s72 = ssub.s32 512, 512
      %73 = vsyncadd [#allocation5], %s72
      %s74 = sshll.u32 [#allocation4], 4
      %s75 = int_to_ptr.vmem [resolvable:$true] %s74
      %80 = dma.hbm_to_vmem [thread:$0]  %s16, 512, %s75, [#allocation5], 128, 128, 8
    $region69: #{_lambda_.1} parent=1 // pred_fallthru
      _
    // Predicated region
    $region70: #{_lambda_.1} parent=1 // pred_check
      _
    $region71: #{_lambda_.1} parent=1 // pred_check_branch
      %82 = sbr.rel (0) target = $region73
    $region72: #{_lambda_.1} parent=1 // pred_region
      _
    $region73: #{_lambda_.1} parent=1 // pred_fallthru
      _
    // Predicated region
    $region74: #{_lambda_.1} parent=1 // pred_check
      _
    $region75: #{_lambda_.1} parent=1 // pred_check_branch
      %84 = sbr.rel (0) target = $region77
    $region76: #{_lambda_.1} parent=1 // pred_region
      _
    $region77: #{_lambda_.1} parent=1 // pred_fallthru
      _
    // Predicated region
    $region78: #{_lambda_.1} parent=1 // pred_check
      _
    $region79: #{_lambda_.1} parent=1 // pred_check_branch
      %86 = sbr.rel (0) target = $region81
    $region80: #{_lambda_.1} parent=1 // pred_region
      _
    $region81: #{_lambda_.1} parent=1 // pred_fallthru
      _
    // Predicated region
    $region82: #{_lambda_.1} parent=1 // pred_check
      _
    $region83: #{_lambda_.1} parent=1 // pred_check_branch
      %88 = sbr.rel (0) target = $region85
    $region84: #{_lambda_.1} parent=1 // pred_region
      %89 = dma.done [#allocation3], 1024
    $region85: #{_lambda_.1} parent=1 // pred_fallthru
      _
    // Predicated region
    $region86: #{_lambda_.1} parent=1 // pred_check
      _
    $region87: #{_lambda_.1} parent=1 // pred_check_branch
      %91 = sbr.rel (0) target = $region89
    $region88: #{_lambda_.1} parent=1 // pred_region
      %92 = dma.done [#allocation5], 512
    $region89: #{_lambda_.1} parent=1 // pred_fallthru
      _
    %v93 = vld [vmem:[%s0] sm:$0xff]
    %v94 = vld [vmem:[%s0 + $0x8] sm:$0xff]
    %v95 = vld [vmem:[%s2] sm:$0x1]
    %v96 = vld [vmem:[%s3] sm:$0x1]
    %vm97 = vcmask 261120
    %v98 = vsel %vm97, %v93, 0.0
    %99 = vadd.xlane.f32.xlu0 %v98
    %v100 = vpop.xlane.xlu0 %99
    %v101 = vsel %vm97, %v94, 0.0
    %102 = vadd.xlane.f32.xlu0 %v101
    %v103 = vpop.xlane.xlu0 %102
    %v104 = vrcp.pop 32.0
    %v105 = vmul.f32 %v100, %v104
    %v106 = vmul.f32 %v103, %v104
    %v107 = vsub.f32 %v93, %v105
    %v108 = vsub.f32 %v94, %v106
    %v109 = vmul.f32 %v107, %v107
    %v110 = vmul.f32 %v108, %v108
    %v111 = vsel %vm97, %v109, 0.0
    %112 = vadd.xlane.f32.xlu0 %v111
    %v113 = vpop.xlane.xlu0 %112
    %v114 = vsel %vm97, %v110, 0.0
    %115 = vadd.xlane.f32.xlu0 %v114
    %v116 = vpop.xlane.xlu0 %115
    %v117 = vmul.f32 %v113, %v104
    %v118 = vmul.f32 %v116, %v104
    %v119 = vadd.f32 %v117, 1e-05
    %v120 = vadd.f32 %v118, 1e-05
    %v121 = vrsqrt.pop %v119
    %v122 = vrsqrt.pop %v120
    %v123 = vmul.f32 %v107, %v121
    %v124 = vmul.f32 %v108, %v122
    %v126 = vlaneseq
    %v127 = vshrl.u32 %v126, 7
    %v128 = vsub.s32 0, %v127
    %v129 = vrot.slane %v95, %v128
    %v131 = vmul.f32 %v123, %v129
    %v132 = vmul.f32 %v124, %v129
    %v134 = vlaneseq
    %v135 = vshrl.u32 %v134, 7
    %v136 = vsub.s32 0, %v135
    %v137 = vrot.slane %v96, %v136
    %v139 = vadd.f32 %v131, %v137
    %v140 = vadd.f32 %v132, %v137
    %v141 = vld [vmem:[%s1] sm:$0xff]
    %v142 = vld [vmem:[%s1 + $0x8] sm:$0xff]
    %v143 = vld [vmem:[#allocation2] sm:$0xff]
    %v144 = vld [vmem:[#allocation2 + $0x8] sm:$0xff]
    %v145 = vld [vmem:[#allocation2 + $0x10] sm:$0xff]
    %v146 = vld [vmem:[#allocation2 + $0x18] sm:$0xff]
    %v147 = vld [vmem:[%s5] sm:$0x1]
    %v149 = vlaneseq
    %v150 = vshrl.u32 %v149, 7
    %v151 = vsub.s32 0, %v150
    %v152 = vrot.slane %v147, %v151
    %v155 = vsel %vm97, %v139, 0
    %v158 = vsel %vm97, %v140, 0
    %160 = vmatprep.subr.mxu0 0.0
    %161 = vmatpush1.msra.mxu0 %v143
    %162 = vmatprep.subr.mxu0 0.0
    %163 = vmatpush1.msra.mxu0 %v144
    %164 = vmatprep.subr.mxu0 0.0
    %165 = vmatpush1.msra.mxu0 %v145
    %166 = vmatprep.subr.mxu0 0.0
    %167 = vmatpush1.msra.mxu0 %v146
    %168 = vmatprep.subr.mxu0 0.0
    %169 = vmatpush1.msra.mxu0 0.0
    %170 = vmatprep.subr.mxu0 0.0
    %171 = vmatpush1.msra.mxu0 0.0
    %172 = vmatprep.subr.mxu0 0.0
    %173 = vmatpush1.msra.mxu0 0.0
    %174 = vmatprep.subr.mxu0 0.0
    %175 = vmatpush1.msra.mxu0 0.0
    %176 = vmatprep.subr.mxu0 0.0
    %177 = vmatpush1.msra.mxu0 0.0
    %178 = vmatprep.subr.mxu0 0.0
    %179 = vmatpush1.msra.mxu0 0.0
    %180 = vmatprep.subr.mxu0 0.0
    %181 = vmatpush1.msra.mxu0 0.0
    %182 = vmatprep.subr.mxu0 0.0
    %183 = vmatpush1.msra.mxu0 0.0
    %184 = vmatprep.subr.mxu0 0.0
    %185 = vmatpush1.msra.mxu0 0.0
    %186 = vmatprep.subr.mxu0 0.0
    %187 = vmatpush1.msra.mxu0 0.0
    %188 = vmatprep.subr.mxu0 0.0
    %189 = vmatpush1.msra.mxu0 0.0
    %190 = vmatprep.subr.mxu0 0.0
    %191 = vmatpush1.msra.mxu0 0.0
    %192 = vmatprep.subr.mxu0 0.0
    %193 = vmatpush1.msra.mxu0 0.0
    %194 = vmatprep.subr.mxu0 0.0
    %195 = vmatpush1.msra.mxu0 0.0
    %196 = vmatprep.subr.mxu0 0.0
    %197 = vmatpush1.msra.mxu0 0.0
    %198 = vmatprep.subr.mxu0 0.0
    %199 = vmatpush1.msra.mxu0 0.0
    %200 = vmatprep.subr.mxu0 0.0
    %201 = vmatpush1.msra.mxu0 0.0
    %202 = vmatprep.subr.mxu0 0.0
    %203 = vmatpush1.msra.mxu0 0.0
    %204 = vmatprep.subr.mxu0 0.0
    %205 = vmatpush1.msra.mxu0 0.0
    %206 = vmatprep.subr.mxu0 0.0
    %207 = vmatpush1.msra.mxu0 0.0
    %208 = vmatprep.subr.mxu0 0.0
    %209 = vmatpush1.msra.mxu0 0.0
    %210 = vmatprep.subr.mxu0 0.0
    %211 = vmatpush1.msra.mxu0 0.0
    %212 = vmatprep.subr.mxu0 0.0
    %213 = vmatpush1.msra.mxu0 0.0
    %214 = vmatprep.subr.mxu0 0.0
    %215 = vmatpush1.msra.mxu0 0.0
    %216 = vmatprep.subr.mxu0 0.0
    %217 = vmatpush1.msra.mxu0 0.0
    %218 = vmatprep.subr.mxu0 0.0
    %219 = vmatpush1.msra.mxu0 0.0
    %220 = vmatprep.subr.mxu0 0.0
    %221 = vmatpush1.msra.mxu0 0.0
    %222 = vmatprep.subr.mxu0 0.0
    %223 = vmatpush1.msra.mxu0 0.0
    %224 = vmatprep.mubr.f32.mxu0 0.0
    %225 = vmatmul.mubr.f32.gmra.mrb[0].mxu0 %v155
    %v226 = vpop.f32.mrb[0].mxu0
    %v227 = vadd.f32 %v152, %v226
    %v228 = vpop.f32.mrb[0].mxu0
    %229 = vmatprep.mubr.f32.mxu0 0.0
    %230 = vmatmul.mubr.f32.gmra.mrb[0].mxu0 %v158
    %v231 = vpop.f32.mrb[0].mxu0
    %v232 = vadd.f32 %v152, %v231
    %v233 = vpop.f32.mrb[0].mxu0
    %234 = vdwg.mxu0
    %237 = vrot.lane.b32.xlu0 %v227, 96
    %v238 = vpop.permute.xlu0 %237
    %239 = vrot.lane.b32.xlu0 %v232, 96
    %v240 = vpop.permute.xlu0 %239
    %vm241 = vcmask 64512
    %v242 = vsel %vm241, %v227, 0
    %v244 = vsel %vm241, %v232, 0
    %v246 = vsel %vm241, %v238, 0
    %v248 = vsel %vm241, %v240, 0
    %250 = vmatprep.subr.mxu0 0.0
    %251 = vmatpush1.xpose.msra.mxu0 %v246
    %252 = vmatprep.subr.mxu0 0.0
    %253 = vmatpush1.xpose.msra.mxu0 %v248
    %254 = vmatprep.subr.mxu0 0.0
    %255 = vmatpush1.xpose.msra.mxu0 0.0
    %256 = vmatprep.subr.mxu0 0.0
    %257 = vmatpush1.xpose.msra.mxu0 0.0
    %258 = vmatprep.subr.mxu0 0.0
    %259 = vmatpush1.xpose.msra.mxu0 0.0
    %260 = vmatprep.subr.mxu0 0.0
    %261 = vmatpush1.xpose.msra.mxu0 0.0
    %262 = vmatprep.subr.mxu0 0.0
    %263 = vmatpush1.xpose.msra.mxu0 0.0
    %264 = vmatprep.subr.mxu0 0.0
    %265 = vmatpush1.xpose.msra.mxu0 0.0
    %266 = vmatprep.subr.mxu0 0.0
    %267 = vmatpush1.xpose.msra.mxu0 0.0
    %268 = vmatprep.subr.mxu0 0.0
    %269 = vmatpush1.xpose.msra.mxu0 0.0
    %270 = vmatprep.subr.mxu0 0.0
    %271 = vmatpush1.xpose.msra.mxu0 0.0
    %272 = vmatprep.subr.mxu0 0.0
    %273 = vmatpush1.xpose.msra.mxu0 0.0
    %274 = vmatprep.subr.mxu0 0.0
    %275 = vmatpush1.xpose.msra.mxu0 0.0
    %276 = vmatprep.subr.mxu0 0.0
    %277 = vmatpush1.xpose.msra.mxu0 0.0
    %278 = vmatprep.subr.mxu0 0.0
    %279 = vmatpush1.xpose.msra.mxu0 0.0
    %280 = vmatprep.subr.mxu0 0.0
    %281 = vmatpush1.xpose.msra.mxu0 0.0
    %282 = vmatprep.subr.mxu0 0.0
    %283 = vmatpush1.xpose.msra.mxu0 0.0
    %284 = vmatprep.subr.mxu0 0.0
    %285 = vmatpush1.xpose.msra.mxu0 0.0
    %286 = vmatprep.subr.mxu0 0.0
    %287 = vmatpush1.xpose.msra.mxu0 0.0
    %288 = vmatprep.subr.mxu0 0.0
    %289 = vmatpush1.xpose.msra.mxu0 0.0
    %290 = vmatprep.subr.mxu0 0.0
    %291 = vmatpush1.xpose.msra.mxu0 0.0
    %292 = vmatprep.subr.mxu0 0.0
    %293 = vmatpush1.xpose.msra.mxu0 0.0
    %294 = vmatprep.subr.mxu0 0.0
    %295 = vmatpush1.xpose.msra.mxu0 0.0
    %296 = vmatprep.subr.mxu0 0.0
    %297 = vmatpush1.xpose.msra.mxu0 0.0
    %298 = vmatprep.subr.mxu0 0.0
    %299 = vmatpush1.xpose.msra.mxu0 0.0
    %300 = vmatprep.subr.mxu0 0.0
    %301 = vmatpush1.xpose.msra.mxu0 0.0
    %302 = vmatprep.subr.mxu0 0.0
    %303 = vmatpush1.xpose.msra.mxu0 0.0
    %304 = vmatprep.subr.mxu0 0.0
    %305 = vmatpush1.xpose.msra.mxu0 0.0
    %306 = vmatprep.subr.mxu0 0.0
    %307 = vmatpush1.xpose.msra.mxu0 0.0
    %308 = vmatprep.subr.mxu0 0.0
    %309 = vmatpush1.xpose.msra.mxu0 0.0
    %310 = vmatprep.subr.mxu0 0.0
    %311 = vmatpush1.xpose.msra.mxu0 0.0
    %312 = vmatprep.subr.mxu0 0.0
    %313 = vmatpush1.xpose.msra.mxu0 0.0
    %314 = vmatprep.mubr.f32.mxu0 0.0
    %315 = vmatmul.mubr.f32.gmra.mrb[0].mxu0 %v242
    %v316 = vpop.f32.mrb[0].mxu0
    %v317 = vadd.f32 0.0, %v316
    %v318 = vpop.f32.mrb[0].mxu0
    %319 = vmatprep.mubr.f32.mxu0 0.0
    %320 = vmatmul.mubr.f32.gmra.mrb[0].mxu0 %v244
    %v321 = vpop.f32.mrb[0].mxu0
    %v322 = vadd.f32 0.0, %v321
    %v323 = vpop.f32.mrb[0].mxu0
    %324 = vdwg.mxu0
    %v325 = vmul.f32 %v317, 0.35355338
    %v326 = vmul.f32 %v322, 0.35355338
    %v327 = vadd.f32 %v325, %v141
    %v328 = vadd.f32 %v326, %v142
    %vm329 = vcmask 130048
    %v330 = vsel %vm329, %v327, -inf
    %331 = vmax.xlane.f32.xlu0 %v330
    %v332 = vpop.xlane.xlu0 %331
    %v333 = vsel %vm329, %v328, -inf
    %334 = vmax.xlane.f32.xlu0 %v333
    %v335 = vpop.xlane.xlu0 %334
    %v336 = vsub.f32 %v327, %v332
    %v337 = vsub.f32 %v328, %v335
    %v338 = vmul.f32 %v336, 1.442695
    %v339 = vpow.pop %v338
    %v340 = vmul.f32 %v337, 1.442695
    %v341 = vpow.pop %v340
    %v342 = vsel %vm329, %v339, 0.0
    %343 = vadd.xlane.f32.xlu0 %v342
    %v344 = vpop.xlane.xlu0 %343
    %v345 = vsel %vm329, %v341, 0.0
    %346 = vadd.xlane.f32.xlu0 %v345
    %v347 = vpop.xlane.xlu0 %346
    %v348 = vrcp.pop %v344
    %v349 = vrcp.pop %v347
    %v350 = vmul.f32 %v339, %v348
    %v351 = vmul.f32 %v341, %v349
    %352 = vrot.lane.b32.xlu0 %v227, 64
    %v353 = vpop.permute.xlu0 %352
    %354 = vrot.lane.b32.xlu0 %v232, 64
    %v355 = vpop.permute.xlu0 %354
    %v359 = vsel %vm329, %v350, 0
    %v362 = vsel %vm329, %v351, 0
    %364 = vmatprep.subr.mxu0 0.0
    %365 = vmatpush1.msra.mxu0 %v353
    %366 = vmatprep.subr.mxu0 0.0
    %367 = vmatpush1.msra.mxu0 %v355
    %368 = vmatprep.subr.mxu0 0.0
    %369 = vmatpush1.msra.mxu0 0.0
    %370 = vmatprep.subr.mxu0 0.0
    %371 = vmatpush1.msra.mxu0 0.0
    %372 = vmatprep.subr.mxu0 0.0
    %373 = vmatpush1.msra.mxu0 0.0
    %374 = vmatprep.subr.mxu0 0.0
    %375 = vmatpush1.msra.mxu0 0.0
    %376 = vmatprep.subr.mxu0 0.0
    %377 = vmatpush1.msra.mxu0 0.0
    %378 = vmatprep.subr.mxu0 0.0
    %379 = vmatpush1.msra.mxu0 0.0
    %380 = vmatprep.subr.mxu0 0.0
    %381 = vmatpush1.msra.mxu0 0.0
    %382 = vmatprep.subr.mxu0 0.0
    %383 = vmatpush1.msra.mxu0 0.0
    %384 = vmatprep.subr.mxu0 0.0
    %385 = vmatpush1.msra.mxu0 0.0
    %386 = vmatprep.subr.mxu0 0.0
    %387 = vmatpush1.msra.mxu0 0.0
    %388 = vmatprep.subr.mxu0 0.0
    %389 = vmatpush1.msra.mxu0 0.0
    %390 = vmatprep.subr.mxu0 0.0
    %391 = vmatpush1.msra.mxu0 0.0
    %392 = vmatprep.subr.mxu0 0.0
    %393 = vmatpush1.msra.mxu0 0.0
    %394 = vmatprep.subr.mxu0 0.0
    %395 = vmatpush1.msra.mxu0 0.0
    %396 = vmatprep.subr.mxu0 0.0
    %397 = vmatpush1.msra.mxu0 0.0
    %398 = vmatprep.subr.mxu0 0.0
    %399 = vmatpush1.msra.mxu0 0.0
    %400 = vmatprep.subr.mxu0 0.0
    %401 = vmatpush1.msra.mxu0 0.0
    %402 = vmatprep.subr.mxu0 0.0
    %403 = vmatpush1.msra.mxu0 0.0
    %404 = vmatprep.subr.mxu0 0.0
    %405 = vmatpush1.msra.mxu0 0.0
    %406 = vmatprep.subr.mxu0 0.0
    %407 = vmatpush1.msra.mxu0 0.0
    %408 = vmatprep.subr.mxu0 0.0
    %409 = vmatpush1.msra.mxu0 0.0
    %410 = vmatprep.subr.mxu0 0.0
    %411 = vmatpush1.msra.mxu0 0.0
    %412 = vmatprep.subr.mxu0 0.0
    %413 = vmatpush1.msra.mxu0 0.0
    %414 = vmatprep.subr.mxu0 0.0
    %415 = vmatpush1.msra.mxu0 0.0
    %416 = vmatprep.subr.mxu0 0.0
    %417 = vmatpush1.msra.mxu0 0.0
    %418 = vmatprep.subr.mxu0 0.0
    %419 = vmatpush1.msra.mxu0 0.0
    %420 = vmatprep.subr.mxu0 0.0
    %421 = vmatpush1.msra.mxu0 0.0
    %422 = vmatprep.subr.mxu0 0.0
    %423 = vmatpush1.msra.mxu0 0.0
    %424 = vmatprep.subr.mxu0 0.0
    %425 = vmatpush1.msra.mxu0 0.0
    %426 = vmatprep.subr.mxu0 0.0
    %427 = vmatpush1.msra.mxu0 0.0
    %428 = vmatprep.mubr.f32.mxu0 0.0
    %429 = vmatmul.mubr.f32.gmra.mrb[0].mxu0 %v359
    %v430 = vpop.f32.mrb[0].mxu0
    %v431 = vadd.f32 0.0, %v430
    %v432 = vpop.f32.mrb[0].mxu0
    %433 = vmatprep.mubr.f32.mxu0 0.0
    %434 = vmatmul.mubr.f32.gmra.mrb[0].mxu0 %v362
    %v435 = vpop.f32.mrb[0].mxu0
    %v436 = vadd.f32 0.0, %v435
    %v437 = vpop.f32.mrb[0].mxu0
    %438 = vdwg.mxu0
    %439 = vrot.lane.b32.xlu0 %v227, 120
    %v440 = vpop.permute.xlu0 %439
    %441 = vrot.lane.b32.xlu0 %v232, 120
    %v442 = vpop.permute.xlu0 %441
    %443 = vrot.lane.b32.xlu0 %v227, 88
    %v444 = vpop.permute.xlu0 %443
    %445 = vrot.lane.b32.xlu0 %v232, 88
    %v446 = vpop.permute.xlu0 %445
    %v447 = vsel %vm241, %v440, 0
    %v449 = vsel %vm241, %v442, 0
    %v451 = vsel %vm241, %v444, 0
    %v453 = vsel %vm241, %v446, 0
    %455 = vmatprep.subr.mxu0 0.0
    %456 = vmatpush1.xpose.msra.mxu0 %v451
    %457 = vmatprep.subr.mxu0 0.0
    %458 = vmatpush1.xpose.msra.mxu0 %v453
    %459 = vmatprep.subr.mxu0 0.0
    %460 = vmatpush1.xpose.msra.mxu0 0.0
    %461 = vmatprep.subr.mxu0 0.0
    %462 = vmatpush1.xpose.msra.mxu0 0.0
    %463 = vmatprep.subr.mxu0 0.0
    %464 = vmatpush1.xpose.msra.mxu0 0.0
    %465 = vmatprep.subr.mxu0 0.0
    %466 = vmatpush1.xpose.msra.mxu0 0.0
    %467 = vmatprep.subr.mxu0 0.0
    %468 = vmatpush1.xpose.msra.mxu0 0.0
    %469 = vmatprep.subr.mxu0 0.0
    %470 = vmatpush1.xpose.msra.mxu0 0.0
    %471 = vmatprep.subr.mxu0 0.0
    %472 = vmatpush1.xpose.msra.mxu0 0.0
    %473 = vmatprep.subr.mxu0 0.0
    %474 = vmatpush1.xpose.msra.mxu0 0.0
    %475 = vmatprep.subr.mxu0 0.0
    %476 = vmatpush1.xpose.msra.mxu0 0.0
    %477 = vmatprep.subr.mxu0 0.0
    %478 = vmatpush1.xpose.msra.mxu0 0.0
    %479 = vmatprep.subr.mxu0 0.0
    %480 = vmatpush1.xpose.msra.mxu0 0.0
    %481 = vmatprep.subr.mxu0 0.0
    %482 = vmatpush1.xpose.msra.mxu0 0.0
    %483 = vmatprep.subr.mxu0 0.0
    %484 = vmatpush1.xpose.msra.mxu0 0.0
    %485 = vmatprep.subr.mxu0 0.0
    %486 = vmatpush1.xpose.msra.mxu0 0.0
    %487 = vmatprep.subr.mxu0 0.0
    %488 = vmatpush1.xpose.msra.mxu0 0.0
    %489 = vmatprep.subr.mxu0 0.0
    %490 = vmatpush1.xpose.msra.mxu0 0.0
    %491 = vmatprep.subr.mxu0 0.0
    %492 = vmatpush1.xpose.msra.mxu0 0.0
    %493 = vmatprep.subr.mxu0 0.0
    %494 = vmatpush1.xpose.msra.mxu0 0.0
    %495 = vmatprep.subr.mxu0 0.0
    %496 = vmatpush1.xpose.msra.mxu0 0.0
    %497 = vmatprep.subr.mxu0 0.0
    %498 = vmatpush1.xpose.msra.mxu0 0.0
    %499 = vmatprep.subr.mxu0 0.0
    %500 = vmatpush1.xpose.msra.mxu0 0.0
    %501 = vmatprep.subr.mxu0 0.0
    %502 = vmatpush1.xpose.msra.mxu0 0.0
    %503 = vmatprep.subr.mxu0 0.0
    %504 = vmatpush1.xpose.msra.mxu0 0.0
    %505 = vmatprep.subr.mxu0 0.0
    %506 = vmatpush1.xpose.msra.mxu0 0.0
    %507 = vmatprep.subr.mxu0 0.0
    %508 = vmatpush1.xpose.msra.mxu0 0.0
    %509 = vmatprep.subr.mxu0 0.0
    %510 = vmatpush1.xpose.msra.mxu0 0.0
    %511 = vmatprep.subr.mxu0 0.0
    %512 = vmatpush1.xpose.msra.mxu0 0.0
    %513 = vmatprep.subr.mxu0 0.0
    %514 = vmatpush1.xpose.msra.mxu0 0.0
    %515 = vmatprep.subr.mxu0 0.0
    %516 = vmatpush1.xpose.msra.mxu0 0.0
    %517 = vmatprep.subr.mxu0 0.0
    %518 = vmatpush1.xpose.msra.mxu0 0.0
    %519 = vmatprep.mubr.f32.mxu0 0.0
    %520 = vmatmul.mubr.f32.gmra.mrb[0].mxu0 %v447
    %v521 = vpop.f32.mrb[0].mxu0
    %v522 = vadd.f32 0.0, %v521
    %v523 = vpop.f32.mrb[0].mxu0
    %524 = vmatprep.mubr.f32.mxu0 0.0
    %525 = vmatmul.mubr.f32.gmra.mrb[0].mxu0 %v449
    %v526 = vpop.f32.mrb[0].mxu0
    %v527 = vadd.f32 0.0, %v526
    %v528 = vpop.f32.mrb[0].mxu0
    %529 = vdwg.mxu0
    %v530 = vmul.f32 %v522, 0.35355338
    %v531 = vmul.f32 %v527, 0.35355338
    %v532 = vadd.f32 %v530, %v141
    %v533 = vadd.f32 %v531, %v142
    %v534 = vsel %vm329, %v532, -inf
    %535 = vmax.xlane.f32.xlu0 %v534
    %v536 = vpop.xlane.xlu0 %535
    %v537 = vsel %vm329, %v533, -inf
    %538 = vmax.xlane.f32.xlu0 %v537
    %v539 = vpop.xlane.xlu0 %538
    %v540 = vsub.f32 %v532, %v536
    %v541 = vsub.f32 %v533, %v539
    %v542 = vmul.f32 %v540, 1.442695
    %v543 = vpow.pop %v542
    %v544 = vmul.f32 %v541, 1.442695
    %v545 = vpow.pop %v544
    %v546 = vsel %vm329, %v543, 0.0
    %547 = vadd.xlane.f32.xlu0 %v546
    %v548 = vpop.xlane.xlu0 %547
    %v549 = vsel %vm329, %v545, 0.0
    %550 = vadd.xlane.f32.xlu0 %v549
    %v551 = vpop.xlane.xlu0 %550
    %v552 = vrcp.pop %v548
    %v553 = vrcp.pop %v551
    %v554 = vmul.f32 %v543, %v552
    %v555 = vmul.f32 %v545, %v553
    %556 = vrot.lane.b32.xlu0 %v227, 56
    %v557 = vpop.permute.xlu0 %556
    %558 = vrot.lane.b32.xlu0 %v232, 56
    %v559 = vpop.permute.xlu0 %558
    %v563 = vsel %vm329, %v554, 0
    %v566 = vsel %vm329, %v555, 0
    %568 = vmatprep.subr.mxu0 0.0
    %569 = vmatpush1.msra.mxu0 %v557
    %570 = vmatprep.subr.mxu0 0.0
    %571 = vmatpush1.msra.mxu0 %v559
    %572 = vmatprep.subr.mxu0 0.0
    %573 = vmatpush1.msra.mxu0 0.0
    %574 = vmatprep.subr.mxu0 0.0
    %575 = vmatpush1.msra.mxu0 0.0
    %576 = vmatprep.subr.mxu0 0.0
    %577 = vmatpush1.msra.mxu0 0.0
    %578 = vmatprep.subr.mxu0 0.0
    %579 = vmatpush1.msra.mxu0 0.0
    %580 = vmatprep.subr.mxu0 0.0
    %581 = vmatpush1.msra.mxu0 0.0
    %582 = vmatprep.subr.mxu0 0.0
    %583 = vmatpush1.msra.mxu0 0.0
    %584 = vmatprep.subr.mxu0 0.0
    %585 = vmatpush1.msra.mxu0 0.0
    %586 = vmatprep.subr.mxu0 0.0
    %587 = vmatpush1.msra.mxu0 0.0
    %588 = vmatprep.subr.mxu0 0.0
    %589 = vmatpush1.msra.mxu0 0.0
    %590 = vmatprep.subr.mxu0 0.0
    %591 = vmatpush1.msra.mxu0 0.0
    %592 = vmatprep.subr.mxu0 0.0
    %593 = vmatpush1.msra.mxu0 0.0
    %594 = vmatprep.subr.mxu0 0.0
    %595 = vmatpush1.msra.mxu0 0.0
    %596 = vmatprep.subr.mxu0 0.0
    %597 = vmatpush1.msra.mxu0 0.0
    %598 = vmatprep.subr.mxu0 0.0
    %599 = vmatpush1.msra.mxu0 0.0
    %600 = vmatprep.subr.mxu0 0.0
    %601 = vmatpush1.msra.mxu0 0.0
    %602 = vmatprep.subr.mxu0 0.0
    %603 = vmatpush1.msra.mxu0 0.0
    %604 = vmatprep.subr.mxu0 0.0
    %605 = vmatpush1.msra.mxu0 0.0
    %606 = vmatprep.subr.mxu0 0.0
    %607 = vmatpush1.msra.mxu0 0.0
    %608 = vmatprep.subr.mxu0 0.0
    %609 = vmatpush1.msra.mxu0 0.0
    %610 = vmatprep.subr.mxu0 0.0
    %611 = vmatpush1.msra.mxu0 0.0
    %612 = vmatprep.subr.mxu0 0.0
    %613 = vmatpush1.msra.mxu0 0.0
    %614 = vmatprep.subr.mxu0 0.0
    %615 = vmatpush1.msra.mxu0 0.0
    %616 = vmatprep.subr.mxu0 0.0
    %617 = vmatpush1.msra.mxu0 0.0
    %618 = vmatprep.subr.mxu0 0.0
    %619 = vmatpush1.msra.mxu0 0.0
    %620 = vmatprep.subr.mxu0 0.0
    %621 = vmatpush1.msra.mxu0 0.0
    %622 = vmatprep.subr.mxu0 0.0
    %623 = vmatpush1.msra.mxu0 0.0
    %624 = vmatprep.subr.mxu0 0.0
    %625 = vmatpush1.msra.mxu0 0.0
    %626 = vmatprep.subr.mxu0 0.0
    %627 = vmatpush1.msra.mxu0 0.0
    %628 = vmatprep.subr.mxu0 0.0
    %629 = vmatpush1.msra.mxu0 0.0
    %630 = vmatprep.subr.mxu0 0.0
    %631 = vmatpush1.msra.mxu0 0.0
    %632 = vmatprep.mubr.f32.mxu0 0.0
    %633 = vmatmul.mubr.f32.gmra.mrb[0].mxu0 %v563
    %v634 = vpop.f32.mrb[0].mxu0
    %v635 = vadd.f32 0.0, %v634
    %v636 = vpop.f32.mrb[0].mxu0
    %637 = vmatprep.mubr.f32.mxu0 0.0
    %638 = vmatmul.mubr.f32.gmra.mrb[0].mxu0 %v566
    %v639 = vpop.f32.mrb[0].mxu0
    %v640 = vadd.f32 0.0, %v639
    %v641 = vpop.f32.mrb[0].mxu0
    %642 = vdwg.mxu0
    %643 = vrot.lane.b32.xlu0 %v227, 112
    %v644 = vpop.permute.xlu0 %643
    %645 = vrot.lane.b32.xlu0 %v232, 112
    %v646 = vpop.permute.xlu0 %645
    %647 = vrot.lane.b32.xlu0 %v227, 80
    %v648 = vpop.permute.xlu0 %647
    %649 = vrot.lane.b32.xlu0 %v232, 80
    %v650 = vpop.permute.xlu0 %649
    %v651 = vsel %vm241, %v644, 0
    %v653 = vsel %vm241, %v646, 0
    %v655 = vsel %vm241, %v648, 0
    %v657 = vsel %vm241, %v650, 0
    %659 = vmatprep.subr.mxu0 0.0
    %660 = vmatpush1.xpose.msra.mxu0 %v655
    %661 = vmatprep.subr.mxu0 0.0
    %662 = vmatpush1.xpose.msra.mxu0 %v657
    %663 = vmatprep.subr.mxu0 0.0
    %664 = vmatpush1.xpose.msra.mxu0 0.0
    %665 = vmatprep.subr.mxu0 0.0
    %666 = vmatpush1.xpose.msra.mxu0 0.0
    %667 = vmatprep.subr.mxu0 0.0
    %668 = vmatpush1.xpose.msra.mxu0 0.0
    %669 = vmatprep.subr.mxu0 0.0
    %670 = vmatpush1.xpose.msra.mxu0 0.0
    %671 = vmatprep.subr.mxu0 0.0
    %672 = vmatpush1.xpose.msra.mxu0 0.0
    %673 = vmatprep.subr.mxu0 0.0
    %674 = vmatpush1.xpose.msra.mxu0 0.0
    %675 = vmatprep.subr.mxu0 0.0
    %676 = vmatpush1.xpose.msra.mxu0 0.0
    %677 = vmatprep.subr.mxu0 0.0
    %678 = vmatpush1.xpose.msra.mxu0 0.0
    %679 = vmatprep.subr.mxu0 0.0
    %680 = vmatpush1.xpose.msra.mxu0 0.0
    %681 = vmatprep.subr.mxu0 0.0
    %682 = vmatpush1.xpose.msra.mxu0 0.0
    %683 = vmatprep.subr.mxu0 0.0
    %684 = vmatpush1.xpose.msra.mxu0 0.0
    %685 = vmatprep.subr.mxu0 0.0
    %686 = vmatpush1.xpose.msra.mxu0 0.0
    %687 = vmatprep.subr.mxu0 0.0
    %688 = vmatpush1.xpose.msra.mxu0 0.0
    %689 = vmatprep.subr.mxu0 0.0
    %690 = vmatpush1.xpose.msra.mxu0 0.0
    %691 = vmatprep.subr.mxu0 0.0
    %692 = vmatpush1.xpose.msra.mxu0 0.0
    %693 = vmatprep.subr.mxu0 0.0
    %694 = vmatpush1.xpose.msra.mxu0 0.0
    %695 = vmatprep.subr.mxu0 0.0
    %696 = vmatpush1.xpose.msra.mxu0 0.0
    %697 = vmatprep.subr.mxu0 0.0
    %698 = vmatpush1.xpose.msra.mxu0 0.0
    %699 = vmatprep.subr.mxu0 0.0
    %700 = vmatpush1.xpose.msra.mxu0 0.0
    %701 = vmatprep.subr.mxu0 0.0
    %702 = vmatpush1.xpose.msra.mxu0 0.0
    %703 = vmatprep.subr.mxu0 0.0
    %704 = vmatpush1.xpose.msra.mxu0 0.0
    %705 = vmatprep.subr.mxu0 0.0
    %706 = vmatpush1.xpose.msra.mxu0 0.0
    %707 = vmatprep.subr.mxu0 0.0
    %708 = vmatpush1.xpose.msra.mxu0 0.0
    %709 = vmatprep.subr.mxu0 0.0
    %710 = vmatpush1.xpose.msra.mxu0 0.0
    %711 = vmatprep.subr.mxu0 0.0
    %712 = vmatpush1.xpose.msra.mxu0 0.0
    %713 = vmatprep.subr.mxu0 0.0
    %714 = vmatpush1.xpose.msra.mxu0 0.0
    %715 = vmatprep.subr.mxu0 0.0
    %716 = vmatpush1.xpose.msra.mxu0 0.0
    %717 = vmatprep.subr.mxu0 0.0
    %718 = vmatpush1.xpose.msra.mxu0 0.0
    %719 = vmatprep.subr.mxu0 0.0
    %720 = vmatpush1.xpose.msra.mxu0 0.0
    %721 = vmatprep.subr.mxu0 0.0
    %722 = vmatpush1.xpose.msra.mxu0 0.0
    %723 = vmatprep.mubr.f32.mxu0 0.0
    %724 = vmatmul.mubr.f32.gmra.mrb[0].mxu0 %v651
    %v725 = vpop.f32.mrb[0].mxu0
    %v726 = vadd.f32 0.0, %v725
    %v727 = vpop.f32.mrb[0].mxu0
    %728 = vmatprep.mubr.f32.mxu0 0.0
    %729 = vmatmul.mubr.f32.gmra.mrb[0].mxu0 %v653
    %v730 = vpop.f32.mrb[0].mxu0
    %v731 = vadd.f32 0.0, %v730
    %v732 = vpop.f32.mrb[0].mxu0
    %733 = vdwg.mxu0
    %v734 = vmul.f32 %v726, 0.35355338
    %v735 = vmul.f32 %v731, 0.35355338
    %v736 = vadd.f32 %v734, %v141
    %v737 = vadd.f32 %v735, %v142
    %v738 = vsel %vm329, %v736, -inf
    %739 = vmax.xlane.f32.xlu0 %v738
    %v740 = vpop.xlane.xlu0 %739
    %v741 = vsel %vm329, %v737, -inf
    %742 = vmax.xlane.f32.xlu0 %v741
    %v743 = vpop.xlane.xlu0 %742
    %v744 = vsub.f32 %v736, %v740
    %v745 = vsub.f32 %v737, %v743
    %v746 = vmul.f32 %v744, 1.442695
    %v747 = vpow.pop %v746
    %v748 = vmul.f32 %v745, 1.442695
    %v749 = vpow.pop %v748
    %v750 = vsel %vm329, %v747, 0.0
    %751 = vadd.xlane.f32.xlu0 %v750
    %v752 = vpop.xlane.xlu0 %751
    %v753 = vsel %vm329, %v749, 0.0
    %754 = vadd.xlane.f32.xlu0 %v753
    %v755 = vpop.xlane.xlu0 %754
    %v756 = vrcp.pop %v752
    %v757 = vrcp.pop %v755
    %v758 = vmul.f32 %v747, %v756
    %v759 = vmul.f32 %v749, %v757
    %760 = vrot.lane.b32.xlu0 %v227, 48
    %v761 = vpop.permute.xlu0 %760
    %762 = vrot.lane.b32.xlu0 %v232, 48
    %v763 = vpop.permute.xlu0 %762
    %v767 = vsel %vm329, %v758, 0
    %v770 = vsel %vm329, %v759, 0
    %772 = vmatprep.subr.mxu0 0.0
    %773 = vmatpush1.msra.mxu0 %v761
    %774 = vmatprep.subr.mxu0 0.0
    %775 = vmatpush1.msra.mxu0 %v763
    %776 = vmatprep.subr.mxu0 0.0
    %777 = vmatpush1.msra.mxu0 0.0
    %778 = vmatprep.subr.mxu0 0.0
    %779 = vmatpush1.msra.mxu0 0.0
    %780 = vmatprep.subr.mxu0 0.0
    %781 = vmatpush1.msra.mxu0 0.0
    %782 = vmatprep.subr.mxu0 0.0
    %783 = vmatpush1.msra.mxu0 0.0
    %784 = vmatprep.subr.mxu0 0.0
    %785 = vmatpush1.msra.mxu0 0.0
    %786 = vmatprep.subr.mxu0 0.0
    %787 = vmatpush1.msra.mxu0 0.0
    %788 = vmatprep.subr.mxu0 0.0
    %789 = vmatpush1.msra.mxu0 0.0
    %790 = vmatprep.subr.mxu0 0.0
    %791 = vmatpush1.msra.mxu0 0.0
    %792 = vmatprep.subr.mxu0 0.0
    %793 = vmatpush1.msra.mxu0 0.0
    %794 = vmatprep.subr.mxu0 0.0
    %795 = vmatpush1.msra.mxu0 0.0
    %796 = vmatprep.subr.mxu0 0.0
    %797 = vmatpush1.msra.mxu0 0.0
    %798 = vmatprep.subr.mxu0 0.0
    %799 = vmatpush1.msra.mxu0 0.0
    %800 = vmatprep.subr.mxu0 0.0
    %801 = vmatpush1.msra.mxu0 0.0
    %802 = vmatprep.subr.mxu0 0.0
    %803 = vmatpush1.msra.mxu0 0.0
    %804 = vmatprep.subr.mxu0 0.0
    %805 = vmatpush1.msra.mxu0 0.0
    %806 = vmatprep.subr.mxu0 0.0
    %807 = vmatpush1.msra.mxu0 0.0
    %808 = vmatprep.subr.mxu0 0.0
    %809 = vmatpush1.msra.mxu0 0.0
    %810 = vmatprep.subr.mxu0 0.0
    %811 = vmatpush1.msra.mxu0 0.0
    %812 = vmatprep.subr.mxu0 0.0
    %813 = vmatpush1.msra.mxu0 0.0
    %814 = vmatprep.subr.mxu0 0.0
    %815 = vmatpush1.msra.mxu0 0.0
    %816 = vmatprep.subr.mxu0 0.0
    %817 = vmatpush1.msra.mxu0 0.0
    %818 = vmatprep.subr.mxu0 0.0
    %819 = vmatpush1.msra.mxu0 0.0
    %820 = vmatprep.subr.mxu0 0.0
    %821 = vmatpush1.msra.mxu0 0.0
    %822 = vmatprep.subr.mxu0 0.0
    %823 = vmatpush1.msra.mxu0 0.0
    %824 = vmatprep.subr.mxu0 0.0
    %825 = vmatpush1.msra.mxu0 0.0
    %826 = vmatprep.subr.mxu0 0.0
    %827 = vmatpush1.msra.mxu0 0.0
    %828 = vmatprep.subr.mxu0 0.0
    %829 = vmatpush1.msra.mxu0 0.0
    %830 = vmatprep.subr.mxu0 0.0
    %831 = vmatpush1.msra.mxu0 0.0
    %832 = vmatprep.subr.mxu0 0.0
    %833 = vmatpush1.msra.mxu0 0.0
    %834 = vmatprep.subr.mxu0 0.0
    %835 = vmatpush1.msra.mxu0 0.0
    %836 = vmatprep.mubr.f32.mxu0 0.0
    %837 = vmatmul.mubr.f32.gmra.mrb[0].mxu0 %v767
    %v838 = vpop.f32.mrb[0].mxu0
    %v839 = vadd.f32 0.0, %v838
    %v840 = vpop.f32.mrb[0].mxu0
    %841 = vmatprep.mubr.f32.mxu0 0.0
    %842 = vmatmul.mubr.f32.gmra.mrb[0].mxu0 %v770
    %v843 = vpop.f32.mrb[0].mxu0
    %v844 = vadd.f32 0.0, %v843
    %v845 = vpop.f32.mrb[0].mxu0
    %846 = vdwg.mxu0
    %847 = vrot.lane.b32.xlu0 %v227, 104
    %v848 = vpop.permute.xlu0 %847
    %849 = vrot.lane.b32.xlu0 %v232, 104
    %v850 = vpop.permute.xlu0 %849
    %851 = vrot.lane.b32.xlu0 %v227, 72
    %v852 = vpop.permute.xlu0 %851
    %853 = vrot.lane.b32.xlu0 %v232, 72
    %v854 = vpop.permute.xlu0 %853
    %v855 = vsel %vm241, %v848, 0
    %v857 = vsel %vm241, %v850, 0
    %v859 = vsel %vm241, %v852, 0
    %v861 = vsel %vm241, %v854, 0
    %863 = vmatprep.subr.mxu0 0.0
    %864 = vmatpush1.xpose.msra.mxu0 %v859
    %865 = vmatprep.subr.mxu0 0.0
    %866 = vmatpush1.xpose.msra.mxu0 %v861
    %867 = vmatprep.subr.mxu0 0.0
    %868 = vmatpush1.xpose.msra.mxu0 0.0
    %869 = vmatprep.subr.mxu0 0.0
    %870 = vmatpush1.xpose.msra.mxu0 0.0
    %871 = vmatprep.subr.mxu0 0.0
    %872 = vmatpush1.xpose.msra.mxu0 0.0
    %873 = vmatprep.subr.mxu0 0.0
    %874 = vmatpush1.xpose.msra.mxu0 0.0
    %875 = vmatprep.subr.mxu0 0.0
    %876 = vmatpush1.xpose.msra.mxu0 0.0
    %877 = vmatprep.subr.mxu0 0.0
    %878 = vmatpush1.xpose.msra.mxu0 0.0
    %879 = vmatprep.subr.mxu0 0.0
    %880 = vmatpush1.xpose.msra.mxu0 0.0
    %881 = vmatprep.subr.mxu0 0.0
    %882 = vmatpush1.xpose.msra.mxu0 0.0
    %883 = vmatprep.subr.mxu0 0.0
    %884 = vmatpush1.xpose.msra.mxu0 0.0
    %885 = vmatprep.subr.mxu0 0.0
    %886 = vmatpush1.xpose.msra.mxu0 0.0
    %887 = vmatprep.subr.mxu0 0.0
    %888 = vmatpush1.xpose.msra.mxu0 0.0
    %889 = vmatprep.subr.mxu0 0.0
    %890 = vmatpush1.xpose.msra.mxu0 0.0
    %891 = vmatprep.subr.mxu0 0.0
    %892 = vmatpush1.xpose.msra.mxu0 0.0
    %893 = vmatprep.subr.mxu0 0.0
    %894 = vmatpush1.xpose.msra.mxu0 0.0
    %895 = vmatprep.subr.mxu0 0.0
    %896 = vmatpush1.xpose.msra.mxu0 0.0
    %897 = vmatprep.subr.mxu0 0.0
    %898 = vmatpush1.xpose.msra.mxu0 0.0
    %899 = vmatprep.subr.mxu0 0.0
    %900 = vmatpush1.xpose.msra.mxu0 0.0
    %901 = vmatprep.subr.mxu0 0.0
    %902 = vmatpush1.xpose.msra.mxu0 0.0
    %903 = vmatprep.subr.mxu0 0.0
    %904 = vmatpush1.xpose.msra.mxu0 0.0
    %905 = vmatprep.subr.mxu0 0.0
    %906 = vmatpush1.xpose.msra.mxu0 0.0
    %907 = vmatprep.subr.mxu0 0.0
    %908 = vmatpush1.xpose.msra.mxu0 0.0
    %909 = vmatprep.subr.mxu0 0.0
    %910 = vmatpush1.xpose.msra.mxu0 0.0
    %911 = vmatprep.subr.mxu0 0.0
    %912 = vmatpush1.xpose.msra.mxu0 0.0
    %913 = vmatprep.subr.mxu0 0.0
    %914 = vmatpush1.xpose.msra.mxu0 0.0
    %915 = vmatprep.subr.mxu0 0.0
    %916 = vmatpush1.xpose.msra.mxu0 0.0
    %917 = vmatprep.subr.mxu0 0.0
    %918 = vmatpush1.xpose.msra.mxu0 0.0
    %919 = vmatprep.subr.mxu0 0.0
    %920 = vmatpush1.xpose.msra.mxu0 0.0
    %921 = vmatprep.subr.mxu0 0.0
    %922 = vmatpush1.xpose.msra.mxu0 0.0
    %923 = vmatprep.subr.mxu0 0.0
    %924 = vmatpush1.xpose.msra.mxu0 0.0
    %925 = vmatprep.subr.mxu0 0.0
    %926 = vmatpush1.xpose.msra.mxu0 0.0
    %927 = vmatprep.mubr.f32.mxu0 0.0
    %928 = vmatmul.mubr.f32.gmra.mrb[0].mxu0 %v855
    %v929 = vpop.f32.mrb[0].mxu0
    %v930 = vadd.f32 0.0, %v929
    %v931 = vpop.f32.mrb[0].mxu0
    %932 = vmatprep.mubr.f32.mxu0 0.0
    %933 = vmatmul.mubr.f32.gmra.mrb[0].mxu0 %v857
    %v934 = vpop.f32.mrb[0].mxu0
    %v935 = vadd.f32 0.0, %v934
    %v936 = vpop.f32.mrb[0].mxu0
    %937 = vdwg.mxu0
    %v938 = vmul.f32 %v930, 0.35355338
    %v939 = vmul.f32 %v935, 0.35355338
    %v940 = vadd.f32 %v938, %v141
    %v941 = vadd.f32 %v939, %v142
    %v942 = vsel %vm329, %v940, -inf
    %943 = vmax.xlane.f32.xlu0 %v942
    %v944 = vpop.xlane.xlu0 %943
    %v945 = vsel %vm329, %v941, -inf
    %946 = vmax.xlane.f32.xlu0 %v945
    %v947 = vpop.xlane.xlu0 %946
    %v948 = vsub.f32 %v940, %v944
    %v949 = vsub.f32 %v941, %v947
    %v950 = vmul.f32 %v948, 1.442695
    %v951 = vpow.pop %v950
    %v952 = vmul.f32 %v949, 1.442695
    %v953 = vpow.pop %v952
    %v954 = vsel %vm329, %v951, 0.0
    %955 = vadd.xlane.f32.xlu0 %v954
    %v956 = vpop.xlane.xlu0 %955
    %v957 = vsel %vm329, %v953, 0.0
    %958 = vadd.xlane.f32.xlu0 %v957
    %v959 = vpop.xlane.xlu0 %958
    %v960 = vrcp.pop %v956
    %v961 = vrcp.pop %v959
    %v962 = vmul.f32 %v951, %v960
    %v963 = vmul.f32 %v953, %v961
    %964 = vrot.lane.b32.xlu0 %v227, 40
    %v965 = vpop.permute.xlu0 %964
    %966 = vrot.lane.b32.xlu0 %v232, 40
    %v967 = vpop.permute.xlu0 %966
    %v971 = vsel %vm329, %v962, 0
    %v974 = vsel %vm329, %v963, 0
    %976 = vmatprep.subr.mxu0 0.0
    %977 = vmatpush1.msra.mxu0 %v965
    %978 = vmatprep.subr.mxu0 0.0
    %979 = vmatpush1.msra.mxu0 %v967
    %980 = vmatprep.subr.mxu0 0.0
    %981 = vmatpush1.msra.mxu0 0.0
    %982 = vmatprep.subr.mxu0 0.0
    %983 = vmatpush1.msra.mxu0 0.0
    %984 = vmatprep.subr.mxu0 0.0
    %985 = vmatpush1.msra.mxu0 0.0
    %986 = vmatprep.subr.mxu0 0.0
    %987 = vmatpush1.msra.mxu0 0.0
    %988 = vmatprep.subr.mxu0 0.0
    %989 = vmatpush1.msra.mxu0 0.0
    %990 = vmatprep.subr.mxu0 0.0
    %991 = vmatpush1.msra.mxu0 0.0
    %992 = vmatprep.subr.mxu0 0.0
    %993 = vmatpush1.msra.mxu0 0.0
    %994 = vmatprep.subr.mxu0 0.0
    %995 = vmatpush1.msra.mxu0 0.0
    %996 = vmatprep.subr.mxu0 0.0
    %997 = vmatpush1.msra.mxu0 0.0
    %998 = vmatprep.subr.mxu0 0.0
    %999 = vmatpush1.msra.mxu0 0.0
    %1000 = vmatprep.subr.mxu0 0.0
    %1001 = vmatpush1.msra.mxu0 0.0
    %1002 = vmatprep.subr.mxu0 0.0
    %1003 = vmatpush1.msra.mxu0 0.0
    %1004 = vmatprep.subr.mxu0 0.0
    %1005 = vmatpush1.msra.mxu0 0.0
    %1006 = vmatprep.subr.mxu0 0.0
    %1007 = vmatpush1.msra.mxu0 0.0
    %1008 = vmatprep.subr.mxu0 0.0
    %1009 = vmatpush1.msra.mxu0 0.0
    %1010 = vmatprep.subr.mxu0 0.0
    %1011 = vmatpush1.msra.mxu0 0.0
    %1012 = vmatprep.subr.mxu0 0.0
    %1013 = vmatpush1.msra.mxu0 0.0
    %1014 = vmatprep.subr.mxu0 0.0
    %1015 = vmatpush1.msra.mxu0 0.0
    %1016 = vmatprep.subr.mxu0 0.0
    %1017 = vmatpush1.msra.mxu0 0.0
    %1018 = vmatprep.subr.mxu0 0.0
    %1019 = vmatpush1.msra.mxu0 0.0
    %1020 = vmatprep.subr.mxu0 0.0
    %1021 = vmatpush1.msra.mxu0 0.0
    %1022 = vmatprep.subr.mxu0 0.0
    %1023 = vmatpush1.msra.mxu0 0.0
    %1024 = vmatprep.subr.mxu0 0.0
    %1025 = vmatpush1.msra.mxu0 0.0
    %1026 = vmatprep.subr.mxu0 0.0
    %1027 = vmatpush1.msra.mxu0 0.0
    %1028 = vmatprep.subr.mxu0 0.0
    %1029 = vmatpush1.msra.mxu0 0.0
    %1030 = vmatprep.subr.mxu0 0.0
    %1031 = vmatpush1.msra.mxu0 0.0
    %1032 = vmatprep.subr.mxu0 0.0
    %1033 = vmatpush1.msra.mxu0 0.0
    %1034 = vmatprep.subr.mxu0 0.0
    %1035 = vmatpush1.msra.mxu0 0.0
    %1036 = vmatprep.subr.mxu0 0.0
    %1037 = vmatpush1.msra.mxu0 0.0
    %1038 = vmatprep.subr.mxu0 0.0
    %1039 = vmatpush1.msra.mxu0 0.0
    %1040 = vmatprep.mubr.f32.mxu0 0.0
    %1041 = vmatmul.mubr.f32.gmra.mrb[0].mxu0 %v971
    %v1042 = vpop.f32.mrb[0].mxu0
    %v1043 = vadd.f32 0.0, %v1042
    %v1044 = vpop.f32.mrb[0].mxu0
    %1045 = vmatprep.mubr.f32.mxu0 0.0
    %1046 = vmatmul.mubr.f32.gmra.mrb[0].mxu0 %v974
    %v1047 = vpop.f32.mrb[0].mxu0
    %v1048 = vadd.f32 0.0, %v1047
    %v1049 = vpop.f32.mrb[0].mxu0
    %1050 = vdwg.mxu0
    %1053 = vrot.lane.b32.xlu0 %v635, 8
    %v1054 = vpop.permute.xlu0 %1053
    %1055 = vrot.lane.b32.xlu0 %v640, 8
    %v1056 = vpop.permute.xlu0 %1055
    %1061 = vrot.lane.b32.xlu0 %v839, 16
    %v1062 = vpop.permute.xlu0 %1061
    %1063 = vrot.lane.b32.xlu0 %v844, 16
    %v1064 = vpop.permute.xlu0 %1063
    %1069 = vrot.lane.b32.xlu0 %v1043, 24
    %v1070 = vpop.permute.xlu0 %1069
    %1071 = vrot.lane.b32.xlu0 %v1048, 24
    %v1072 = vpop.permute.xlu0 %1071
    %v1075 = vsel %vm241, %v431, %v1054
    %v1076 = vsel %vm241, %v436, %v1056
    %v1077 = vsel %vm329, %v1075, %v1062
    %v1078 = vsel %vm329, %v1076, %v1064
    %vm1079 = vcmask 195584
    %v1080 = vsel %vm1079, %v1077, %v1070
    %v1081 = vsel %vm1079, %v1078, %v1072
    %v1082 = vld [vmem:[%s6] sm:$0xff]
    %v1083 = vld [vmem:[%s6 + $0x8] sm:$0xff]
    %v1084 = vld [vmem:[%s6 + $0x10] sm:$0xff]
    %v1085 = vld [vmem:[%s6 + $0x18] sm:$0xff]
    %v1086 = vld [vmem:[%s7] sm:$0x1]
    %v1088 = vlaneseq
    %v1089 = vshrl.u32 %v1088, 7
    %v1090 = vsub.s32 0, %v1089
    %v1091 = vrot.slane %v1086, %v1090
    %v1094 = vsel %vm97, %v1080, 0
    %v1097 = vsel %vm97, %v1081, 0
    %1099 = vmatprep.subr.mxu0 0.0
    %1100 = vmatpush1.msra.mxu0 %v1082
    %1101 = vmatprep.subr.mxu0 0.0
    %1102 = vmatpush1.msra.mxu0 %v1083
    %1103 = vmatprep.subr.mxu0 0.0
    %1104 = vmatpush1.msra.mxu0 %v1084
    %1105 = vmatprep.subr.mxu0 0.0
    %1106 = vmatpush1.msra.mxu0 %v1085
    %1107 = vmatprep.subr.mxu0 0.0
    %1108 = vmatpush1.msra.mxu0 0.0
    %1109 = vmatprep.subr.mxu0 0.0
    %1110 = vmatpush1.msra.mxu0 0.0
    %1111 = vmatprep.subr.mxu0 0.0
    %1112 = vmatpush1.msra.mxu0 0.0
    %1113 = vmatprep.subr.mxu0 0.0
    %1114 = vmatpush1.msra.mxu0 0.0
    %1115 = vmatprep.subr.mxu0 0.0
    %1116 = vmatpush1.msra.mxu0 0.0
    %1117 = vmatprep.subr.mxu0 0.0
    %1118 = vmatpush1.msra.mxu0 0.0
    %1119 = vmatprep.subr.mxu0 0.0
    %1120 = vmatpush1.msra.mxu0 0.0
    %1121 = vmatprep.subr.mxu0 0.0
    %1122 = vmatpush1.msra.mxu0 0.0
    %1123 = vmatprep.subr.mxu0 0.0
    %1124 = vmatpush1.msra.mxu0 0.0
    %1125 = vmatprep.subr.mxu0 0.0
    %1126 = vmatpush1.msra.mxu0 0.0
    %1127 = vmatprep.subr.mxu0 0.0
    %1128 = vmatpush1.msra.mxu0 0.0
    %1129 = vmatprep.subr.mxu0 0.0
    %1130 = vmatpush1.msra.mxu0 0.0
    %1131 = vmatprep.subr.mxu0 0.0
    %1132 = vmatpush1.msra.mxu0 0.0
    %1133 = vmatprep.subr.mxu0 0.0
    %1134 = vmatpush1.msra.mxu0 0.0
    %1135 = vmatprep.subr.mxu0 0.0
    %1136 = vmatpush1.msra.mxu0 0.0
    %1137 = vmatprep.subr.mxu0 0.0
    %1138 = vmatpush1.msra.mxu0 0.0
    %1139 = vmatprep.subr.mxu0 0.0
    %1140 = vmatpush1.msra.mxu0 0.0
    %1141 = vmatprep.subr.mxu0 0.0
    %1142 = vmatpush1.msra.mxu0 0.0
    %1143 = vmatprep.subr.mxu0 0.0
    %1144 = vmatpush1.msra.mxu0 0.0
    %1145 = vmatprep.subr.mxu0 0.0
    %1146 = vmatpush1.msra.mxu0 0.0
    %1147 = vmatprep.subr.mxu0 0.0
    %1148 = vmatpush1.msra.mxu0 0.0
    %1149 = vmatprep.subr.mxu0 0.0
    %1150 = vmatpush1.msra.mxu0 0.0
    %1151 = vmatprep.subr.mxu0 0.0
    %1152 = vmatpush1.msra.mxu0 0.0
    %1153 = vmatprep.subr.mxu0 0.0
    %1154 = vmatpush1.msra.mxu0 0.0
    %1155 = vmatprep.subr.mxu0 0.0
    %1156 = vmatpush1.msra.mxu0 0.0
    %1157 = vmatprep.subr.mxu0 0.0
    %1158 = vmatpush1.msra.mxu0 0.0
    %1159 = vmatprep.subr.mxu0 0.0
    %1160 = vmatpush1.msra.mxu0 0.0
    %1161 = vmatprep.subr.mxu0 0.0
    %1162 = vmatpush1.msra.mxu0 0.0
    %1163 = vmatprep.mubr.f32.mxu0 0.0
    %1164 = vmatmul.mubr.f32.gmra.mrb[0].mxu0 %v1094
    %v1165 = vpop.f32.mrb[0].mxu0
    %v1166 = vadd.f32 %v1091, %v1165
    %v1167 = vpop.f32.mrb[0].mxu0
    %1168 = vmatprep.mubr.f32.mxu0 0.0
    %1169 = vmatmul.mubr.f32.gmra.mrb[0].mxu0 %v1097
    %v1170 = vpop.f32.mrb[0].mxu0
    %v1171 = vadd.f32 %v1091, %v1170
    %v1172 = vpop.f32.mrb[0].mxu0
    %1173 = vdwg.mxu0
    %v1174 = vadd.f32 %v139, %v1166
    %v1175 = vadd.f32 %v140, %v1171
    %v1176 = vld [vmem:[%s8] sm:$0x1]
    %v1177 = vld [vmem:[%s9] sm:$0x1]
    %v1178 = vsel %vm97, %v1174, 0.0
    %1179 = vadd.xlane.f32.xlu0 %v1178
    %v1180 = vpop.xlane.xlu0 %1179
    %v1181 = vsel %vm97, %v1175, 0.0
    %1182 = vadd.xlane.f32.xlu0 %v1181
    %v1183 = vpop.xlane.xlu0 %1182
    %v1184 = vmul.f32 %v1180, %v104
    %v1185 = vmul.f32 %v1183, %v104
    %v1186 = vsub.f32 %v1174, %v1184
    %v1187 = vsub.f32 %v1175, %v1185
    %v1188 = vmul.f32 %v1186, %v1186
    %v1189 = vmul.f32 %v1187, %v1187
    %v1190 = vsel %vm97, %v1188, 0.0
    %1191 = vadd.xlane.f32.xlu0 %v1190
    %v1192 = vpop.xlane.xlu0 %1191
    %v1193 = vsel %vm97, %v1189, 0.0
    %1194 = vadd.xlane.f32.xlu0 %v1193
    %v1195 = vpop.xlane.xlu0 %1194
    %v1196 = vmul.f32 %v1192, %v104
    %v1197 = vmul.f32 %v1195, %v104
    %v1198 = vadd.f32 %v1196, 1e-05
    %v1199 = vadd.f32 %v1197, 1e-05
    %v1200 = vrsqrt.pop %v1198
    %v1201 = vrsqrt.pop %v1199
    %v1202 = vmul.f32 %v1186, %v1200
    %v1203 = vmul.f32 %v1187, %v1201
    %v1205 = vlaneseq
    %v1206 = vshrl.u32 %v1205, 7
    %v1207 = vsub.s32 0, %v1206
    %v1208 = vrot.slane %v1176, %v1207
    %v1210 = vmul.f32 %v1202, %v1208
    %v1211 = vmul.f32 %v1203, %v1208
    %v1213 = vlaneseq
    %v1214 = vshrl.u32 %v1213, 7
    %v1215 = vsub.s32 0, %v1214
    %v1216 = vrot.slane %v1177, %v1215
    %v1218 = vadd.f32 %v1210, %v1216
    %v1219 = vadd.f32 %v1211, %v1216
    %v1220 = vld [vmem:[%s10] sm:$0xff]
    %v1221 = vld [vmem:[%s10 + $0x8] sm:$0xff]
    %v1222 = vld [vmem:[%s10 + $0x10] sm:$0xff]
    %v1223 = vld [vmem:[%s10 + $0x18] sm:$0xff]
    %v1224 = vld [vmem:[%s11] sm:$0x1]
    %v1226 = vlaneseq
    %v1227 = vshrl.u32 %v1226, 7
    %v1228 = vsub.s32 0, %v1227
    %v1229 = vrot.slane %v1224, %v1228
    %v1232 = vsel %vm97, %v1218, 0
    %v1235 = vsel %vm97, %v1219, 0
    %1237 = vmatprep.subr.mxu0 0.0
    %1238 = vmatpush1.msra.mxu0 %v1220
    %1239 = vmatprep.subr.mxu0 0.0
    %1240 = vmatpush1.msra.mxu0 %v1221
    %1241 = vmatprep.subr.mxu0 0.0
    %1242 = vmatpush1.msra.mxu0 %v1222
    %1243 = vmatprep.subr.mxu0 0.0
    %1244 = vmatpush1.msra.mxu0 %v1223
    %1245 = vmatprep.subr.mxu0 0.0
    %1246 = vmatpush1.msra.mxu0 0.0
    %1247 = vmatprep.subr.mxu0 0.0
    %1248 = vmatpush1.msra.mxu0 0.0
    %1249 = vmatprep.subr.mxu0 0.0
    %1250 = vmatpush1.msra.mxu0 0.0
    %1251 = vmatprep.subr.mxu0 0.0
    %1252 = vmatpush1.msra.mxu0 0.0
    %1253 = vmatprep.subr.mxu0 0.0
    %1254 = vmatpush1.msra.mxu0 0.0
    %1255 = vmatprep.subr.mxu0 0.0
    %1256 = vmatpush1.msra.mxu0 0.0
    %1257 = vmatprep.subr.mxu0 0.0
    %1258 = vmatpush1.msra.mxu0 0.0
    %1259 = vmatprep.subr.mxu0 0.0
    %1260 = vmatpush1.msra.mxu0 0.0
    %1261 = vmatprep.subr.mxu0 0.0
    %1262 = vmatpush1.msra.mxu0 0.0
    %1263 = vmatprep.subr.mxu0 0.0
    %1264 = vmatpush1.msra.mxu0 0.0
    %1265 = vmatprep.subr.mxu0 0.0
    %1266 = vmatpush1.msra.mxu0 0.0
    %1267 = vmatprep.subr.mxu0 0.0
    %1268 = vmatpush1.msra.mxu0 0.0
    %1269 = vmatprep.subr.mxu0 0.0
    %1270 = vmatpush1.msra.mxu0 0.0
    %1271 = vmatprep.subr.mxu0 0.0
    %1272 = vmatpush1.msra.mxu0 0.0
    %1273 = vmatprep.subr.mxu0 0.0
    %1274 = vmatpush1.msra.mxu0 0.0
    %1275 = vmatprep.subr.mxu0 0.0
    %1276 = vmatpush1.msra.mxu0 0.0
    %1277 = vmatprep.subr.mxu0 0.0
    %1278 = vmatpush1.msra.mxu0 0.0
    %1279 = vmatprep.subr.mxu0 0.0
    %1280 = vmatpush1.msra.mxu0 0.0
    %1281 = vmatprep.subr.mxu0 0.0
    %1282 = vmatpush1.msra.mxu0 0.0
    %1283 = vmatprep.subr.mxu0 0.0
    %1284 = vmatpush1.msra.mxu0 0.0
    %1285 = vmatprep.subr.mxu0 0.0
    %1286 = vmatpush1.msra.mxu0 0.0
    %1287 = vmatprep.subr.mxu0 0.0
    %1288 = vmatpush1.msra.mxu0 0.0
    %1289 = vmatprep.subr.mxu0 0.0
    %1290 = vmatpush1.msra.mxu0 0.0
    %1291 = vmatprep.subr.mxu0 0.0
    %1292 = vmatpush1.msra.mxu0 0.0
    %1293 = vmatprep.subr.mxu0 0.0
    %1294 = vmatpush1.msra.mxu0 0.0
    %1295 = vmatprep.subr.mxu0 0.0
    %1296 = vmatpush1.msra.mxu0 0.0
    %1297 = vmatprep.subr.mxu0 0.0
    %1298 = vmatpush1.msra.mxu0 0.0
    %1299 = vmatprep.subr.mxu0 0.0
    %1300 = vmatpush1.msra.mxu0 0.0
    %1301 = vmatprep.mubr.f32.mxu0 0.0
    %1302 = vmatmul.mubr.f32.gmra.mrb[0].mxu0 %v1232
    %v1303 = vpop.f32.mrb[0].mxu0
    %v1304 = vadd.f32 %v1229, %v1303
    %v1305 = vpop.f32.mrb[0].mxu0
    %1306 = vmatprep.mubr.f32.mxu0 0.0
    %1307 = vmatmul.mubr.f32.gmra.mrb[0].mxu0 %v1235
    %v1308 = vpop.f32.mrb[0].mxu0
    %v1309 = vadd.f32 %v1229, %v1308
    %v1310 = vpop.f32.mrb[0].mxu0
    %1311 = vdwg.mxu0
    %v1312 = vmul.f32 %v1304, %v1304
    %v1313 = vmul.f32 %v1309, %v1309
    %v1314 = vmul.f32 %v1304, %v1312
    %v1315 = vmul.f32 %v1309, %v1313
    %v1316 = vmul.f32 %v1314, 0.044715
    %v1317 = vmul.f32 %v1315, 0.044715
    %v1318 = vadd.f32 %v1304, %v1316
    %v1319 = vadd.f32 %v1309, %v1317
    %v1320 = vmul.f32 %v1318, 0.7978846
    %v1321 = vmul.f32 %v1319, 0.7978846
    %v1322 = vtanh.pop %v1320
    %v1323 = vtanh.pop %v1321
    %v1324 = vadd.f32 %v1322, 1.0
    %v1325 = vadd.f32 %v1323, 1.0
    %v1326 = vmul.f32 %v1324, 0.5
    %v1327 = vmul.f32 %v1325, 0.5
    %v1328 = vmul.f32 %v1304, %v1326
    %v1329 = vmul.f32 %v1309, %v1327
    %v1330 = vld [vmem:[%s12] sm:$0xff]
    %v1331 = vld [vmem:[%s12 + $0x8] sm:$0xff]
    %v1332 = vld [vmem:[%s12 + $0x10] sm:$0xff]
    %v1333 = vld [vmem:[%s12 + $0x18] sm:$0xff]
    %v1334 = vld [vmem:[%s12 + $0x20] sm:$0xff]
    %v1335 = vld [vmem:[%s12 + $0x28] sm:$0xff]
    %v1336 = vld [vmem:[%s12 + $0x30] sm:$0xff]
    %v1337 = vld [vmem:[%s12 + $0x38] sm:$0xff]
    %v1338 = vld [vmem:[%s13] sm:$0x1]
    %v1340 = vlaneseq
    %v1341 = vshrl.u32 %v1340, 7
    %v1342 = vsub.s32 0, %v1341
    %v1343 = vrot.slane %v1338, %v1342
    %vm1345 = vcmask 523264
    %v1347 = vsel %vm1345, %v1328, 0
    %v1350 = vsel %vm1345, %v1329, 0
    %1352 = vmatprep.subr.mxu0 0.0
    %1353 = vmatpush1.msra.mxu0 %v1330
    %1354 = vmatprep.subr.mxu0 0.0
    %1355 = vmatpush1.msra.mxu0 %v1331
    %1356 = vmatprep.subr.mxu0 0.0
    %1357 = vmatpush1.msra.mxu0 %v1332
    %1358 = vmatprep.subr.mxu0 0.0
    %1359 = vmatpush1.msra.mxu0 %v1333
    %1360 = vmatprep.subr.mxu0 0.0
    %1361 = vmatpush1.msra.mxu0 %v1334
    %1362 = vmatprep.subr.mxu0 0.0
    %1363 = vmatpush1.msra.mxu0 %v1335
    %1364 = vmatprep.subr.mxu0 0.0
    %1365 = vmatpush1.msra.mxu0 %v1336
    %1366 = vmatprep.subr.mxu0 0.0
    %1367 = vmatpush1.msra.mxu0 %v1337
    %1368 = vmatprep.subr.mxu0 0.0
    %1369 = vmatpush1.msra.mxu0 0.0
    %1370 = vmatprep.subr.mxu0 0.0
    %1371 = vmatpush1.msra.mxu0 0.0
    %1372 = vmatprep.subr.mxu0 0.0
    %1373 = vmatpush1.msra.mxu0 0.0
    %1374 = vmatprep.subr.mxu0 0.0
    %1375 = vmatpush1.msra.mxu0 0.0
    %1376 = vmatprep.subr.mxu0 0.0
    %1377 = vmatpush1.msra.mxu0 0.0
    %1378 = vmatprep.subr.mxu0 0.0
    %1379 = vmatpush1.msra.mxu0 0.0
    %1380 = vmatprep.subr.mxu0 0.0
    %1381 = vmatpush1.msra.mxu0 0.0
    %1382 = vmatprep.subr.mxu0 0.0
    %1383 = vmatpush1.msra.mxu0 0.0
    %1384 = vmatprep.subr.mxu0 0.0
    %1385 = vmatpush1.msra.mxu0 0.0
    %1386 = vmatprep.subr.mxu0 0.0
    %1387 = vmatpush1.msra.mxu0 0.0
    %1388 = vmatprep.subr.mxu0 0.0
    %1389 = vmatpush1.msra.mxu0 0.0
    %1390 = vmatprep.subr.mxu0 0.0
    %1391 = vmatpush1.msra.mxu0 0.0
    %1392 = vmatprep.subr.mxu0 0.0
    %1393 = vmatpush1.msra.mxu0 0.0
    %1394 = vmatprep.subr.mxu0 0.0
    %1395 = vmatpush1.msra.mxu0 0.0
    %1396 = vmatprep.subr.mxu0 0.0
    %1397 = vmatpush1.msra.mxu0 0.0
    %1398 = vmatprep.subr.mxu0 0.0
    %1399 = vmatpush1.msra.mxu0 0.0
    %1400 = vmatprep.subr.mxu0 0.0
    %1401 = vmatpush1.msra.mxu0 0.0
    %1402 = vmatprep.subr.mxu0 0.0
    %1403 = vmatpush1.msra.mxu0 0.0
    %1404 = vmatprep.subr.mxu0 0.0
    %1405 = vmatpush1.msra.mxu0 0.0
    %1406 = vmatprep.subr.mxu0 0.0
    %1407 = vmatpush1.msra.mxu0 0.0
    %1408 = vmatprep.subr.mxu0 0.0
    %1409 = vmatpush1.msra.mxu0 0.0
    %1410 = vmatprep.subr.mxu0 0.0
    %1411 = vmatpush1.msra.mxu0 0.0
    %1412 = vmatprep.subr.mxu0 0.0
    %1413 = vmatpush1.msra.mxu0 0.0
    %1414 = vmatprep.subr.mxu0 0.0
    %1415 = vmatpush1.msra.mxu0 0.0
    %1416 = vmatprep.mubr.f32.mxu0 0.0
    %1417 = vmatmul.mubr.f32.gmra.mrb[0].mxu0 %v1347
    %v1418 = vpop.f32.mrb[0].mxu0
    %v1419 = vadd.f32 %v1343, %v1418
    %v1420 = vpop.f32.mrb[0].mxu0
    %1421 = vmatprep.mubr.f32.mxu0 0.0
    %1422 = vmatmul.mubr.f32.gmra.mrb[0].mxu0 %v1350
    %v1423 = vpop.f32.mrb[0].mxu0
    %v1424 = vadd.f32 %v1343, %v1423
    %v1425 = vpop.f32.mrb[0].mxu0
    %1426 = vdwg.mxu0
    %v1427 = vadd.f32 %v1218, %v1419
    %v1428 = vadd.f32 %v1219, %v1424
    %v1429 = vld [vmem:[%s14] sm:$0x1]
    %v1430 = vld [vmem:[%s15] sm:$0x1]
    %v1431 = vsel %vm97, %v1427, 0.0
    %1432 = vadd.xlane.f32.xlu0 %v1431
    %v1433 = vpop.xlane.xlu0 %1432
    %v1434 = vsel %vm97, %v1428, 0.0
    %1435 = vadd.xlane.f32.xlu0 %v1434
    %v1436 = vpop.xlane.xlu0 %1435
    %v1437 = vmul.f32 %v1433, %v104
    %v1438 = vmul.f32 %v1436, %v104
    %v1439 = vsub.f32 %v1427, %v1437
    %v1440 = vsub.f32 %v1428, %v1438
    %v1441 = vmul.f32 %v1439, %v1439
    %v1442 = vmul.f32 %v1440, %v1440
    %v1443 = vsel %vm97, %v1441, 0.0
    %1444 = vadd.xlane.f32.xlu0 %v1443
    %v1445 = vpop.xlane.xlu0 %1444
    %v1446 = vsel %vm97, %v1442, 0.0
    %1447 = vadd.xlane.f32.xlu0 %v1446
    %v1448 = vpop.xlane.xlu0 %1447
    %v1449 = vmul.f32 %v1445, %v104
    %v1450 = vmul.f32 %v1448, %v104
    %v1451 = vadd.f32 %v1449, 1e-05
    %v1452 = vadd.f32 %v1450, 1e-05
    %v1453 = vrsqrt.pop %v1451
    %v1454 = vrsqrt.pop %v1452
    %v1455 = vmul.f32 %v1439, %v1453
    %v1456 = vmul.f32 %v1440, %v1454
    %v1458 = vlaneseq
    %v1459 = vshrl.u32 %v1458, 7
    %v1460 = vsub.s32 0, %v1459
    %v1461 = vrot.slane %v1429, %v1460
    %v1463 = vmul.f32 %v1455, %v1461
    %v1464 = vmul.f32 %v1456, %v1461
    %v1466 = vlaneseq
    %v1467 = vshrl.u32 %v1466, 7
    %v1468 = vsub.s32 0, %v1467
    %v1469 = vrot.slane %v1430, %v1468
    %v1471 = vadd.f32 %v1463, %v1469
    %v1472 = vadd.f32 %v1464, %v1469
    %s1473 = scalar_lea.vmem [#allocation2], 32
    %v1474 = vld [vmem:[%s1473] sm:$0xff]
    %v1475 = vld [vmem:[%s1473 + $0x8] sm:$0xff]
    %v1476 = vld [vmem:[%s1473 + $0x10] sm:$0xff]
    %v1477 = vld [vmem:[%s1473 + $0x18] sm:$0xff]
    %s1478 = scalar_lea.vmem %s5, 1
    %v1479 = vld [vmem:[%s1478] sm:$0x1]
    %v1481 = vlaneseq
    %v1482 = vshrl.u32 %v1481, 7
    %v1483 = vsub.s32 0, %v1482
    %v1484 = vrot.slane %v1479, %v1483
    %v1487 = vsel %vm97, %v1471, 0
    %v1490 = vsel %vm97, %v1472, 0
    %1492 = vmatprep.subr.mxu0 0.0
    %1493 = vmatpush1.msra.mxu0 %v1474
    %1494 = vmatprep.subr.mxu0 0.0
    %1495 = vmatpush1.msra.mxu0 %v1475
    %1496 = vmatprep.subr.mxu0 0.0
    %1497 = vmatpush1.msra.mxu0 %v1476
    %1498 = vmatprep.subr.mxu0 0.0
    %1499 = vmatpush1.msra.mxu0 %v1477
    %1500 = vmatprep.subr.mxu0 0.0
    %1501 = vmatpush1.msra.mxu0 0.0
    %1502 = vmatprep.subr.mxu0 0.0
    %1503 = vmatpush1.msra.mxu0 0.0
    %1504 = vmatprep.subr.mxu0 0.0
    %1505 = vmatpush1.msra.mxu0 0.0
    %1506 = vmatprep.subr.mxu0 0.0
    %1507 = vmatpush1.msra.mxu0 0.0
    %1508 = vmatprep.subr.mxu0 0.0
    %1509 = vmatpush1.msra.mxu0 0.0
    %1510 = vmatprep.subr.mxu0 0.0
    %1511 = vmatpush1.msra.mxu0 0.0
    %1512 = vmatprep.subr.mxu0 0.0
    %1513 = vmatpush1.msra.mxu0 0.0
    %1514 = vmatprep.subr.mxu0 0.0
    %1515 = vmatpush1.msra.mxu0 0.0
    %1516 = vmatprep.subr.mxu0 0.0
    %1517 = vmatpush1.msra.mxu0 0.0
    %1518 = vmatprep.subr.mxu0 0.0
    %1519 = vmatpush1.msra.mxu0 0.0
    %1520 = vmatprep.subr.mxu0 0.0
    %1521 = vmatpush1.msra.mxu0 0.0
    %1522 = vmatprep.subr.mxu0 0.0
    %1523 = vmatpush1.msra.mxu0 0.0
    %1524 = vmatprep.subr.mxu0 0.0
    %1525 = vmatpush1.msra.mxu0 0.0
    %1526 = vmatprep.subr.mxu0 0.0
    %1527 = vmatpush1.msra.mxu0 0.0
    %1528 = vmatprep.subr.mxu0 0.0
    %1529 = vmatpush1.msra.mxu0 0.0
    %1530 = vmatprep.subr.mxu0 0.0
    %1531 = vmatpush1.msra.mxu0 0.0
    %1532 = vmatprep.subr.mxu0 0.0
    %1533 = vmatpush1.msra.mxu0 0.0
    %1534 = vmatprep.subr.mxu0 0.0
    %1535 = vmatpush1.msra.mxu0 0.0
    %1536 = vmatprep.subr.mxu0 0.0
    %1537 = vmatpush1.msra.mxu0 0.0
    %1538 = vmatprep.subr.mxu0 0.0
    %1539 = vmatpush1.msra.mxu0 0.0
    %1540 = vmatprep.subr.mxu0 0.0
    %1541 = vmatpush1.msra.mxu0 0.0
    %1542 = vmatprep.subr.mxu0 0.0
    %1543 = vmatpush1.msra.mxu0 0.0
    %1544 = vmatprep.subr.mxu0 0.0
    %1545 = vmatpush1.msra.mxu0 0.0
    %1546 = vmatprep.subr.mxu0 0.0
    %1547 = vmatpush1.msra.mxu0 0.0
    %1548 = vmatprep.subr.mxu0 0.0
    %1549 = vmatpush1.msra.mxu0 0.0
    %1550 = vmatprep.subr.mxu0 0.0
    %1551 = vmatpush1.msra.mxu0 0.0
    %1552 = vmatprep.subr.mxu0 0.0
    %1553 = vmatpush1.msra.mxu0 0.0
    %1554 = vmatprep.subr.mxu0 0.0
    %1555 = vmatpush1.msra.mxu0 0.0
    %1556 = vmatprep.mubr.f32.mxu0 0.0
    %1557 = vmatmul.mubr.f32.gmra.mrb[0].mxu0 %v1487
    %v1558 = vpop.f32.mrb[0].mxu0
    %v1559 = vadd.f32 %v1484, %v1558
    %v1560 = vpop.f32.mrb[0].mxu0
    %1561 = vmatprep.mubr.f32.mxu0 0.0
    %1562 = vmatmul.mubr.f32.gmra.mrb[0].mxu0 %v1490
    %v1563 = vpop.f32.mrb[0].mxu0
    %v1564 = vadd.f32 %v1484, %v1563
    %v1565 = vpop.f32.mrb[0].mxu0
    %1566 = vdwg.mxu0
    %1569 = vrot.lane.b32.xlu0 %v1559, 96
    %v1570 = vpop.permute.xlu0 %1569
    %1571 = vrot.lane.b32.xlu0 %v1564, 96
    %v1572 = vpop.permute.xlu0 %1571
    %v1573 = vsel %vm241, %v1559, 0
    %v1575 = vsel %vm241, %v1564, 0
    %v1577 = vsel %vm241, %v1570, 0
    %v1579 = vsel %vm241, %v1572, 0
    %1581 = vmatprep.subr.mxu0 0.0
    %1582 = vmatpush1.xpose.msra.mxu0 %v1577
    %1583 = vmatprep.subr.mxu0 0.0
    %1584 = vmatpush1.xpose.msra.mxu0 %v1579
    %1585 = vmatprep.subr.mxu0 0.0
    %1586 = vmatpush1.xpose.msra.mxu0 0.0
    %1587 = vmatprep.subr.mxu0 0.0
    %1588 = vmatpush1.xpose.msra.mxu0 0.0
    %1589 = vmatprep.subr.mxu0 0.0
    %1590 = vmatpush1.xpose.msra.mxu0 0.0
    %1591 = vmatprep.subr.mxu0 0.0
    %1592 = vmatpush1.xpose.msra.mxu0 0.0
    %1593 = vmatprep.subr.mxu0 0.0
    %1594 = vmatpush1.xpose.msra.mxu0 0.0
    %1595 = vmatprep.subr.mxu0 0.0
    %1596 = vmatpush1.xpose.msra.mxu0 0.0
    %1597 = vmatprep.subr.mxu0 0.0
    %1598 = vmatpush1.xpose.msra.mxu0 0.0
    %1599 = vmatprep.subr.mxu0 0.0
    %1600 = vmatpush1.xpose.msra.mxu0 0.0
    %1601 = vmatprep.subr.mxu0 0.0
    %1602 = vmatpush1.xpose.msra.mxu0 0.0
    %1603 = vmatprep.subr.mxu0 0.0
    %1604 = vmatpush1.xpose.msra.mxu0 0.0
    %1605 = vmatprep.subr.mxu0 0.0
    %1606 = vmatpush1.xpose.msra.mxu0 0.0
    %1607 = vmatprep.subr.mxu0 0.0
    %1608 = vmatpush1.xpose.msra.mxu0 0.0
    %1609 = vmatprep.subr.mxu0 0.0
    %1610 = vmatpush1.xpose.msra.mxu0 0.0
    %1611 = vmatprep.subr.mxu0 0.0
    %1612 = vmatpush1.xpose.msra.mxu0 0.0
    %1613 = vmatprep.subr.mxu0 0.0
    %1614 = vmatpush1.xpose.msra.mxu0 0.0
    %1615 = vmatprep.subr.mxu0 0.0
    %1616 = vmatpush1.xpose.msra.mxu0 0.0
    %1617 = vmatprep.subr.mxu0 0.0
    %1618 = vmatpush1.xpose.msra.mxu0 0.0
    %1619 = vmatprep.subr.mxu0 0.0
    %1620 = vmatpush1.xpose.msra.mxu0 0.0
    %1621 = vmatprep.subr.mxu0 0.0
    %1622 = vmatpush1.xpose.msra.mxu0 0.0
    %1623 = vmatprep.subr.mxu0 0.0
    %1624 = vmatpush1.xpose.msra.mxu0 0.0
    %1625 = vmatprep.subr.mxu0 0.0
    %1626 = vmatpush1.xpose.msra.mxu0 0.0
    %1627 = vmatprep.subr.mxu0 0.0
    %1628 = vmatpush1.xpose.msra.mxu0 0.0
    %1629 = vmatprep.subr.mxu0 0.0
    %1630 = vmatpush1.xpose.msra.mxu0 0.0
    %1631 = vmatprep.subr.mxu0 0.0
    %1632 = vmatpush1.xpose.msra.mxu0 0.0
    %1633 = vmatprep.subr.mxu0 0.0
    %1634 = vmatpush1.xpose.msra.mxu0 0.0
    %1635 = vmatprep.subr.mxu0 0.0
    %1636 = vmatpush1.xpose.msra.mxu0 0.0
    %1637 = vmatprep.subr.mxu0 0.0
    %1638 = vmatpush1.xpose.msra.mxu0 0.0
    %1639 = vmatprep.subr.mxu0 0.0
    %1640 = vmatpush1.xpose.msra.mxu0 0.0
    %1641 = vmatprep.subr.mxu0 0.0
    %1642 = vmatpush1.xpose.msra.mxu0 0.0
    %1643 = vmatprep.subr.mxu0 0.0
    %1644 = vmatpush1.xpose.msra.mxu0 0.0
    %1645 = vmatprep.mubr.f32.mxu0 0.0
    %1646 = vmatmul.mubr.f32.gmra.mrb[0].mxu0 %v1573
    %v1647 = vpop.f32.mrb[0].mxu0
    %v1648 = vadd.f32 0.0, %v1647
    %v1649 = vpop.f32.mrb[0].mxu0
    %1650 = vmatprep.mubr.f32.mxu0 0.0
    %1651 = vmatmul.mubr.f32.gmra.mrb[0].mxu0 %v1575
    %v1652 = vpop.f32.mrb[0].mxu0
    %v1653 = vadd.f32 0.0, %v1652
    %v1654 = vpop.f32.mrb[0].mxu0
    %1655 = vdwg.mxu0
    %v1656 = vmul.f32 %v1648, 0.35355338
    %v1657 = vmul.f32 %v1653, 0.35355338
    %v1658 = vadd.f32 %v1656, %v141
    %v1659 = vadd.f32 %v1657, %v142
    %v1660 = vsel %vm329, %v1658, -inf
    %1661 = vmax.xlane.f32.xlu0 %v1660
    %v1662 = vpop.xlane.xlu0 %1661
    %v1663 = vsel %vm329, %v1659, -inf
    %1664 = vmax.xlane.f32.xlu0 %v1663
    %v1665 = vpop.xlane.xlu0 %1664
    %v1666 = vsub.f32 %v1658, %v1662
    %v1667 = vsub.f32 %v1659, %v1665
    %v1668 = vmul.f32 %v1666, 1.442695
    %v1669 = vpow.pop %v1668
    %v1670 = vmul.f32 %v1667, 1.442695
    %v1671 = vpow.pop %v1670
    %v1672 = vsel %vm329, %v1669, 0.0
    %1673 = vadd.xlane.f32.xlu0 %v1672
    %v1674 = vpop.xlane.xlu0 %1673
    %v1675 = vsel %vm329, %v1671, 0.0
    %1676 = vadd.xlane.f32.xlu0 %v1675
    %v1677 = vpop.xlane.xlu0 %1676
    %v1678 = vrcp.pop %v1674
    %v1679 = vrcp.pop %v1677
    %v1680 = vmul.f32 %v1669, %v1678
    %v1681 = vmul.f32 %v1671, %v1679
    %1682 = vrot.lane.b32.xlu0 %v1559, 64
    %v1683 = vpop.permute.xlu0 %1682
    %1684 = vrot.lane.b32.xlu0 %v1564, 64
    %v1685 = vpop.permute.xlu0 %1684
    %v1689 = vsel %vm329, %v1680, 0
    %v1692 = vsel %vm329, %v1681, 0
    %1694 = vmatprep.subr.mxu0 0.0
    %1695 = vmatpush1.msra.mxu0 %v1683
    %1696 = vmatprep.subr.mxu0 0.0
    %1697 = vmatpush1.msra.mxu0 %v1685
    %1698 = vmatprep.subr.mxu0 0.0
    %1699 = vmatpush1.msra.mxu0 0.0
    %1700 = vmatprep.subr.mxu0 0.0
    %1701 = vmatpush1.msra.mxu0 0.0
    %1702 = vmatprep.subr.mxu0 0.0
    %1703 = vmatpush1.msra.mxu0 0.0
    %1704 = vmatprep.subr.mxu0 0.0
    %1705 = vmatpush1.msra.mxu0 0.0
    %1706 = vmatprep.subr.mxu0 0.0
    %1707 = vmatpush1.msra.mxu0 0.0
    %1708 = vmatprep.subr.mxu0 0.0
    %1709 = vmatpush1.msra.mxu0 0.0
    %1710 = vmatprep.subr.mxu0 0.0
    %1711 = vmatpush1.msra.mxu0 0.0
    %1712 = vmatprep.subr.mxu0 0.0
    %1713 = vmatpush1.msra.mxu0 0.0
    %1714 = vmatprep.subr.mxu0 0.0
    %1715 = vmatpush1.msra.mxu0 0.0
    %1716 = vmatprep.subr.mxu0 0.0
    %1717 = vmatpush1.msra.mxu0 0.0
    %1718 = vmatprep.subr.mxu0 0.0
    %1719 = vmatpush1.msra.mxu0 0.0
    %1720 = vmatprep.subr.mxu0 0.0
    %1721 = vmatpush1.msra.mxu0 0.0
    %1722 = vmatprep.subr.mxu0 0.0
    %1723 = vmatpush1.msra.mxu0 0.0
    %1724 = vmatprep.subr.mxu0 0.0
    %1725 = vmatpush1.msra.mxu0 0.0
    %1726 = vmatprep.subr.mxu0 0.0
    %1727 = vmatpush1.msra.mxu0 0.0
    %1728 = vmatprep.subr.mxu0 0.0
    %1729 = vmatpush1.msra.mxu0 0.0
    %1730 = vmatprep.subr.mxu0 0.0
    %1731 = vmatpush1.msra.mxu0 0.0
    %1732 = vmatprep.subr.mxu0 0.0
    %1733 = vmatpush1.msra.mxu0 0.0
    %1734 = vmatprep.subr.mxu0 0.0
    %1735 = vmatpush1.msra.mxu0 0.0
    %1736 = vmatprep.subr.mxu0 0.0
    %1737 = vmatpush1.msra.mxu0 0.0
    %1738 = vmatprep.subr.mxu0 0.0
    %1739 = vmatpush1.msra.mxu0 0.0
    %1740 = vmatprep.subr.mxu0 0.0
    %1741 = vmatpush1.msra.mxu0 0.0
    %1742 = vmatprep.subr.mxu0 0.0
    %1743 = vmatpush1.msra.mxu0 0.0
    %1744 = vmatprep.subr.mxu0 0.0
    %1745 = vmatpush1.msra.mxu0 0.0
    %1746 = vmatprep.subr.mxu0 0.0
    %1747 = vmatpush1.msra.mxu0 0.0
    %1748 = vmatprep.subr.mxu0 0.0
    %1749 = vmatpush1.msra.mxu0 0.0
    %1750 = vmatprep.subr.mxu0 0.0
    %1751 = vmatpush1.msra.mxu0 0.0
    %1752 = vmatprep.subr.mxu0 0.0
    %1753 = vmatpush1.msra.mxu0 0.0
    %1754 = vmatprep.subr.mxu0 0.0
    %1755 = vmatpush1.msra.mxu0 0.0
    %1756 = vmatprep.subr.mxu0 0.0
    %1757 = vmatpush1.msra.mxu0 0.0
    %1758 = vmatprep.mubr.f32.mxu0 0.0
    %1759 = vmatmul.mubr.f32.gmra.mrb[0].mxu0 %v1689
    %v1760 = vpop.f32.mrb[0].mxu0
    %v1761 = vadd.f32 0.0, %v1760
    %v1762 = vpop.f32.mrb[0].mxu0
    %1763 = vmatprep.mubr.f32.mxu0 0.0
    %1764 = vmatmul.mubr.f32.gmra.mrb[0].mxu0 %v1692
    %v1765 = vpop.f32.mrb[0].mxu0
    %v1766 = vadd.f32 0.0, %v1765
    %v1767 = vpop.f32.mrb[0].mxu0
    %1768 = vdwg.mxu0
    %1769 = vrot.lane.b32.xlu0 %v1559, 120
    %v1770 = vpop.permute.xlu0 %1769
    %1771 = vrot.lane.b32.xlu0 %v1564, 120
    %v1772 = vpop.permute.xlu0 %1771
    %1773 = vrot.lane.b32.xlu0 %v1559, 88
    %v1774 = vpop.permute.xlu0 %1773
    %1775 = vrot.lane.b32.xlu0 %v1564, 88
    %v1776 = vpop.permute.xlu0 %1775
    %v1777 = vsel %vm241, %v1770, 0
    %v1779 = vsel %vm241, %v1772, 0
    %v1781 = vsel %vm241, %v1774, 0
    %v1783 = vsel %vm241, %v1776, 0
    %1785 = vmatprep.subr.mxu0 0.0
    %1786 = vmatpush1.xpose.msra.mxu0 %v1781
    %1787 = vmatprep.subr.mxu0 0.0
    %1788 = vmatpush1.xpose.msra.mxu0 %v1783
    %1789 = vmatprep.subr.mxu0 0.0
    %1790 = vmatpush1.xpose.msra.mxu0 0.0
    %1791 = vmatprep.subr.mxu0 0.0
    %1792 = vmatpush1.xpose.msra.mxu0 0.0
    %1793 = vmatprep.subr.mxu0 0.0
    %1794 = vmatpush1.xpose.msra.mxu0 0.0
    %1795 = vmatprep.subr.mxu0 0.0
    %1796 = vmatpush1.xpose.msra.mxu0 0.0
    %1797 = vmatprep.subr.mxu0 0.0
    %1798 = vmatpush1.xpose.msra.mxu0 0.0
    %1799 = vmatprep.subr.mxu0 0.0
    %1800 = vmatpush1.xpose.msra.mxu0 0.0
    %1801 = vmatprep.subr.mxu0 0.0
    %1802 = vmatpush1.xpose.msra.mxu0 0.0
    %1803 = vmatprep.subr.mxu0 0.0
    %1804 = vmatpush1.xpose.msra.mxu0 0.0
    %1805 = vmatprep.subr.mxu0 0.0
    %1806 = vmatpush1.xpose.msra.mxu0 0.0
    %1807 = vmatprep.subr.mxu0 0.0
    %1808 = vmatpush1.xpose.msra.mxu0 0.0
    %1809 = vmatprep.subr.mxu0 0.0
    %1810 = vmatpush1.xpose.msra.mxu0 0.0
    %1811 = vmatprep.subr.mxu0 0.0
    %1812 = vmatpush1.xpose.msra.mxu0 0.0
    %1813 = vmatprep.subr.mxu0 0.0
    %1814 = vmatpush1.xpose.msra.mxu0 0.0
    %1815 = vmatprep.subr.mxu0 0.0
    %1816 = vmatpush1.xpose.msra.mxu0 0.0
    %1817 = vmatprep.subr.mxu0 0.0
    %1818 = vmatpush1.xpose.msra.mxu0 0.0
    %1819 = vmatprep.subr.mxu0 0.0
    %1820 = vmatpush1.xpose.msra.mxu0 0.0
    %1821 = vmatprep.subr.mxu0 0.0
    %1822 = vmatpush1.xpose.msra.mxu0 0.0
    %1823 = vmatprep.subr.mxu0 0.0
    %1824 = vmatpush1.xpose.msra.mxu0 0.0
    %1825 = vmatprep.subr.mxu0 0.0
    %1826 = vmatpush1.xpose.msra.mxu0 0.0
    %1827 = vmatprep.subr.mxu0 0.0
    %1828 = vmatpush1.xpose.msra.mxu0 0.0
    %1829 = vmatprep.subr.mxu0 0.0
    %1830 = vmatpush1.xpose.msra.mxu0 0.0
    %1831 = vmatprep.subr.mxu0 0.0
    %1832 = vmatpush1.xpose.msra.mxu0 0.0
    %1833 = vmatprep.subr.mxu0 0.0
    %1834 = vmatpush1.xpose.msra.mxu0 0.0
    %1835 = vmatprep.subr.mxu0 0.0
    %1836 = vmatpush1.xpose.msra.mxu0 0.0
    %1837 = vmatprep.subr.mxu0 0.0
    %1838 = vmatpush1.xpose.msra.mxu0 0.0
    %1839 = vmatprep.subr.mxu0 0.0
    %1840 = vmatpush1.xpose.msra.mxu0 0.0
    %1841 = vmatprep.subr.mxu0 0.0
    %1842 = vmatpush1.xpose.msra.mxu0 0.0
    %1843 = vmatprep.subr.mxu0 0.0
    %1844 = vmatpush1.xpose.msra.mxu0 0.0
    %1845 = vmatprep.subr.mxu0 0.0
    %1846 = vmatpush1.xpose.msra.mxu0 0.0
    %1847 = vmatprep.subr.mxu0 0.0
    %1848 = vmatpush1.xpose.msra.mxu0 0.0
    %1849 = vmatprep.mubr.f32.mxu0 0.0
    %1850 = vmatmul.mubr.f32.gmra.mrb[0].mxu0 %v1777
    %v1851 = vpop.f32.mrb[0].mxu0
    %v1852 = vadd.f32 0.0, %v1851
    %v1853 = vpop.f32.mrb[0].mxu0
    %1854 = vmatprep.mubr.f32.mxu0 0.0
    %1855 = vmatmul.mubr.f32.gmra.mrb[0].mxu0 %v1779
    %v1856 = vpop.f32.mrb[0].mxu0
    %v1857 = vadd.f32 0.0, %v1856
    %v1858 = vpop.f32.mrb[0].mxu0
    %1859 = vdwg.mxu0
    %v1860 = vmul.f32 %v1852, 0.35355338
    %v1861 = vmul.f32 %v1857, 0.35355338
    %v1862 = vadd.f32 %v1860, %v141
    %v1863 = vadd.f32 %v1861, %v142
    %v1864 = vsel %vm329, %v1862, -inf
    %1865 = vmax.xlane.f32.xlu0 %v1864
    %v1866 = vpop.xlane.xlu0 %1865
    %v1867 = vsel %vm329, %v1863, -inf
    %1868 = vmax.xlane.f32.xlu0 %v1867
    %v1869 = vpop.xlane.xlu0 %1868
    %v1870 = vsub.f32 %v1862, %v1866
    %v1871 = vsub.f32 %v1863, %v1869
    %v1872 = vmul.f32 %v1870, 1.442695
    %v1873 = vpow.pop %v1872
    %v1874 = vmul.f32 %v1871, 1.442695
    %v1875 = vpow.pop %v1874
    %v1876 = vsel %vm329, %v1873, 0.0
    %1877 = vadd.xlane.f32.xlu0 %v1876
    %v1878 = vpop.xlane.xlu0 %1877
    %v1879 = vsel %vm329, %v1875, 0.0
    %1880 = vadd.xlane.f32.xlu0 %v1879
    %v1881 = vpop.xlane.xlu0 %1880
    %v1882 = vrcp.pop %v1878
    %v1883 = vrcp.pop %v1881
    %v1884 = vmul.f32 %v1873, %v1882
    %v1885 = vmul.f32 %v1875, %v1883
    %1886 = vrot.lane.b32.xlu0 %v1559, 56
    %v1887 = vpop.permute.xlu0 %1886
    %1888 = vrot.lane.b32.xlu0 %v1564, 56
    %v1889 = vpop.permute.xlu0 %1888
    %v1893 = vsel %vm329, %v1884, 0
    %v1896 = vsel %vm329, %v1885, 0
    %1898 = vmatprep.subr.mxu0 0.0
    %1899 = vmatpush1.msra.mxu0 %v1887
    %1900 = vmatprep.subr.mxu0 0.0
    %1901 = vmatpush1.msra.mxu0 %v1889
    %1902 = vmatprep.subr.mxu0 0.0
    %1903 = vmatpush1.msra.mxu0 0.0
    %1904 = vmatprep.subr.mxu0 0.0
    %1905 = vmatpush1.msra.mxu0 0.0
    %1906 = vmatprep.subr.mxu0 0.0
    %1907 = vmatpush1.msra.mxu0 0.0
    %1908 = vmatprep.subr.mxu0 0.0
    %1909 = vmatpush1.msra.mxu0 0.0
    %1910 = vmatprep.subr.mxu0 0.0
    %1911 = vmatpush1.msra.mxu0 0.0
    %1912 = vmatprep.subr.mxu0 0.0
    %1913 = vmatpush1.msra.mxu0 0.0
    %1914 = vmatprep.subr.mxu0 0.0
    %1915 = vmatpush1.msra.mxu0 0.0
    %1916 = vmatprep.subr.mxu0 0.0
    %1917 = vmatpush1.msra.mxu0 0.0
    %1918 = vmatprep.subr.mxu0 0.0
    %1919 = vmatpush1.msra.mxu0 0.0
    %1920 = vmatprep.subr.mxu0 0.0
    %1921 = vmatpush1.msra.mxu0 0.0
    %1922 = vmatprep.subr.mxu0 0.0
    %1923 = vmatpush1.msra.mxu0 0.0
    %1924 = vmatprep.subr.mxu0 0.0
    %1925 = vmatpush1.msra.mxu0 0.0
    %1926 = vmatprep.subr.mxu0 0.0
    %1927 = vmatpush1.msra.mxu0 0.0
    %1928 = vmatprep.subr.mxu0 0.0
    %1929 = vmatpush1.msra.mxu0 0.0
    %1930 = vmatprep.subr.mxu0 0.0
    %1931 = vmatpush1.msra.mxu0 0.0
    %1932 = vmatprep.subr.mxu0 0.0
    %1933 = vmatpush1.msra.mxu0 0.0
    %1934 = vmatprep.subr.mxu0 0.0
    %1935 = vmatpush1.msra.mxu0 0.0
    %1936 = vmatprep.subr.mxu0 0.0
    %1937 = vmatpush1.msra.mxu0 0.0
    %1938 = vmatprep.subr.mxu0 0.0
    %1939 = vmatpush1.msra.mxu0 0.0
    %1940 = vmatprep.subr.mxu0 0.0
    %1941 = vmatpush1.msra.mxu0 0.0
    %1942 = vmatprep.subr.mxu0 0.0
    %1943 = vmatpush1.msra.mxu0 0.0
    %1944 = vmatprep.subr.mxu0 0.0
    %1945 = vmatpush1.msra.mxu0 0.0
    %1946 = vmatprep.subr.mxu0 0.0
    %1947 = vmatpush1.msra.mxu0 0.0
    %1948 = vmatprep.subr.mxu0 0.0
    %1949 = vmatpush1.msra.mxu0 0.0
    %1950 = vmatprep.subr.mxu0 0.0
    %1951 = vmatpush1.msra.mxu0 0.0
    %1952 = vmatprep.subr.mxu0 0.0
    %1953 = vmatpush1.msra.mxu0 0.0
    %1954 = vmatprep.subr.mxu0 0.0
    %1955 = vmatpush1.msra.mxu0 0.0
    %1956 = vmatprep.subr.mxu0 0.0
    %1957 = vmatpush1.msra.mxu0 0.0
    %1958 = vmatprep.subr.mxu0 0.0
    %1959 = vmatpush1.msra.mxu0 0.0
    %1960 = vmatprep.subr.mxu0 0.0
    %1961 = vmatpush1.msra.mxu0 0.0
    %1962 = vmatprep.mubr.f32.mxu0 0.0
    %1963 = vmatmul.mubr.f32.gmra.mrb[0].mxu0 %v1893
    %v1964 = vpop.f32.mrb[0].mxu0
    %v1965 = vadd.f32 0.0, %v1964
    %v1966 = vpop.f32.mrb[0].mxu0
    %1967 = vmatprep.mubr.f32.mxu0 0.0
    %1968 = vmatmul.mubr.f32.gmra.mrb[0].mxu0 %v1896
    %v1969 = vpop.f32.mrb[0].mxu0
    %v1970 = vadd.f32 0.0, %v1969
    %v1971 = vpop.f32.mrb[0].mxu0
    %1972 = vdwg.mxu0
    %1973 = vrot.lane.b32.xlu0 %v1559, 112
    %v1974 = vpop.permute.xlu0 %1973
    %1975 = vrot.lane.b32.xlu0 %v1564, 112
    %v1976 = vpop.permute.xlu0 %1975
    %1977 = vrot.lane.b32.xlu0 %v1559, 80
    %v1978 = vpop.permute.xlu0 %1977
    %1979 = vrot.lane.b32.xlu0 %v1564, 80
    %v1980 = vpop.permute.xlu0 %1979
    %v1981 = vsel %vm241, %v1974, 0
    %v1983 = vsel %vm241, %v1976, 0
    %v1985 = vsel %vm241, %v1978, 0
    %v1987 = vsel %vm241, %v1980, 0
    %1989 = vmatprep.subr.mxu0 0.0
    %1990 = vmatpush1.xpose.msra.mxu0 %v1985
    %1991 = vmatprep.subr.mxu0 0.0
    %1992 = vmatpush1.xpose.msra.mxu0 %v1987
    %1993 = vmatprep.subr.mxu0 0.0
    %1994 = vmatpush1.xpose.msra.mxu0 0.0
    %1995 = vmatprep.subr.mxu0 0.0
    %1996 = vmatpush1.xpose.msra.mxu0 0.0
    %1997 = vmatprep.subr.mxu0 0.0
    %1998 = vmatpush1.xpose.msra.mxu0 0.0
    %1999 = vmatprep.subr.mxu0 0.0
    %2000 = vmatpush1.xpose.msra.mxu0 0.0
    %2001 = vmatprep.subr.mxu0 0.0
    %2002 = vmatpush1.xpose.msra.mxu0 0.0
    %2003 = vmatprep.subr.mxu0 0.0
    %2004 = vmatpush1.xpose.msra.mxu0 0.0
    %2005 = vmatprep.subr.mxu0 0.0
    %2006 = vmatpush1.xpose.msra.mxu0 0.0
    %2007 = vmatprep.subr.mxu0 0.0
    %2008 = vmatpush1.xpose.msra.mxu0 0.0
    %2009 = vmatprep.subr.mxu0 0.0
    %2010 = vmatpush1.xpose.msra.mxu0 0.0
    %2011 = vmatprep.subr.mxu0 0.0
    %2012 = vmatpush1.xpose.msra.mxu0 0.0
    %2013 = vmatprep.subr.mxu0 0.0
    %2014 = vmatpush1.xpose.msra.mxu0 0.0
    %2015 = vmatprep.subr.mxu0 0.0
    %2016 = vmatpush1.xpose.msra.mxu0 0.0
    %2017 = vmatprep.subr.mxu0 0.0
    %2018 = vmatpush1.xpose.msra.mxu0 0.0
    %2019 = vmatprep.subr.mxu0 0.0
    %2020 = vmatpush1.xpose.msra.mxu0 0.0
    %2021 = vmatprep.subr.mxu0 0.0
    %2022 = vmatpush1.xpose.msra.mxu0 0.0
    %2023 = vmatprep.subr.mxu0 0.0
    %2024 = vmatpush1.xpose.msra.mxu0 0.0
    %2025 = vmatprep.subr.mxu0 0.0
    %2026 = vmatpush1.xpose.msra.mxu0 0.0
    %2027 = vmatprep.subr.mxu0 0.0
    %2028 = vmatpush1.xpose.msra.mxu0 0.0
    %2029 = vmatprep.subr.mxu0 0.0
    %2030 = vmatpush1.xpose.msra.mxu0 0.0
    %2031 = vmatprep.subr.mxu0 0.0
    %2032 = vmatpush1.xpose.msra.mxu0 0.0
    %2033 = vmatprep.subr.mxu0 0.0
    %2034 = vmatpush1.xpose.msra.mxu0 0.0
    %2035 = vmatprep.subr.mxu0 0.0
    %2036 = vmatpush1.xpose.msra.mxu0 0.0
    %2037 = vmatprep.subr.mxu0 0.0
    %2038 = vmatpush1.xpose.msra.mxu0 0.0
    %2039 = vmatprep.subr.mxu0 0.0
    %2040 = vmatpush1.xpose.msra.mxu0 0.0
    %2041 = vmatprep.subr.mxu0 0.0
    %2042 = vmatpush1.xpose.msra.mxu0 0.0
    %2043 = vmatprep.subr.mxu0 0.0
    %2044 = vmatpush1.xpose.msra.mxu0 0.0
    %2045 = vmatprep.subr.mxu0 0.0
    %2046 = vmatpush1.xpose.msra.mxu0 0.0
    %2047 = vmatprep.subr.mxu0 0.0
    %2048 = vmatpush1.xpose.msra.mxu0 0.0
    %2049 = vmatprep.subr.mxu0 0.0
    %2050 = vmatpush1.xpose.msra.mxu0 0.0
    %2051 = vmatprep.subr.mxu0 0.0
    %2052 = vmatpush1.xpose.msra.mxu0 0.0
    %2053 = vmatprep.mubr.f32.mxu0 0.0
    %2054 = vmatmul.mubr.f32.gmra.mrb[0].mxu0 %v1981
    %v2055 = vpop.f32.mrb[0].mxu0
    %v2056 = vadd.f32 0.0, %v2055
    %v2057 = vpop.f32.mrb[0].mxu0
    %2058 = vmatprep.mubr.f32.mxu0 0.0
    %2059 = vmatmul.mubr.f32.gmra.mrb[0].mxu0 %v1983
    %v2060 = vpop.f32.mrb[0].mxu0
    %v2061 = vadd.f32 0.0, %v2060
    %v2062 = vpop.f32.mrb[0].mxu0
    %2063 = vdwg.mxu0
    %v2064 = vmul.f32 %v2056, 0.35355338
    %v2065 = vmul.f32 %v2061, 0.35355338
    %v2066 = vadd.f32 %v2064, %v141
    %v2067 = vadd.f32 %v2065, %v142
    %v2068 = vsel %vm329, %v2066, -inf
    %2069 = vmax.xlane.f32.xlu0 %v2068
    %v2070 = vpop.xlane.xlu0 %2069
    %v2071 = vsel %vm329, %v2067, -inf
    %2072 = vmax.xlane.f32.xlu0 %v2071
    %v2073 = vpop.xlane.xlu0 %2072
    %v2074 = vsub.f32 %v2066, %v2070
    %v2075 = vsub.f32 %v2067, %v2073
    %v2076 = vmul.f32 %v2074, 1.442695
    %v2077 = vpow.pop %v2076
    %v2078 = vmul.f32 %v2075, 1.442695
    %v2079 = vpow.pop %v2078
    %v2080 = vsel %vm329, %v2077, 0.0
    %2081 = vadd.xlane.f32.xlu0 %v2080
    %v2082 = vpop.xlane.xlu0 %2081
    %v2083 = vsel %vm329, %v2079, 0.0
    %2084 = vadd.xlane.f32.xlu0 %v2083
    %v2085 = vpop.xlane.xlu0 %2084
    %v2086 = vrcp.pop %v2082
    %v2087 = vrcp.pop %v2085
    %v2088 = vmul.f32 %v2077, %v2086
    %v2089 = vmul.f32 %v2079, %v2087
    %2090 = vrot.lane.b32.xlu0 %v1559, 48
    %v2091 = vpop.permute.xlu0 %2090
    %2092 = vrot.lane.b32.xlu0 %v1564, 48
    %v2093 = vpop.permute.xlu0 %2092
    %v2097 = vsel %vm329, %v2088, 0
    %v2100 = vsel %vm329, %v2089, 0
    %2102 = vmatprep.subr.mxu0 0.0
    %2103 = vmatpush1.msra.mxu0 %v2091
    %2104 = vmatprep.subr.mxu0 0.0
    %2105 = vmatpush1.msra.mxu0 %v2093
    %2106 = vmatprep.subr.mxu0 0.0
    %2107 = vmatpush1.msra.mxu0 0.0
    %2108 = vmatprep.subr.mxu0 0.0
    %2109 = vmatpush1.msra.mxu0 0.0
    %2110 = vmatprep.subr.mxu0 0.0
    %2111 = vmatpush1.msra.mxu0 0.0
    %2112 = vmatprep.subr.mxu0 0.0
    %2113 = vmatpush1.msra.mxu0 0.0
    %2114 = vmatprep.subr.mxu0 0.0
    %2115 = vmatpush1.msra.mxu0 0.0
    %2116 = vmatprep.subr.mxu0 0.0
    %2117 = vmatpush1.msra.mxu0 0.0
    %2118 = vmatprep.subr.mxu0 0.0
    %2119 = vmatpush1.msra.mxu0 0.0
    %2120 = vmatprep.subr.mxu0 0.0
    %2121 = vmatpush1.msra.mxu0 0.0
    %2122 = vmatprep.subr.mxu0 0.0
    %2123 = vmatpush1.msra.mxu0 0.0
    %2124 = vmatprep.subr.mxu0 0.0
    %2125 = vmatpush1.msra.mxu0 0.0
    %2126 = vmatprep.subr.mxu0 0.0
    %2127 = vmatpush1.msra.mxu0 0.0
    %2128 = vmatprep.subr.mxu0 0.0
    %2129 = vmatpush1.msra.mxu0 0.0
    %2130 = vmatprep.subr.mxu0 0.0
    %2131 = vmatpush1.msra.mxu0 0.0
    %2132 = vmatprep.subr.mxu0 0.0
    %2133 = vmatpush1.msra.mxu0 0.0
    %2134 = vmatprep.subr.mxu0 0.0
    %2135 = vmatpush1.msra.mxu0 0.0
    %2136 = vmatprep.subr.mxu0 0.0
    %2137 = vmatpush1.msra.mxu0 0.0
    %2138 = vmatprep.subr.mxu0 0.0
    %2139 = vmatpush1.msra.mxu0 0.0
    %2140 = vmatprep.subr.mxu0 0.0
    %2141 = vmatpush1.msra.mxu0 0.0
    %2142 = vmatprep.subr.mxu0 0.0
    %2143 = vmatpush1.msra.mxu0 0.0
    %2144 = vmatprep.subr.mxu0 0.0
    %2145 = vmatpush1.msra.mxu0 0.0
    %2146 = vmatprep.subr.mxu0 0.0
    %2147 = vmatpush1.msra.mxu0 0.0
    %2148 = vmatprep.subr.mxu0 0.0
    %2149 = vmatpush1.msra.mxu0 0.0
    %2150 = vmatprep.subr.mxu0 0.0
    %2151 = vmatpush1.msra.mxu0 0.0
    %2152 = vmatprep.subr.mxu0 0.0
    %2153 = vmatpush1.msra.mxu0 0.0
    %2154 = vmatprep.subr.mxu0 0.0
    %2155 = vmatpush1.msra.mxu0 0.0
    %2156 = vmatprep.subr.mxu0 0.0
    %2157 = vmatpush1.msra.mxu0 0.0
    %2158 = vmatprep.subr.mxu0 0.0
    %2159 = vmatpush1.msra.mxu0 0.0
    %2160 = vmatprep.subr.mxu0 0.0
    %2161 = vmatpush1.msra.mxu0 0.0
    %2162 = vmatprep.subr.mxu0 0.0
    %2163 = vmatpush1.msra.mxu0 0.0
    %2164 = vmatprep.subr.mxu0 0.0
    %2165 = vmatpush1.msra.mxu0 0.0
    %2166 = vmatprep.mubr.f32.mxu0 0.0
    %2167 = vmatmul.mubr.f32.gmra.mrb[0].mxu0 %v2097
    %v2168 = vpop.f32.mrb[0].mxu0
    %v2169 = vadd.f32 0.0, %v2168
    %v2170 = vpop.f32.mrb[0].mxu0
    %2171 = vmatprep.mubr.f32.mxu0 0.0
    %2172 = vmatmul.mubr.f32.gmra.mrb[0].mxu0 %v2100
    %v2173 = vpop.f32.mrb[0].mxu0
    %v2174 = vadd.f32 0.0, %v2173
    %v2175 = vpop.f32.mrb[0].mxu0
    %2176 = vdwg.mxu0
    %2177 = vrot.lane.b32.xlu0 %v1559, 104
    %v2178 = vpop.permute.xlu0 %2177
    %2179 = vrot.lane.b32.xlu0 %v1564, 104
    %v2180 = vpop.permute.xlu0 %2179
    %2181 = vrot.lane.b32.xlu0 %v1559, 72
    %v2182 = vpop.permute.xlu0 %2181
    %2183 = vrot.lane.b32.xlu0 %v1564, 72
    %v2184 = vpop.permute.xlu0 %2183
    %v2185 = vsel %vm241, %v2178, 0
    %v2187 = vsel %vm241, %v2180, 0
    %v2189 = vsel %vm241, %v2182, 0
    %v2191 = vsel %vm241, %v2184, 0
    %2193 = vmatprep.subr.mxu0 0.0
    %2194 = vmatpush1.xpose.msra.mxu0 %v2189
    %2195 = vmatprep.subr.mxu0 0.0
    %2196 = vmatpush1.xpose.msra.mxu0 %v2191
    %2197 = vmatprep.subr.mxu0 0.0
    %2198 = vmatpush1.xpose.msra.mxu0 0.0
    %2199 = vmatprep.subr.mxu0 0.0
    %2200 = vmatpush1.xpose.msra.mxu0 0.0
    %2201 = vmatprep.subr.mxu0 0.0
    %2202 = vmatpush1.xpose.msra.mxu0 0.0
    %2203 = vmatprep.subr.mxu0 0.0
    %2204 = vmatpush1.xpose.msra.mxu0 0.0
    %2205 = vmatprep.subr.mxu0 0.0
    %2206 = vmatpush1.xpose.msra.mxu0 0.0
    %2207 = vmatprep.subr.mxu0 0.0
    %2208 = vmatpush1.xpose.msra.mxu0 0.0
    %2209 = vmatprep.subr.mxu0 0.0
    %2210 = vmatpush1.xpose.msra.mxu0 0.0
    %2211 = vmatprep.subr.mxu0 0.0
    %2212 = vmatpush1.xpose.msra.mxu0 0.0
    %2213 = vmatprep.subr.mxu0 0.0
    %2214 = vmatpush1.xpose.msra.mxu0 0.0
    %2215 = vmatprep.subr.mxu0 0.0
    %2216 = vmatpush1.xpose.msra.mxu0 0.0
    %2217 = vmatprep.subr.mxu0 0.0
    %2218 = vmatpush1.xpose.msra.mxu0 0.0
    %2219 = vmatprep.subr.mxu0 0.0
    %2220 = vmatpush1.xpose.msra.mxu0 0.0
    %2221 = vmatprep.subr.mxu0 0.0
    %2222 = vmatpush1.xpose.msra.mxu0 0.0
    %2223 = vmatprep.subr.mxu0 0.0
    %2224 = vmatpush1.xpose.msra.mxu0 0.0
    %2225 = vmatprep.subr.mxu0 0.0
    %2226 = vmatpush1.xpose.msra.mxu0 0.0
    %2227 = vmatprep.subr.mxu0 0.0
    %2228 = vmatpush1.xpose.msra.mxu0 0.0
    %2229 = vmatprep.subr.mxu0 0.0
    %2230 = vmatpush1.xpose.msra.mxu0 0.0
    %2231 = vmatprep.subr.mxu0 0.0
    %2232 = vmatpush1.xpose.msra.mxu0 0.0
    %2233 = vmatprep.subr.mxu0 0.0
    %2234 = vmatpush1.xpose.msra.mxu0 0.0
    %2235 = vmatprep.subr.mxu0 0.0
    %2236 = vmatpush1.xpose.msra.mxu0 0.0
    %2237 = vmatprep.subr.mxu0 0.0
    %2238 = vmatpush1.xpose.msra.mxu0 0.0
    %2239 = vmatprep.subr.mxu0 0.0
    %2240 = vmatpush1.xpose.msra.mxu0 0.0
    %2241 = vmatprep.subr.mxu0 0.0
    %2242 = vmatpush1.xpose.msra.mxu0 0.0
    %2243 = vmatprep.subr.mxu0 0.0
    %2244 = vmatpush1.xpose.msra.mxu0 0.0
    %2245 = vmatprep.subr.mxu0 0.0
    %2246 = vmatpush1.xpose.msra.mxu0 0.0
    %2247 = vmatprep.subr.mxu0 0.0
    %2248 = vmatpush1.xpose.msra.mxu0 0.0
    %2249 = vmatprep.subr.mxu0 0.0
    %2250 = vmatpush1.xpose.msra.mxu0 0.0
    %2251 = vmatprep.subr.mxu0 0.0
    %2252 = vmatpush1.xpose.msra.mxu0 0.0
    %2253 = vmatprep.subr.mxu0 0.0
    %2254 = vmatpush1.xpose.msra.mxu0 0.0
    %2255 = vmatprep.subr.mxu0 0.0
    %2256 = vmatpush1.xpose.msra.mxu0 0.0
    %2257 = vmatprep.mubr.f32.mxu0 0.0
    %2258 = vmatmul.mubr.f32.gmra.mrb[0].mxu0 %v2185
    %v2259 = vpop.f32.mrb[0].mxu0
    %v2260 = vadd.f32 0.0, %v2259
    %v2261 = vpop.f32.mrb[0].mxu0
    %2262 = vmatprep.mubr.f32.mxu0 0.0
    %2263 = vmatmul.mubr.f32.gmra.mrb[0].mxu0 %v2187
    %v2264 = vpop.f32.mrb[0].mxu0
    %v2265 = vadd.f32 0.0, %v2264
    %v2266 = vpop.f32.mrb[0].mxu0
    %2267 = vdwg.mxu0
    %v2268 = vmul.f32 %v2260, 0.35355338
    %v2269 = vmul.f32 %v2265, 0.35355338
    %v2270 = vadd.f32 %v2268, %v141
    %v2271 = vadd.f32 %v2269, %v142
    %v2272 = vsel %vm329, %v2270, -inf
    %2273 = vmax.xlane.f32.xlu0 %v2272
    %v2274 = vpop.xlane.xlu0 %2273
    %v2275 = vsel %vm329, %v2271, -inf
    %2276 = vmax.xlane.f32.xlu0 %v2275
    %v2277 = vpop.xlane.xlu0 %2276
    %v2278 = vsub.f32 %v2270, %v2274
    %v2279 = vsub.f32 %v2271, %v2277
    %v2280 = vmul.f32 %v2278, 1.442695
    %v2281 = vpow.pop %v2280
    %v2282 = vmul.f32 %v2279, 1.442695
    %v2283 = vpow.pop %v2282
    %v2284 = vsel %vm329, %v2281, 0.0
    %2285 = vadd.xlane.f32.xlu0 %v2284
    %v2286 = vpop.xlane.xlu0 %2285
    %v2287 = vsel %vm329, %v2283, 0.0
    %2288 = vadd.xlane.f32.xlu0 %v2287
    %v2289 = vpop.xlane.xlu0 %2288
    %v2290 = vrcp.pop %v2286
    %v2291 = vrcp.pop %v2289
    %v2292 = vmul.f32 %v2281, %v2290
    %v2293 = vmul.f32 %v2283, %v2291
    %2294 = vrot.lane.b32.xlu0 %v1559, 40
    %v2295 = vpop.permute.xlu0 %2294
    %2296 = vrot.lane.b32.xlu0 %v1564, 40
    %v2297 = vpop.permute.xlu0 %2296
    %v2301 = vsel %vm329, %v2292, 0
    %v2304 = vsel %vm329, %v2293, 0
    %2306 = vmatprep.subr.mxu0 0.0
    %2307 = vmatpush1.msra.mxu0 %v2295
    %2308 = vmatprep.subr.mxu0 0.0
    %2309 = vmatpush1.msra.mxu0 %v2297
    %2310 = vmatprep.subr.mxu0 0.0
    %2311 = vmatpush1.msra.mxu0 0.0
    %2312 = vmatprep.subr.mxu0 0.0
    %2313 = vmatpush1.msra.mxu0 0.0
    %2314 = vmatprep.subr.mxu0 0.0
    %2315 = vmatpush1.msra.mxu0 0.0
    %2316 = vmatprep.subr.mxu0 0.0
    %2317 = vmatpush1.msra.mxu0 0.0
    %2318 = vmatprep.subr.mxu0 0.0
    %2319 = vmatpush1.msra.mxu0 0.0
    %2320 = vmatprep.subr.mxu0 0.0
    %2321 = vmatpush1.msra.mxu0 0.0
    %2322 = vmatprep.subr.mxu0 0.0
    %2323 = vmatpush1.msra.mxu0 0.0
    %2324 = vmatprep.subr.mxu0 0.0
    %2325 = vmatpush1.msra.mxu0 0.0
    %2326 = vmatprep.subr.mxu0 0.0
    %2327 = vmatpush1.msra.mxu0 0.0
    %2328 = vmatprep.subr.mxu0 0.0
    %2329 = vmatpush1.msra.mxu0 0.0
    %2330 = vmatprep.subr.mxu0 0.0
    %2331 = vmatpush1.msra.mxu0 0.0
    %2332 = vmatprep.subr.mxu0 0.0
    %2333 = vmatpush1.msra.mxu0 0.0
    %2334 = vmatprep.subr.mxu0 0.0
    %2335 = vmatpush1.msra.mxu0 0.0
    %2336 = vmatprep.subr.mxu0 0.0
    %2337 = vmatpush1.msra.mxu0 0.0
    %2338 = vmatprep.subr.mxu0 0.0
    %2339 = vmatpush1.msra.mxu0 0.0
    %2340 = vmatprep.subr.mxu0 0.0
    %2341 = vmatpush1.msra.mxu0 0.0
    %2342 = vmatprep.subr.mxu0 0.0
    %2343 = vmatpush1.msra.mxu0 0.0
    %2344 = vmatprep.subr.mxu0 0.0
    %2345 = vmatpush1.msra.mxu0 0.0
    %2346 = vmatprep.subr.mxu0 0.0
    %2347 = vmatpush1.msra.mxu0 0.0
    %2348 = vmatprep.subr.mxu0 0.0
    %2349 = vmatpush1.msra.mxu0 0.0
    %2350 = vmatprep.subr.mxu0 0.0
    %2351 = vmatpush1.msra.mxu0 0.0
    %2352 = vmatprep.subr.mxu0 0.0
    %2353 = vmatpush1.msra.mxu0 0.0
    %2354 = vmatprep.subr.mxu0 0.0
    %2355 = vmatpush1.msra.mxu0 0.0
    %2356 = vmatprep.subr.mxu0 0.0
    %2357 = vmatpush1.msra.mxu0 0.0
    %2358 = vmatprep.subr.mxu0 0.0
    %2359 = vmatpush1.msra.mxu0 0.0
    %2360 = vmatprep.subr.mxu0 0.0
    %2361 = vmatpush1.msra.mxu0 0.0
    %2362 = vmatprep.subr.mxu0 0.0
    %2363 = vmatpush1.msra.mxu0 0.0
    %2364 = vmatprep.subr.mxu0 0.0
    %2365 = vmatpush1.msra.mxu0 0.0
    %2366 = vmatprep.subr.mxu0 0.0
    %2367 = vmatpush1.msra.mxu0 0.0
    %2368 = vmatprep.subr.mxu0 0.0
    %2369 = vmatpush1.msra.mxu0 0.0
    %2370 = vmatprep.mubr.f32.mxu0 0.0
    %2371 = vmatmul.mubr.f32.gmra.mrb[0].mxu0 %v2301
    %v2372 = vpop.f32.mrb[0].mxu0
    %v2373 = vadd.f32 0.0, %v2372
    %v2374 = vpop.f32.mrb[0].mxu0
    %2375 = vmatprep.mubr.f32.mxu0 0.0
    %2376 = vmatmul.mubr.f32.gmra.mrb[0].mxu0 %v2304
    %v2377 = vpop.f32.mrb[0].mxu0
    %v2378 = vadd.f32 0.0, %v2377
    %v2379 = vpop.f32.mrb[0].mxu0
    %2380 = vdwg.mxu0
    %2383 = vrot.lane.b32.xlu0 %v1965, 8
    %v2384 = vpop.permute.xlu0 %2383
    %2385 = vrot.lane.b32.xlu0 %v1970, 8
    %v2386 = vpop.permute.xlu0 %2385
    %2391 = vrot.lane.b32.xlu0 %v2169, 16
    %v2392 = vpop.permute.xlu0 %2391
    %2393 = vrot.lane.b32.xlu0 %v2174, 16
    %v2394 = vpop.permute.xlu0 %2393
    %2399 = vrot.lane.b32.xlu0 %v2373, 24
    %v2400 = vpop.permute.xlu0 %2399
    %2401 = vrot.lane.b32.xlu0 %v2378, 24
    %v2402 = vpop.permute.xlu0 %2401
    %v2405 = vsel %vm241, %v1761, %v2384
    %v2406 = vsel %vm241, %v1766, %v2386
    %v2407 = vsel %vm329, %v2405, %v2392
    %v2408 = vsel %vm329, %v2406, %v2394
    %v2409 = vsel %vm1079, %v2407, %v2400
    %v2410 = vsel %vm1079, %v2408, %v2402
    %s2411 = scalar_lea.vmem %s6, 32
    %v2412 = vld [vmem:[%s2411] sm:$0xff]
    %v2413 = vld [vmem:[%s2411 + $0x8] sm:$0xff]
    %v2414 = vld [vmem:[%s2411 + $0x10] sm:$0xff]
    %v2415 = vld [vmem:[%s2411 + $0x18] sm:$0xff]
    %s2416 = scalar_lea.vmem %s7, 1
    %v2417 = vld [vmem:[%s2416] sm:$0x1]
    %v2419 = vlaneseq
    %v2420 = vshrl.u32 %v2419, 7
    %v2421 = vsub.s32 0, %v2420
    %v2422 = vrot.slane %v2417, %v2421
    %v2425 = vsel %vm97, %v2409, 0
    %v2428 = vsel %vm97, %v2410, 0
    %2430 = vmatprep.subr.mxu0 0.0
    %2431 = vmatpush1.msra.mxu0 %v2412
    %2432 = vmatprep.subr.mxu0 0.0
    %2433 = vmatpush1.msra.mxu0 %v2413
    %2434 = vmatprep.subr.mxu0 0.0
    %2435 = vmatpush1.msra.mxu0 %v2414
    %2436 = vmatprep.subr.mxu0 0.0
    %2437 = vmatpush1.msra.mxu0 %v2415
    %2438 = vmatprep.subr.mxu0 0.0
    %2439 = vmatpush1.msra.mxu0 0.0
    %2440 = vmatprep.subr.mxu0 0.0
    %2441 = vmatpush1.msra.mxu0 0.0
    %2442 = vmatprep.subr.mxu0 0.0
    %2443 = vmatpush1.msra.mxu0 0.0
    %2444 = vmatprep.subr.mxu0 0.0
    %2445 = vmatpush1.msra.mxu0 0.0
    %2446 = vmatprep.subr.mxu0 0.0
    %2447 = vmatpush1.msra.mxu0 0.0
    %2448 = vmatprep.subr.mxu0 0.0
    %2449 = vmatpush1.msra.mxu0 0.0
    %2450 = vmatprep.subr.mxu0 0.0
    %2451 = vmatpush1.msra.mxu0 0.0
    %2452 = vmatprep.subr.mxu0 0.0
    %2453 = vmatpush1.msra.mxu0 0.0
    %2454 = vmatprep.subr.mxu0 0.0
    %2455 = vmatpush1.msra.mxu0 0.0
    %2456 = vmatprep.subr.mxu0 0.0
    %2457 = vmatpush1.msra.mxu0 0.0
    %2458 = vmatprep.subr.mxu0 0.0
    %2459 = vmatpush1.msra.mxu0 0.0
    %2460 = vmatprep.subr.mxu0 0.0
    %2461 = vmatpush1.msra.mxu0 0.0
    %2462 = vmatprep.subr.mxu0 0.0
    %2463 = vmatpush1.msra.mxu0 0.0
    %2464 = vmatprep.subr.mxu0 0.0
    %2465 = vmatpush1.msra.mxu0 0.0
    %2466 = vmatprep.subr.mxu0 0.0
    %2467 = vmatpush1.msra.mxu0 0.0
    %2468 = vmatprep.subr.mxu0 0.0
    %2469 = vmatpush1.msra.mxu0 0.0
    %2470 = vmatprep.subr.mxu0 0.0
    %2471 = vmatpush1.msra.mxu0 0.0
    %2472 = vmatprep.subr.mxu0 0.0
    %2473 = vmatpush1.msra.mxu0 0.0
    %2474 = vmatprep.subr.mxu0 0.0
    %2475 = vmatpush1.msra.mxu0 0.0
    %2476 = vmatprep.subr.mxu0 0.0
    %2477 = vmatpush1.msra.mxu0 0.0
    %2478 = vmatprep.subr.mxu0 0.0
    %2479 = vmatpush1.msra.mxu0 0.0
    %2480 = vmatprep.subr.mxu0 0.0
    %2481 = vmatpush1.msra.mxu0 0.0
    %2482 = vmatprep.subr.mxu0 0.0
    %2483 = vmatpush1.msra.mxu0 0.0
    %2484 = vmatprep.subr.mxu0 0.0
    %2485 = vmatpush1.msra.mxu0 0.0
    %2486 = vmatprep.subr.mxu0 0.0
    %2487 = vmatpush1.msra.mxu0 0.0
    %2488 = vmatprep.subr.mxu0 0.0
    %2489 = vmatpush1.msra.mxu0 0.0
    %2490 = vmatprep.subr.mxu0 0.0
    %2491 = vmatpush1.msra.mxu0 0.0
    %2492 = vmatprep.subr.mxu0 0.0
    %2493 = vmatpush1.msra.mxu0 0.0
    %2494 = vmatprep.mubr.f32.mxu0 0.0
    %2495 = vmatmul.mubr.f32.gmra.mrb[0].mxu0 %v2425
    %v2496 = vpop.f32.mrb[0].mxu0
    %v2497 = vadd.f32 %v2422, %v2496
    %v2498 = vpop.f32.mrb[0].mxu0
    %2499 = vmatprep.mubr.f32.mxu0 0.0
    %2500 = vmatmul.mubr.f32.gmra.mrb[0].mxu0 %v2428
    %v2501 = vpop.f32.mrb[0].mxu0
    %v2502 = vadd.f32 %v2422, %v2501
    %v2503 = vpop.f32.mrb[0].mxu0
    %2504 = vdwg.mxu0
    %v2505 = vadd.f32 %v1471, %v2497
    %v2506 = vadd.f32 %v1472, %v2502
    %s2507 = scalar_lea.vmem %s8, 1
    %v2508 = vld [vmem:[%s2507] sm:$0x1]
    %s2509 = scalar_lea.vmem %s9, 1
    %v2510 = vld [vmem:[%s2509] sm:$0x1]
    %v2511 = vsel %vm97, %v2505, 0.0
    %2512 = vadd.xlane.f32.xlu0 %v2511
    %v2513 = vpop.xlane.xlu0 %2512
    %v2514 = vsel %vm97, %v2506, 0.0
    %2515 = vadd.xlane.f32.xlu0 %v2514
    %v2516 = vpop.xlane.xlu0 %2515
    %v2517 = vmul.f32 %v2513, %v104
    %v2518 = vmul.f32 %v2516, %v104
    %v2519 = vsub.f32 %v2505, %v2517
    %v2520 = vsub.f32 %v2506, %v2518
    %v2521 = vmul.f32 %v2519, %v2519
    %v2522 = vmul.f32 %v2520, %v2520
    %v2523 = vsel %vm97, %v2521, 0.0
    %2524 = vadd.xlane.f32.xlu0 %v2523
    %v2525 = vpop.xlane.xlu0 %2524
    %v2526 = vsel %vm97, %v2522, 0.0
    %2527 = vadd.xlane.f32.xlu0 %v2526
    %v2528 = vpop.xlane.xlu0 %2527
    %v2529 = vmul.f32 %v2525, %v104
    %v2530 = vmul.f32 %v2528, %v104
    %v2531 = vadd.f32 %v2529, 1e-05
    %v2532 = vadd.f32 %v2530, 1e-05
    %v2533 = vrsqrt.pop %v2531
    %v2534 = vrsqrt.pop %v2532
    %v2535 = vmul.f32 %v2519, %v2533
    %v2536 = vmul.f32 %v2520, %v2534
    %v2538 = vlaneseq
    %v2539 = vshrl.u32 %v2538, 7
    %v2540 = vsub.s32 0, %v2539
    %v2541 = vrot.slane %v2508, %v2540
    %v2543 = vmul.f32 %v2535, %v2541
    %v2544 = vmul.f32 %v2536, %v2541
    %v2546 = vlaneseq
    %v2547 = vshrl.u32 %v2546, 7
    %v2548 = vsub.s32 0, %v2547
    %v2549 = vrot.slane %v2510, %v2548
    %v2551 = vadd.f32 %v2543, %v2549
    %v2552 = vadd.f32 %v2544, %v2549
    %s2553 = scalar_lea.vmem %s10, 32
    %v2554 = vld [vmem:[%s2553] sm:$0xff]
    %v2555 = vld [vmem:[%s2553 + $0x8] sm:$0xff]
    %v2556 = vld [vmem:[%s2553 + $0x10] sm:$0xff]
    %v2557 = vld [vmem:[%s2553 + $0x18] sm:$0xff]
    %s2558 = scalar_lea.vmem %s11, 1
    %v2559 = vld [vmem:[%s2558] sm:$0x1]
    %v2561 = vlaneseq
    %v2562 = vshrl.u32 %v2561, 7
    %v2563 = vsub.s32 0, %v2562
    %v2564 = vrot.slane %v2559, %v2563
    %v2567 = vsel %vm97, %v2551, 0
    %v2570 = vsel %vm97, %v2552, 0
    %2572 = vmatprep.subr.mxu0 0.0
    %2573 = vmatpush1.msra.mxu0 %v2554
    %2574 = vmatprep.subr.mxu0 0.0
    %2575 = vmatpush1.msra.mxu0 %v2555
    %2576 = vmatprep.subr.mxu0 0.0
    %2577 = vmatpush1.msra.mxu0 %v2556
    %2578 = vmatprep.subr.mxu0 0.0
    %2579 = vmatpush1.msra.mxu0 %v2557
    %2580 = vmatprep.subr.mxu0 0.0
    %2581 = vmatpush1.msra.mxu0 0.0
    %2582 = vmatprep.subr.mxu0 0.0
    %2583 = vmatpush1.msra.mxu0 0.0
    %2584 = vmatprep.subr.mxu0 0.0
    %2585 = vmatpush1.msra.mxu0 0.0
    %2586 = vmatprep.subr.mxu0 0.0
    %2587 = vmatpush1.msra.mxu0 0.0
    %2588 = vmatprep.subr.mxu0 0.0
    %2589 = vmatpush1.msra.mxu0 0.0
    %2590 = vmatprep.subr.mxu0 0.0
    %2591 = vmatpush1.msra.mxu0 0.0
    %2592 = vmatprep.subr.mxu0 0.0
    %2593 = vmatpush1.msra.mxu0 0.0
    %2594 = vmatprep.subr.mxu0 0.0
    %2595 = vmatpush1.msra.mxu0 0.0
    %2596 = vmatprep.subr.mxu0 0.0
    %2597 = vmatpush1.msra.mxu0 0.0
    %2598 = vmatprep.subr.mxu0 0.0
    %2599 = vmatpush1.msra.mxu0 0.0
    %2600 = vmatprep.subr.mxu0 0.0
    %2601 = vmatpush1.msra.mxu0 0.0
    %2602 = vmatprep.subr.mxu0 0.0
    %2603 = vmatpush1.msra.mxu0 0.0
    %2604 = vmatprep.subr.mxu0 0.0
    %2605 = vmatpush1.msra.mxu0 0.0
    %2606 = vmatprep.subr.mxu0 0.0
    %2607 = vmatpush1.msra.mxu0 0.0
    %2608 = vmatprep.subr.mxu0 0.0
    %2609 = vmatpush1.msra.mxu0 0.0
    %2610 = vmatprep.subr.mxu0 0.0
    %2611 = vmatpush1.msra.mxu0 0.0
    %2612 = vmatprep.subr.mxu0 0.0
    %2613 = vmatpush1.msra.mxu0 0.0
    %2614 = vmatprep.subr.mxu0 0.0
    %2615 = vmatpush1.msra.mxu0 0.0
    %2616 = vmatprep.subr.mxu0 0.0
    %2617 = vmatpush1.msra.mxu0 0.0
    %2618 = vmatprep.subr.mxu0 0.0
    %2619 = vmatpush1.msra.mxu0 0.0
    %2620 = vmatprep.subr.mxu0 0.0
    %2621 = vmatpush1.msra.mxu0 0.0
    %2622 = vmatprep.subr.mxu0 0.0
    %2623 = vmatpush1.msra.mxu0 0.0
    %2624 = vmatprep.subr.mxu0 0.0
    %2625 = vmatpush1.msra.mxu0 0.0
    %2626 = vmatprep.subr.mxu0 0.0
    %2627 = vmatpush1.msra.mxu0 0.0
    %2628 = vmatprep.subr.mxu0 0.0
    %2629 = vmatpush1.msra.mxu0 0.0
    %2630 = vmatprep.subr.mxu0 0.0
    %2631 = vmatpush1.msra.mxu0 0.0
    %2632 = vmatprep.subr.mxu0 0.0
    %2633 = vmatpush1.msra.mxu0 0.0
    %2634 = vmatprep.subr.mxu0 0.0
    %2635 = vmatpush1.msra.mxu0 0.0
    %2636 = vmatprep.mubr.f32.mxu0 0.0
    %2637 = vmatmul.mubr.f32.gmra.mrb[0].mxu0 %v2567
    %v2638 = vpop.f32.mrb[0].mxu0
    %v2639 = vadd.f32 %v2564, %v2638
    %v2640 = vpop.f32.mrb[0].mxu0
    %2641 = vmatprep.mubr.f32.mxu0 0.0
    %2642 = vmatmul.mubr.f32.gmra.mrb[0].mxu0 %v2570
    %v2643 = vpop.f32.mrb[0].mxu0
    %v2644 = vadd.f32 %v2564, %v2643
    %v2645 = vpop.f32.mrb[0].mxu0
    %2646 = vdwg.mxu0
    %v2647 = vmul.f32 %v2639, %v2639
    %v2648 = vmul.f32 %v2644, %v2644
    %v2649 = vmul.f32 %v2639, %v2647
    %v2650 = vmul.f32 %v2644, %v2648
    %v2651 = vmul.f32 %v2649, 0.044715
    %v2652 = vmul.f32 %v2650, 0.044715
    %v2653 = vadd.f32 %v2639, %v2651
    %v2654 = vadd.f32 %v2644, %v2652
    %v2655 = vmul.f32 %v2653, 0.7978846
    %v2656 = vmul.f32 %v2654, 0.7978846
    %v2657 = vtanh.pop %v2655
    %v2658 = vtanh.pop %v2656
    %v2659 = vadd.f32 %v2657, 1.0
    %v2660 = vadd.f32 %v2658, 1.0
    %v2661 = vmul.f32 %v2659, 0.5
    %v2662 = vmul.f32 %v2660, 0.5
    %v2663 = vmul.f32 %v2639, %v2661
    %v2664 = vmul.f32 %v2644, %v2662
    %s2665 = scalar_lea.vmem %s12, 64
    %v2666 = vld [vmem:[%s2665] sm:$0xff]
    %v2667 = vld [vmem:[%s2665 + $0x8] sm:$0xff]
    %v2668 = vld [vmem:[%s2665 + $0x10] sm:$0xff]
    %v2669 = vld [vmem:[%s2665 + $0x18] sm:$0xff]
    %v2670 = vld [vmem:[%s2665 + $0x20] sm:$0xff]
    %v2671 = vld [vmem:[%s2665 + $0x28] sm:$0xff]
    %v2672 = vld [vmem:[%s2665 + $0x30] sm:$0xff]
    %v2673 = vld [vmem:[%s2665 + $0x38] sm:$0xff]
    %s2674 = scalar_lea.vmem %s13, 1
    %v2675 = vld [vmem:[%s2674] sm:$0x1]
    %v2677 = vlaneseq
    %v2678 = vshrl.u32 %v2677, 7
    %v2679 = vsub.s32 0, %v2678
    %v2680 = vrot.slane %v2675, %v2679
    %v2683 = vsel %vm1345, %v2663, 0
    %v2686 = vsel %vm1345, %v2664, 0
    %2688 = vmatprep.subr.mxu0 0.0
    %2689 = vmatpush1.msra.mxu0 %v2666
    %2690 = vmatprep.subr.mxu0 0.0
    %2691 = vmatpush1.msra.mxu0 %v2667
    %2692 = vmatprep.subr.mxu0 0.0
    %2693 = vmatpush1.msra.mxu0 %v2668
    %2694 = vmatprep.subr.mxu0 0.0
    %2695 = vmatpush1.msra.mxu0 %v2669
    %2696 = vmatprep.subr.mxu0 0.0
    %2697 = vmatpush1.msra.mxu0 %v2670
    %2698 = vmatprep.subr.mxu0 0.0
    %2699 = vmatpush1.msra.mxu0 %v2671
    %2700 = vmatprep.subr.mxu0 0.0
    %2701 = vmatpush1.msra.mxu0 %v2672
    %2702 = vmatprep.subr.mxu0 0.0
    %2703 = vmatpush1.msra.mxu0 %v2673
    %2704 = vmatprep.subr.mxu0 0.0
    %2705 = vmatpush1.msra.mxu0 0.0
    %2706 = vmatprep.subr.mxu0 0.0
    %2707 = vmatpush1.msra.mxu0 0.0
    %2708 = vmatprep.subr.mxu0 0.0
    %2709 = vmatpush1.msra.mxu0 0.0
    %2710 = vmatprep.subr.mxu0 0.0
    %2711 = vmatpush1.msra.mxu0 0.0
    %2712 = vmatprep.subr.mxu0 0.0
    %2713 = vmatpush1.msra.mxu0 0.0
    %2714 = vmatprep.subr.mxu0 0.0
    %2715 = vmatpush1.msra.mxu0 0.0
    %2716 = vmatprep.subr.mxu0 0.0
    %2717 = vmatpush1.msra.mxu0 0.0
    %2718 = vmatprep.subr.mxu0 0.0
    %2719 = vmatpush1.msra.mxu0 0.0
    %2720 = vmatprep.subr.mxu0 0.0
    %2721 = vmatpush1.msra.mxu0 0.0
    %2722 = vmatprep.subr.mxu0 0.0
    %2723 = vmatpush1.msra.mxu0 0.0
    %2724 = vmatprep.subr.mxu0 0.0
    %2725 = vmatpush1.msra.mxu0 0.0
    %2726 = vmatprep.subr.mxu0 0.0
    %2727 = vmatpush1.msra.mxu0 0.0
    %2728 = vmatprep.subr.mxu0 0.0
    %2729 = vmatpush1.msra.mxu0 0.0
    %2730 = vmatprep.subr.mxu0 0.0
    %2731 = vmatpush1.msra.mxu0 0.0
    %2732 = vmatprep.subr.mxu0 0.0
    %2733 = vmatpush1.msra.mxu0 0.0
    %2734 = vmatprep.subr.mxu0 0.0
    %2735 = vmatpush1.msra.mxu0 0.0
    %2736 = vmatprep.subr.mxu0 0.0
    %2737 = vmatpush1.msra.mxu0 0.0
    %2738 = vmatprep.subr.mxu0 0.0
    %2739 = vmatpush1.msra.mxu0 0.0
    %2740 = vmatprep.subr.mxu0 0.0
    %2741 = vmatpush1.msra.mxu0 0.0
    %2742 = vmatprep.subr.mxu0 0.0
    %2743 = vmatpush1.msra.mxu0 0.0
    %2744 = vmatprep.subr.mxu0 0.0
    %2745 = vmatpush1.msra.mxu0 0.0
    %2746 = vmatprep.subr.mxu0 0.0
    %2747 = vmatpush1.msra.mxu0 0.0
    %2748 = vmatprep.subr.mxu0 0.0
    %2749 = vmatpush1.msra.mxu0 0.0
    %2750 = vmatprep.subr.mxu0 0.0
    %2751 = vmatpush1.msra.mxu0 0.0
    %2752 = vmatprep.mubr.f32.mxu0 0.0
    %2753 = vmatmul.mubr.f32.gmra.mrb[0].mxu0 %v2683
    %v2754 = vpop.f32.mrb[0].mxu0
    %v2755 = vadd.f32 %v2680, %v2754
    %v2756 = vpop.f32.mrb[0].mxu0
    %2757 = vmatprep.mubr.f32.mxu0 0.0
    %2758 = vmatmul.mubr.f32.gmra.mrb[0].mxu0 %v2686
    %v2759 = vpop.f32.mrb[0].mxu0
    %v2760 = vadd.f32 %v2680, %v2759
    %v2761 = vpop.f32.mrb[0].mxu0
    %2762 = vdwg.mxu0
    %v2763 = vadd.f32 %v2551, %v2755
    %v2764 = vadd.f32 %v2552, %v2760
    %s2765 = scalar_lea.vmem %s14, 1
    %v2766 = vld [vmem:[%s2765] sm:$0x1]
    %s2767 = scalar_lea.vmem %s15, 1
    %v2768 = vld [vmem:[%s2767] sm:$0x1]
    %v2769 = vsel %vm97, %v2763, 0.0
    %2770 = vadd.xlane.f32.xlu0 %v2769
    %v2771 = vpop.xlane.xlu0 %2770
    %v2772 = vsel %vm97, %v2764, 0.0
    %2773 = vadd.xlane.f32.xlu0 %v2772
    %v2774 = vpop.xlane.xlu0 %2773
    %v2775 = vmul.f32 %v2771, %v104
    %v2776 = vmul.f32 %v2774, %v104
    %v2777 = vsub.f32 %v2763, %v2775
    %v2778 = vsub.f32 %v2764, %v2776
    %v2779 = vmul.f32 %v2777, %v2777
    %v2780 = vmul.f32 %v2778, %v2778
    %v2781 = vsel %vm97, %v2779, 0.0
    %2782 = vadd.xlane.f32.xlu0 %v2781
    %v2783 = vpop.xlane.xlu0 %2782
    %v2784 = vsel %vm97, %v2780, 0.0
    %2785 = vadd.xlane.f32.xlu0 %v2784
    %v2786 = vpop.xlane.xlu0 %2785
    %v2787 = vmul.f32 %v2783, %v104
    %v2788 = vmul.f32 %v2786, %v104
    %v2789 = vadd.f32 %v2787, 1e-05
    %v2790 = vadd.f32 %v2788, 1e-05
    %v2791 = vrsqrt.pop %v2789
    %v2792 = vrsqrt.pop %v2790
    %v2793 = vmul.f32 %v2777, %v2791
    %v2794 = vmul.f32 %v2778, %v2792
    %v2796 = vlaneseq
    %v2797 = vshrl.u32 %v2796, 7
    %v2798 = vsub.s32 0, %v2797
    %v2799 = vrot.slane %v2766, %v2798
    %v2801 = vmul.f32 %v2793, %v2799
    %v2802 = vmul.f32 %v2794, %v2799
    %v2804 = vlaneseq
    %v2805 = vshrl.u32 %v2804, 7
    %v2806 = vsub.s32 0, %v2805
    %v2807 = vrot.slane %v2768, %v2806
    %v2809 = vadd.f32 %v2801, %v2807
    %v2810 = vadd.f32 %v2802, %v2807
    %v2811 = vld [vmem:[#allocation4] sm:$0xff]
    %v2812 = vld [vmem:[#allocation4 + $0x8] sm:$0xff]
    %v2813 = vld [vmem:[#allocation4 + $0x10] sm:$0xff]
    %v2814 = vld [vmem:[#allocation4 + $0x18] sm:$0xff]
    %v2815 = vld [vmem:[%s17] sm:$0x1]
    %v2817 = vlaneseq
    %v2818 = vshrl.u32 %v2817, 7
    %v2819 = vsub.s32 0, %v2818
    %v2820 = vrot.slane %v2815, %v2819
    %v2823 = vsel %vm97, %v2809, 0
    %v2826 = vsel %vm97, %v2810, 0
    %2828 = vmatprep.subr.mxu0 0.0
    %2829 = vmatpush1.msra.mxu0 %v2811
    %2830 = vmatprep.subr.mxu0 0.0
    %2831 = vmatpush1.msra.mxu0 %v2812
    %2832 = vmatprep.subr.mxu0 0.0
    %2833 = vmatpush1.msra.mxu0 %v2813
    %2834 = vmatprep.subr.mxu0 0.0
    %2835 = vmatpush1.msra.mxu0 %v2814
    %2836 = vmatprep.subr.mxu0 0.0
    %2837 = vmatpush1.msra.mxu0 0.0
    %2838 = vmatprep.subr.mxu0 0.0
    %2839 = vmatpush1.msra.mxu0 0.0
    %2840 = vmatprep.subr.mxu0 0.0
    %2841 = vmatpush1.msra.mxu0 0.0
    %2842 = vmatprep.subr.mxu0 0.0
    %2843 = vmatpush1.msra.mxu0 0.0
    %2844 = vmatprep.subr.mxu0 0.0
    %2845 = vmatpush1.msra.mxu0 0.0
    %2846 = vmatprep.subr.mxu0 0.0
    %2847 = vmatpush1.msra.mxu0 0.0
    %2848 = vmatprep.subr.mxu0 0.0
    %2849 = vmatpush1.msra.mxu0 0.0
    %2850 = vmatprep.subr.mxu0 0.0
    %2851 = vmatpush1.msra.mxu0 0.0
    %2852 = vmatprep.subr.mxu0 0.0
    %2853 = vmatpush1.msra.mxu0 0.0
    %2854 = vmatprep.subr.mxu0 0.0
    %2855 = vmatpush1.msra.mxu0 0.0
    %2856 = vmatprep.subr.mxu0 0.0
    %2857 = vmatpush1.msra.mxu0 0.0
    %2858 = vmatprep.subr.mxu0 0.0
    %2859 = vmatpush1.msra.mxu0 0.0
    %2860 = vmatprep.subr.mxu0 0.0
    %2861 = vmatpush1.msra.mxu0 0.0
    %2862 = vmatprep.subr.mxu0 0.0
    %2863 = vmatpush1.msra.mxu0 0.0
    %2864 = vmatprep.subr.mxu0 0.0
    %2865 = vmatpush1.msra.mxu0 0.0
    %2866 = vmatprep.subr.mxu0 0.0
    %2867 = vmatpush1.msra.mxu0 0.0
    %2868 = vmatprep.subr.mxu0 0.0
    %2869 = vmatpush1.msra.mxu0 0.0
    %2870 = vmatprep.subr.mxu0 0.0
    %2871 = vmatpush1.msra.mxu0 0.0
    %2872 = vmatprep.subr.mxu0 0.0
    %2873 = vmatpush1.msra.mxu0 0.0
    %2874 = vmatprep.subr.mxu0 0.0
    %2875 = vmatpush1.msra.mxu0 0.0
    %2876 = vmatprep.subr.mxu0 0.0
    %2877 = vmatpush1.msra.mxu0 0.0
    %2878 = vmatprep.subr.mxu0 0.0
    %2879 = vmatpush1.msra.mxu0 0.0
    %2880 = vmatprep.subr.mxu0 0.0
    %2881 = vmatpush1.msra.mxu0 0.0
    %2882 = vmatprep.subr.mxu0 0.0
    %2883 = vmatpush1.msra.mxu0 0.0
    %2884 = vmatprep.subr.mxu0 0.0
    %2885 = vmatpush1.msra.mxu0 0.0
    %2886 = vmatprep.subr.mxu0 0.0
    %2887 = vmatpush1.msra.mxu0 0.0
    %2888 = vmatprep.subr.mxu0 0.0
    %2889 = vmatpush1.msra.mxu0 0.0
    %2890 = vmatprep.subr.mxu0 0.0
    %2891 = vmatpush1.msra.mxu0 0.0
    %2892 = vmatprep.mubr.f32.mxu0 0.0
    %2893 = vmatmul.mubr.f32.gmra.mrb[0].mxu0 %v2823
    %v2894 = vpop.f32.mrb[0].mxu0
    %v2895 = vadd.f32 %v2820, %v2894
    %v2896 = vpop.f32.mrb[0].mxu0
    %2897 = vmatprep.mubr.f32.mxu0 0.0
    %2898 = vmatmul.mubr.f32.gmra.mrb[0].mxu0 %v2826
    %v2899 = vpop.f32.mrb[0].mxu0
    %v2900 = vadd.f32 %v2820, %v2899
    %v2901 = vpop.f32.mrb[0].mxu0
    %2902 = vdwg.mxu0
    %v2903 = vtanh.pop %v2895
    %v2904 = vtanh.pop %v2900
    %v2905 = vld [vmem:[%s18] sm:$0xff]
    %v2906 = vld [vmem:[%s18 + $0x8] sm:$0xff]
    %v2907 = vld [vmem:[%s18 + $0x10] sm:$0xff]
    %v2908 = vld [vmem:[%s18 + $0x18] sm:$0xff]
    %v2909 = vld [vmem:[%s19] sm:$0x1]
    %v2911 = vlaneseq
    %v2912 = vshrl.u32 %v2911, 7
    %v2913 = vsub.s32 0, %v2912
    %v2914 = vrot.slane %v2909, %v2913
    %v2917 = vsel %vm97, %v2903, 0
    %v2920 = vsel %vm97, %v2904, 0
    %2922 = vmatprep.subr.mxu0 0.0
    %2923 = vmatpush1.msra.mxu0 %v2905
    %2924 = vmatprep.subr.mxu0 0.0
    %2925 = vmatpush1.msra.mxu0 %v2906
    %2926 = vmatprep.subr.mxu0 0.0
    %2927 = vmatpush1.msra.mxu0 %v2907
    %2928 = vmatprep.subr.mxu0 0.0
    %2929 = vmatpush1.msra.mxu0 %v2908
    %2930 = vmatprep.subr.mxu0 0.0
    %2931 = vmatpush1.msra.mxu0 0.0
    %2932 = vmatprep.subr.mxu0 0.0
    %2933 = vmatpush1.msra.mxu0 0.0
    %2934 = vmatprep.subr.mxu0 0.0
    %2935 = vmatpush1.msra.mxu0 0.0
    %2936 = vmatprep.subr.mxu0 0.0
    %2937 = vmatpush1.msra.mxu0 0.0
    %2938 = vmatprep.subr.mxu0 0.0
    %2939 = vmatpush1.msra.mxu0 0.0
    %2940 = vmatprep.subr.mxu0 0.0
    %2941 = vmatpush1.msra.mxu0 0.0
    %2942 = vmatprep.subr.mxu0 0.0
    %2943 = vmatpush1.msra.mxu0 0.0
    %2944 = vmatprep.subr.mxu0 0.0
    %2945 = vmatpush1.msra.mxu0 0.0
    %2946 = vmatprep.subr.mxu0 0.0
    %2947 = vmatpush1.msra.mxu0 0.0
    %2948 = vmatprep.subr.mxu0 0.0
    %2949 = vmatpush1.msra.mxu0 0.0
    %2950 = vmatprep.subr.mxu0 0.0
    %2951 = vmatpush1.msra.mxu0 0.0
    %2952 = vmatprep.subr.mxu0 0.0
    %2953 = vmatpush1.msra.mxu0 0.0
    %2954 = vmatprep.subr.mxu0 0.0
    %2955 = vmatpush1.msra.mxu0 0.0
    %2956 = vmatprep.subr.mxu0 0.0
    %2957 = vmatpush1.msra.mxu0 0.0
    %2958 = vmatprep.subr.mxu0 0.0
    %2959 = vmatpush1.msra.mxu0 0.0
    %2960 = vmatprep.subr.mxu0 0.0
    %2961 = vmatpush1.msra.mxu0 0.0
    %2962 = vmatprep.subr.mxu0 0.0
    %2963 = vmatpush1.msra.mxu0 0.0
    %2964 = vmatprep.subr.mxu0 0.0
    %2965 = vmatpush1.msra.mxu0 0.0
    %2966 = vmatprep.subr.mxu0 0.0
    %2967 = vmatpush1.msra.mxu0 0.0
    %2968 = vmatprep.subr.mxu0 0.0
    %2969 = vmatpush1.msra.mxu0 0.0
    %2970 = vmatprep.subr.mxu0 0.0
    %2971 = vmatpush1.msra.mxu0 0.0
    %2972 = vmatprep.subr.mxu0 0.0
    %2973 = vmatpush1.msra.mxu0 0.0
    %2974 = vmatprep.subr.mxu0 0.0
    %2975 = vmatpush1.msra.mxu0 0.0
    %2976 = vmatprep.subr.mxu0 0.0
    %2977 = vmatpush1.msra.mxu0 0.0
    %2978 = vmatprep.subr.mxu0 0.0
    %2979 = vmatpush1.msra.mxu0 0.0
    %2980 = vmatprep.subr.mxu0 0.0
    %2981 = vmatpush1.msra.mxu0 0.0
    %2982 = vmatprep.subr.mxu0 0.0
    %2983 = vmatpush1.msra.mxu0 0.0
    %2984 = vmatprep.subr.mxu0 0.0
    %2985 = vmatpush1.msra.mxu0 0.0
    %2986 = vmatprep.mubr.f32.mxu0 0.0
    %2987 = vmatmul.mubr.f32.gmra.mrb[0].mxu0 %v2917
    %v2988 = vpop.f32.mrb[0].mxu0
    %v2989 = vadd.f32 %v2914, %v2988
    %v2990 = vpop.f32.mrb[0].mxu0
    %2991 = vmatprep.mubr.f32.mxu0 0.0
    %2992 = vmatmul.mubr.f32.gmra.mrb[0].mxu0 %v2920
    %v2993 = vpop.f32.mrb[0].mxu0
    %v2994 = vadd.f32 %v2914, %v2993
    %v2995 = vpop.f32.mrb[0].mxu0
    %2996 = vdwg.mxu0
    %2997 = vst [vmem:[%s20] sm:$0xff] %v2989
    %2998 = vst [vmem:[%s20 + $0x8] sm:$0xff] %v2994
    // Predicated region
    $region90: #{_lambda_.1} parent=1 // pred_check
      _
    $region91: #{_lambda_.1} parent=1 // pred_check_branch
      %3000 = sbr.rel (0) target = $region93
    $region92: #{_lambda_.1} parent=1 // pred_region
      _
    $region93: #{_lambda_.1} parent=1 // pred_fallthru
      _
    // Predicated region
    $region94: #{_lambda_.1} parent=1 // pred_check
      _
    $region95: #{_lambda_.1} parent=1 // pred_check_branch
      %3002 = sbr.rel (0) target = $region97
    $region96: #{_lambda_.1} parent=1 // pred_region
      _
    $region97: #{_lambda_.1} parent=1 // pred_fallthru
      _
    %3003 = vsyncpa [#allocation3], 1
    %3004 = vsyncpa [#allocation5], 1

</llo_original>
